<compile_context>
chip_gen: v5e
topology: v5e:2x2
jax: 0.10.0
libtpu: 0.0.40
codegen_flags: <defaults>
</compile_context>

<pallas_src>
import functools
import math

import jax
import jax.numpy as jnp
from jax.experimental import pallas as pl
from jax.experimental.pallas import tpu as pltpu


_ROWS_PER_LAYER = 8  # in_proj_b, out_proj_b, lin1_b, lin2_b, ln1_g, ln1_b, ln2_g, ln2_b


def _layer_norm(x, g, b, eps=1e-5):
    mu = jnp.mean(x, axis=-1, keepdims=True)
    xc = x - mu
    var = jnp.mean(xc * xc, axis=-1, keepdims=True)
    return xc * jax.lax.rsqrt(var + eps) * g + b


# ----------------------------------------------------------------------------
# Fused kernel: one block of `b_blk` batch rows per grid step.
# refs = (x, smalls, <4 weights per layer>*n_layers, W1, W2, W3, out, xs, xf)
# ----------------------------------------------------------------------------
def _fused_forward_kernel(*refs, n_layers, nhead, s_len, b_blk, ff_chunk):
    nw = 4 * n_layers
    x_ref, smalls = refs[0], refs[1]
    layer_w = refs[2:2 + nw]
    w1f, w2h, w3h = refs[2 + nw:2 + nw + 3]
    o_ref = refs[2 + nw + 3]
    xs_ref, xf_ref = refs[2 + nw + 4], refs[2 + nw + 5]

    M, E = x_ref.shape                    # M = b_blk * s_len
    S = s_len
    Dh = E // nhead
    scale = 1.0 / math.sqrt(Dh)
    bf16 = jnp.bfloat16

    x = x_ref[...].astype(jnp.float32)    # residual stream kept in f32

    for l in range(n_layers):
        wqkv, wo, w1, w2 = layer_w[4 * l:4 * l + 4]
        r = _ROWS_PER_LAYER * l
        bqkv = smalls[r + 0:r + 1, :3 * E]
        bo = smalls[r + 1:r + 2, :E]
        b2 = smalls[r + 3:r + 4, :E]
        g1, be1 = smalls[r + 4:r + 5, :E], smalls[r + 5:r + 6, :E]
        g2, be2 = smalls[r + 6:r + 7, :E], smalls[r + 7:r + 8, :E]

        # ---- self-attention: one qkv matmul, batched per-head einsums ------
        qkv = jnp.dot(x.astype(bf16), wqkv[...],
                      preferred_element_type=jnp.float32) + bqkv        # (M, 3E)
        qkv3 = qkv.reshape(b_blk, S, 3 * E)                              # (Bblk, S, 3E)
        head_outs = []
        for h in range(nhead):
            lo = h * Dh
            qh = qkv3[:, :, lo:lo + Dh].astype(bf16)
            kh = qkv3[:, :, E + lo:E + lo + Dh].astype(bf16)
            vh = qkv3[:, :, 2 * E + lo:2 * E + lo + Dh].astype(bf16)
            s = jnp.einsum('bqd,bkd->bqk', qh, kh,
                           preferred_element_type=jnp.float32) * scale  # (Bblk,S,S)
            m = jnp.max(s, axis=-1, keepdims=True)
            p = jnp.exp(s - m)
            # exact reciprocal for parity with torch softmax (approx=True is the
            # faster inference option, ~1e-3 rel error).
            p = p * pl.reciprocal(jnp.sum(p, axis=-1, keepdims=True), approx=False)
            head_outs.append(jnp.einsum('bqk,bkd->bqd', p.astype(bf16), vh,
                                        preferred_element_type=jnp.float32))
        attn = jnp.concatenate(head_outs, axis=-1).reshape(M, E)        # all heads
        attn = jnp.dot(attn.astype(bf16), wo[...],
                       preferred_element_type=jnp.float32) + bo         # ONE out-proj
        x = _layer_norm(x + attn, g1, be1)                              # add & norm 1

        # ---- feed-forward (relu), chunked over the 2048 FF columns ---------
        ff_dim = w1.shape[1]
        xb = x.astype(bf16)
        ff = jnp.zeros((M, E), jnp.float32)
        for c in range(0, ff_dim, ff_chunk):
            cw = min(ff_chunk, ff_dim - c)
            hmid = jnp.dot(xb, w1[:, c:c + cw],
                           preferred_element_type=jnp.float32) + smalls[r + 2:r + 3, c:c + cw]
            hmid = jnp.maximum(hmid, 0.0)
            ff = ff + jnp.dot(hmid.astype(bf16), w2[c:c + cw, :],
                              preferred_element_type=jnp.float32)
        x = _layer_norm(x + ff + b2, g2, be2)                           # add & norm 2

    # ---- head MLP: flatten(T*E) -> 128 -> SELU -> 64 -> num_labels ---------
    num_labels = o_ref.shape[1]
    H1, H2 = w1f.shape[1], w2h.shape[1]
    rh = _ROWS_PER_LAYER * n_layers
    b1h = smalls[rh + 0:rh + 1, :H1]
    b2h = smalls[rh + 1:rh + 2, :H2]
    b3h = smalls[rh + 2:rh + 3, :num_labels]

    # Assemble the (Bblk, T*E) flattened activation with strided VMEM reads,
    # then do the whole T*E contraction as a single matmul.
    xs_ref[...] = x
    for t in range(S):
        xf_ref[:, t * E:(t + 1) * E] = xs_ref[pl.ds(t, b_blk, stride=S), :]
    h1 = jnp.dot(xf_ref[...].astype(bf16), w1f[...],
                 preferred_element_type=jnp.float32) + b1h              # (Bblk, 128)
    alpha, sc = 1.6732632423543772, 1.0507009873554805                  # SELU
    h1 = sc * jnp.where(h1 > 0.0, h1, alpha * (jnp.exp(h1) - 1.0))
    # TODO(synk): F.dropout(p=0.2) / encoder dropout(p=0.5) are identity in eval mode.
    h2 = jnp.dot(h1.astype(bf16), w2h[...], preferred_element_type=jnp.float32) + b2h
    h3 = jnp.dot(h2.astype(bf16), w3h[...], preferred_element_type=jnp.float32) + b3h
    o_ref[...] = h3.astype(o_ref.dtype)


# ----------------------------------------------------------------------------
# Wrapper
# ----------------------------------------------------------------------------
def _pack_smalls(params):
    """Concatenate every small bias / LN vector into one (rows, max_width) f32 array."""
    rows = []
    for lp in params["layers"]:
        rows += [lp["in_proj_b"], lp["out_proj_b"], lp["lin1_b"], lp["lin2_b"],
                 lp["ln1_g"], lp["ln1_b"], lp["ln2_g"], lp["ln2_b"]]
    rows += [params["W1_b"], params["W2_b"], params["W3_b"]]
    width = max(int(r.shape[-1]) for r in rows)
    packed = jnp.zeros((len(rows), width), jnp.float32)
    for i, r in enumerate(rows):
        packed = packed.at[i, :r.shape[-1]].set(r.reshape(-1).astype(jnp.float32))
    return packed


def _pick_batch_block(B, S):
    """Fold as many batch rows as possible into one grid step (target ~256 MXU rows)."""
    target = max(1, 256 // S)
    if B <= target:
        return B                           # whole batch in a single grid step
    for cand in range(target, 0, -1):      # large batches: divisor with aligned tiles
        if B % cand == 0 and cand % 8 == 0:
            return cand
    return B


def transformer_layer_forward(params, X, nhead):
    """X: (batch, time_step, d_model) -> (batch, num_labels); squeeze(0) if batch==1."""
    B, S, E = X.shape
    num_labels = int(params["W3_w"].shape[-1])
    n_layers = len(params["layers"])

    b_blk = _pick_batch_block(B, S)
    grid = (B // b_blk,)
    M = b_blk * S

    smalls = _pack_smalls(params)
    weights = []
    for lp in params["layers"]:
        weights += [lp["in_proj_w"], lp["out_proj_w"], lp["lin1_w"], lp["lin2_w"]]
    weights += [params["W1_w"], params["W2_w"], params["W3_w"]]

    x2 = X.reshape(B * S, E)               # fold batch into the matmul M dimension

    def const_spec(arr):                   # whole array resident, same block every step
        nd = arr.ndim
        return pl.BlockSpec(arr.shape, lambda i, nd=nd: (0,) * nd)

    kern = functools.partial(_fused_forward_kernel, n_layers=n_layers, nhead=nhead,
                             s_len=S, b_blk=b_blk, ff_chunk=512)
    out = pl.pallas_call(
        kern,
        out_shape=jax.ShapeDtypeStruct((B, num_labels), X.dtype),
        grid=grid,
        in_specs=([pl.BlockSpec((M, E), lambda i: (i, 0)), const_spec(smalls)]
                  + [const_spec(w) for w in weights]),
        out_specs=pl.BlockSpec((b_blk, num_labels), lambda i: (i, 0)),
        scratch_shapes=[pltpu.VMEM((M, E), jnp.float32),        # final encoder output
                        pltpu.VMEM((b_blk, S * E), jnp.float32)],  # flattened operand
        compiler_params=pltpu.CompilerParams(
            dimension_semantics=("parallel",)),
    )(x2, smalls, *weights)

    return jnp.squeeze(out, axis=0) if B == 1 else out


# ----------------------------------------------------------------------------
# Parameter init: large weights stored pre-transposed to (K, N) and in bf16,
# all small vectors in f32 (packed by the wrapper).
# ----------------------------------------------------------------------------
def xavier_uniform(key, out_dim, in_dim, gain=1.0):
    a = gain * math.sqrt(6.0 / (in_dim + out_dim))
    return jax.random.uniform(key, (out_dim, in_dim), jnp.float32, -a, a)


def init_params(key, d_model, nhead, time_step, num_labels, dim_ff=2048, n_layers=2):
    keys = iter(jax.random.split(key, 64))
    bf16 = jnp.bfloat16
    params = {"layers": []}
    for _ in range(n_layers):
        lp = {
            "in_proj_w": xavier_uniform(next(keys), 3 * d_model, d_model).T.astype(bf16),
            "in_proj_b": jnp.zeros((3 * d_model,), jnp.float32),
            "out_proj_w": xavier_uniform(next(keys), d_model, d_model).T.astype(bf16),
            "out_proj_b": jnp.zeros((d_model,), jnp.float32),
            "lin1_w": xavier_uniform(next(keys), dim_ff, d_model).T.astype(bf16),
            "lin1_b": jnp.zeros((dim_ff,), jnp.float32),
            "lin2_w": xavier_uniform(next(keys), d_model, dim_ff).T.astype(bf16),
            "lin2_b": jnp.zeros((d_model,), jnp.float32),
            "ln1_g": jnp.ones((d_model,), jnp.float32),
            "ln1_b": jnp.zeros((d_model,), jnp.float32),
            "ln2_g": jnp.ones((d_model,), jnp.float32),
            "ln2_b": jnp.zeros((d_model,), jnp.float32),
        }
        params["layers"].append(lp)
    gain = 1.414
    params["W1_w"] = xavier_uniform(next(keys), 128, d_model * time_step, gain).T.astype(bf16)
    params["W1_b"] = jnp.zeros((128,), jnp.float32)
    params["W2_w"] = xavier_uniform(next(keys), 64, 128, gain).T.astype(bf16)
    params["W2_b"] = jnp.zeros((64,), jnp.float32)
    params["W3_w"] = xavier_uniform(next(keys), num_labels, 64, gain).T.astype(bf16)
    params["W3_b"] = jnp.zeros((num_labels,), jnp.float32)
    return params


if __name__ == "__main__":
    batch, time_step, d_model, nhead, num_labels = 2, 8, 32, 4, 1

    key = jax.random.PRNGKey(0)
    k_param, k_x = jax.random.split(key)
    params = init_params(k_param, d_model, nhead, time_step, num_labels)
    X = jax.random.normal(k_x, (batch, time_step, d_model), jnp.float32)

    fwd = jax.jit(functools.partial(transformer_layer_forward, nhead=nhead))
    out = jax.block_until_ready(fwd(params, X))

    assert out.shape == (batch, num_labels), out.shape
    assert jnp.all(jnp.isfinite(out))
    print("KERNEL_OK")
</pallas_src>

<mosaic_0001>
module attributes {stable_mosaic.version = 11 : i64} {
  func.func @_fused_forward_kernel(%arg0: i32, %arg1: memref<16x32xf32, #tpu.memory_space<vmem>>, %arg2: memref<19x2048xf32, #tpu.memory_space<vmem>>, %arg3: memref<32x96xbf16, #tpu.memory_space<vmem>>, %arg4: memref<32x32xbf16, #tpu.memory_space<vmem>>, %arg5: memref<32x2048xbf16, #tpu.memory_space<vmem>>, %arg6: memref<2048x32xbf16, #tpu.memory_space<vmem>>, %arg7: memref<32x96xbf16, #tpu.memory_space<vmem>>, %arg8: memref<32x32xbf16, #tpu.memory_space<vmem>>, %arg9: memref<32x2048xbf16, #tpu.memory_space<vmem>>, %arg10: memref<2048x32xbf16, #tpu.memory_space<vmem>>, %arg11: memref<256x128xbf16, #tpu.memory_space<vmem>>, %arg12: memref<128x64xbf16, #tpu.memory_space<vmem>>, %arg13: memref<64x1xbf16, #tpu.memory_space<vmem>>, %arg14: memref<2x1xf32, #tpu.memory_space<vmem>>, %arg15: memref<16x32xf32, #tpu.memory_space<vmem>>, %arg16: memref<2x256xf32, #tpu.memory_space<vmem>>) attributes {dimension_semantics = [#tpu.dimension_semantics<parallel>], iteration_bounds = array<i64: 1>, scalar_prefetch = 0 : i64, scratch_operands = 2 : i64, tpu.core_type = #tpu.core_type<tc>, window_params = [{transform_indices = @transform_0, window_bounds = array<i64: 16, 32>}, {pipeline_mode = #tpu.pipeline_mode<synchronous>, transform_indices = @transform_1, window_bounds = array<i64: 19, 2048>}, {pipeline_mode = #tpu.pipeline_mode<synchronous>, transform_indices = @transform_2, window_bounds = array<i64: 32, 96>}, {pipeline_mode = #tpu.pipeline_mode<synchronous>, transform_indices = @transform_3, window_bounds = array<i64: 32, 32>}, {pipeline_mode = #tpu.pipeline_mode<synchronous>, transform_indices = @transform_4, window_bounds = array<i64: 32, 2048>}, {pipeline_mode = #tpu.pipeline_mode<synchronous>, transform_indices = @transform_5, window_bounds = array<i64: 2048, 32>}, {pipeline_mode = #tpu.pipeline_mode<synchronous>, transform_indices = @transform_6, window_bounds = array<i64: 32, 96>}, {pipeline_mode = #tpu.pipeline_mode<synchronous>, transform_indices = @transform_7, window_bounds = array<i64: 32, 32>}, {pipeline_mode = #tpu.pipeline_mode<synchronous>, transform_indices = @transform_8, window_bounds = array<i64: 32, 2048>}, {pipeline_mode = #tpu.pipeline_mode<synchronous>, transform_indices = @transform_9, window_bounds = array<i64: 2048, 32>}, {pipeline_mode = #tpu.pipeline_mode<synchronous>, transform_indices = @transform_10, window_bounds = array<i64: 256, 128>}, {pipeline_mode = #tpu.pipeline_mode<synchronous>, transform_indices = @transform_11, window_bounds = array<i64: 128, 64>}, {pipeline_mode = #tpu.pipeline_mode<synchronous>, transform_indices = @transform_12, window_bounds = array<i64: 64, 1>}, {transform_indices = @transform_13, window_bounds = array<i64: 2, 1>}]} {
    %c0 = arith.constant 0 : index
    %c0_0 = arith.constant 0 : index
    %0 = vector.load %arg1[%c0, %c0_0] : memref<16x32xf32, #tpu.memory_space<vmem>>, vector<16x32xf32>
    %c0_1 = arith.constant 0 : index
    %c0_2 = arith.constant 0 : index
    %1 = vector.load %arg2[%c0_1, %c0_2] : memref<19x2048xf32, #tpu.memory_space<vmem>>, vector<1x96xf32>
    %c1 = arith.constant 1 : index
    %c0_3 = arith.constant 0 : index
    %2 = vector.load %arg2[%c1, %c0_3] : memref<19x2048xf32, #tpu.memory_space<vmem>>, vector<1x32xf32>
    %c3 = arith.constant 3 : index
    %c0_4 = arith.constant 0 : index
    %3 = vector.load %arg2[%c3, %c0_4] : memref<19x2048xf32, #tpu.memory_space<vmem>>, vector<1x32xf32>
    %c4 = arith.constant 4 : index
    %c0_5 = arith.constant 0 : index
    %4 = vector.load %arg2[%c4, %c0_5] : memref<19x2048xf32, #tpu.memory_space<vmem>>, vector<1x32xf32>
    %c5 = arith.constant 5 : index
    %c0_6 = arith.constant 0 : index
    %5 = vector.load %arg2[%c5, %c0_6] : memref<19x2048xf32, #tpu.memory_space<vmem>>, vector<1x32xf32>
    %c6 = arith.constant 6 : index
    %c0_7 = arith.constant 0 : index
    %6 = vector.load %arg2[%c6, %c0_7] : memref<19x2048xf32, #tpu.memory_space<vmem>>, vector<1x32xf32>
    %c7 = arith.constant 7 : index
    %c0_8 = arith.constant 0 : index
    %7 = vector.load %arg2[%c7, %c0_8] : memref<19x2048xf32, #tpu.memory_space<vmem>>, vector<1x32xf32>
    %8 = arith.truncf %0 : vector<16x32xf32> to vector<16x32xbf16>
    %c0_9 = arith.constant 0 : index
    %c0_10 = arith.constant 0 : index
    %9 = vector.load %arg3[%c0_9, %c0_10] : memref<32x96xbf16, #tpu.memory_space<vmem>>, vector<32x96xbf16>
    %cst = arith.constant dense<0.000000e+00> : vector<16x96xf32>
    %10 = tpu.matmul %8, %9, %cst {dimension_numbers = #tpu.dot_dimension_numbers<[1], [0], [0], [1], [0, 0, 1, 1], [], []>} : vector<16x32xbf16>, vector<32x96xbf16>, vector<16x96xf32> -> vector<16x96xf32>
    %11 = vector.broadcast %1 : vector<1x96xf32> to vector<16x96xf32>
    %12 = arith.addf %10, %11 : vector<16x96xf32>
    %13 = vector.shape_cast %12 : vector<16x96xf32> to vector<2x8x96xf32>
    %14 = vector.extract_strided_slice %13 {offsets = [0, 0, 0], sizes = [2, 8, 8], strides = [1, 1, 1]} : vector<2x8x96xf32> to vector<2x8x8xf32>
    %15 = arith.truncf %14 : vector<2x8x8xf32> to vector<2x8x8xbf16>
    %16 = vector.extract_strided_slice %13 {offsets = [0, 0, 32], sizes = [2, 8, 8], strides = [1, 1, 1]} : vector<2x8x96xf32> to vector<2x8x8xf32>
    %17 = arith.truncf %16 : vector<2x8x8xf32> to vector<2x8x8xbf16>
    %18 = vector.extract_strided_slice %13 {offsets = [0, 0, 64], sizes = [2, 8, 8], strides = [1, 1, 1]} : vector<2x8x96xf32> to vector<2x8x8xf32>
    %19 = arith.truncf %18 : vector<2x8x8xf32> to vector<2x8x8xbf16>
    "tpu.trace_start"() <{level = 10 : i32, message = "bqd,bkd->bqk"}> : () -> ()
    %cst_11 = arith.constant dense<0.000000e+00> : vector<2x8x8xf32>
    %20 = tpu.matmul %15, %17, %cst_11 {dimension_numbers = #tpu.dot_dimension_numbers<[2], [2], [1], [1], [0, 0, 0, 1, 1, 1], [0], [0]>} : vector<2x8x8xbf16>, vector<2x8x8xbf16>, vector<2x8x8xf32> -> vector<2x8x8xf32>
    "tpu.trace_stop"() : () -> ()
    %cst_12 = arith.constant 0.353553385 : f32
    %21 = vector.broadcast %cst_12 : f32 to vector<2x8x8xf32>
    %22 = arith.mulf %20, %21 : vector<2x8x8xf32>
    %cst_13 = arith.constant dense<0xFF800000> : vector<2x8xf32>
    %23 = vector.multi_reduction <maximumf>, %22, %cst_13 [2] : vector<2x8x8xf32> to vector<2x8xf32>
    %24 = vector.shape_cast %23 : vector<2x8xf32> to vector<2x8x1xf32>
    %25 = vector.broadcast %24 : vector<2x8x1xf32> to vector<2x8x8xf32>
    %26 = arith.subf %22, %25 : vector<2x8x8xf32>
    %27 = math.exp %26 : vector<2x8x8xf32>
    %cst_14 = arith.constant dense<0.000000e+00> : vector<2x8xf32>
    %28 = vector.multi_reduction <add>, %27, %cst_14 [2] : vector<2x8x8xf32> to vector<2x8xf32>
    %29 = vector.shape_cast %28 : vector<2x8xf32> to vector<2x8x1xf32>
    %30 = tpu.reciprocal %29 : vector<2x8x1xf32> -> vector<2x8x1xf32>
    %31 = vector.broadcast %30 : vector<2x8x1xf32> to vector<2x8x8xf32>
    %32 = arith.mulf %27, %31 : vector<2x8x8xf32>
    %33 = arith.truncf %32 : vector<2x8x8xf32> to vector<2x8x8xbf16>
    "tpu.trace_start"() <{level = 10 : i32, message = "bqk,bkd->bqd"}> : () -> ()
    %cst_15 = arith.constant dense<0.000000e+00> : vector<2x8x8xf32>
    %34 = tpu.matmul %33, %19, %cst_15 {dimension_numbers = #tpu.dot_dimension_numbers<[2], [1], [1], [2], [0, 0, 0, 1, 1, 2], [0], [0]>} : vector<2x8x8xbf16>, vector<2x8x8xbf16>, vector<2x8x8xf32> -> vector<2x8x8xf32>
    "tpu.trace_stop"() : () -> ()
    %35 = vector.extract_strided_slice %13 {offsets = [0, 0, 8], sizes = [2, 8, 8], strides = [1, 1, 1]} : vector<2x8x96xf32> to vector<2x8x8xf32>
    %36 = arith.truncf %35 : vector<2x8x8xf32> to vector<2x8x8xbf16>
    %37 = vector.extract_strided_slice %13 {offsets = [0, 0, 40], sizes = [2, 8, 8], strides = [1, 1, 1]} : vector<2x8x96xf32> to vector<2x8x8xf32>
    %38 = arith.truncf %37 : vector<2x8x8xf32> to vector<2x8x8xbf16>
    %39 = vector.extract_strided_slice %13 {offsets = [0, 0, 72], sizes = [2, 8, 8], strides = [1, 1, 1]} : vector<2x8x96xf32> to vector<2x8x8xf32>
    %40 = arith.truncf %39 : vector<2x8x8xf32> to vector<2x8x8xbf16>
    "tpu.trace_start"() <{level = 10 : i32, message = "bqd,bkd->bqk"}> : () -> ()
    %cst_16 = arith.constant dense<0.000000e+00> : vector<2x8x8xf32>
    %41 = tpu.matmul %36, %38, %cst_16 {dimension_numbers = #tpu.dot_dimension_numbers<[2], [2], [1], [1], [0, 0, 0, 1, 1, 1], [0], [0]>} : vector<2x8x8xbf16>, vector<2x8x8xbf16>, vector<2x8x8xf32> -> vector<2x8x8xf32>
    "tpu.trace_stop"() : () -> ()
    %cst_17 = arith.constant 0.353553385 : f32
    %42 = vector.broadcast %cst_17 : f32 to vector<2x8x8xf32>
    %43 = arith.mulf %41, %42 : vector<2x8x8xf32>
    %cst_18 = arith.constant dense<0xFF800000> : vector<2x8xf32>
    %44 = vector.multi_reduction <maximumf>, %43, %cst_18 [2] : vector<2x8x8xf32> to vector<2x8xf32>
    %45 = vector.shape_cast %44 : vector<2x8xf32> to vector<2x8x1xf32>
    %46 = vector.broadcast %45 : vector<2x8x1xf32> to vector<2x8x8xf32>
    %47 = arith.subf %43, %46 : vector<2x8x8xf32>
    %48 = math.exp %47 : vector<2x8x8xf32>
    %cst_19 = arith.constant dense<0.000000e+00> : vector<2x8xf32>
    %49 = vector.multi_reduction <add>, %48, %cst_19 [2] : vector<2x8x8xf32> to vector<2x8xf32>
    %50 = vector.shape_cast %49 : vector<2x8xf32> to vector<2x8x1xf32>
    %51 = tpu.reciprocal %50 : vector<2x8x1xf32> -> vector<2x8x1xf32>
    %52 = vector.broadcast %51 : vector<2x8x1xf32> to vector<2x8x8xf32>
    %53 = arith.mulf %48, %52 : vector<2x8x8xf32>
    %54 = arith.truncf %53 : vector<2x8x8xf32> to vector<2x8x8xbf16>
    "tpu.trace_start"() <{level = 10 : i32, message = "bqk,bkd->bqd"}> : () -> ()
    %cst_20 = arith.constant dense<0.000000e+00> : vector<2x8x8xf32>
    %55 = tpu.matmul %54, %40, %cst_20 {dimension_numbers = #tpu.dot_dimension_numbers<[2], [1], [1], [2], [0, 0, 0, 1, 1, 2], [0], [0]>} : vector<2x8x8xbf16>, vector<2x8x8xbf16>, vector<2x8x8xf32> -> vector<2x8x8xf32>
    "tpu.trace_stop"() : () -> ()
    %56 = vector.extract_strided_slice %13 {offsets = [0, 0, 16], sizes = [2, 8, 8], strides = [1, 1, 1]} : vector<2x8x96xf32> to vector<2x8x8xf32>
    %57 = arith.truncf %56 : vector<2x8x8xf32> to vector<2x8x8xbf16>
    %58 = vector.extract_strided_slice %13 {offsets = [0, 0, 48], sizes = [2, 8, 8], strides = [1, 1, 1]} : vector<2x8x96xf32> to vector<2x8x8xf32>
    %59 = arith.truncf %58 : vector<2x8x8xf32> to vector<2x8x8xbf16>
    %60 = vector.extract_strided_slice %13 {offsets = [0, 0, 80], sizes = [2, 8, 8], strides = [1, 1, 1]} : vector<2x8x96xf32> to vector<2x8x8xf32>
    %61 = arith.truncf %60 : vector<2x8x8xf32> to vector<2x8x8xbf16>
    "tpu.trace_start"() <{level = 10 : i32, message = "bqd,bkd->bqk"}> : () -> ()
    %cst_21 = arith.constant dense<0.000000e+00> : vector<2x8x8xf32>
    %62 = tpu.matmul %57, %59, %cst_21 {dimension_numbers = #tpu.dot_dimension_numbers<[2], [2], [1], [1], [0, 0, 0, 1, 1, 1], [0], [0]>} : vector<2x8x8xbf16>, vector<2x8x8xbf16>, vector<2x8x8xf32> -> vector<2x8x8xf32>
    "tpu.trace_stop"() : () -> ()
    %cst_22 = arith.constant 0.353553385 : f32
    %63 = vector.broadcast %cst_22 : f32 to vector<2x8x8xf32>
    %64 = arith.mulf %62, %63 : vector<2x8x8xf32>
    %cst_23 = arith.constant dense<0xFF800000> : vector<2x8xf32>
    %65 = vector.multi_reduction <maximumf>, %64, %cst_23 [2] : vector<2x8x8xf32> to vector<2x8xf32>
    %66 = vector.shape_cast %65 : vector<2x8xf32> to vector<2x8x1xf32>
    %67 = vector.broadcast %66 : vector<2x8x1xf32> to vector<2x8x8xf32>
    %68 = arith.subf %64, %67 : vector<2x8x8xf32>
    %69 = math.exp %68 : vector<2x8x8xf32>
    %cst_24 = arith.constant dense<0.000000e+00> : vector<2x8xf32>
    %70 = vector.multi_reduction <add>, %69, %cst_24 [2] : vector<2x8x8xf32> to vector<2x8xf32>
    %71 = vector.shape_cast %70 : vector<2x8xf32> to vector<2x8x1xf32>
    %72 = tpu.reciprocal %71 : vector<2x8x1xf32> -> vector<2x8x1xf32>
    %73 = vector.broadcast %72 : vector<2x8x1xf32> to vector<2x8x8xf32>
    %74 = arith.mulf %69, %73 : vector<2x8x8xf32>
    %75 = arith.truncf %74 : vector<2x8x8xf32> to vector<2x8x8xbf16>
    "tpu.trace_start"() <{level = 10 : i32, message = "bqk,bkd->bqd"}> : () -> ()
    %cst_25 = arith.constant dense<0.000000e+00> : vector<2x8x8xf32>
    %76 = tpu.matmul %75, %61, %cst_25 {dimension_numbers = #tpu.dot_dimension_numbers<[2], [1], [1], [2], [0, 0, 0, 1, 1, 2], [0], [0]>} : vector<2x8x8xbf16>, vector<2x8x8xbf16>, vector<2x8x8xf32> -> vector<2x8x8xf32>
    "tpu.trace_stop"() : () -> ()
    %77 = vector.extract_strided_slice %13 {offsets = [0, 0, 24], sizes = [2, 8, 8], strides = [1, 1, 1]} : vector<2x8x96xf32> to vector<2x8x8xf32>
    %78 = arith.truncf %77 : vector<2x8x8xf32> to vector<2x8x8xbf16>
    %79 = vector.extract_strided_slice %13 {offsets = [0, 0, 56], sizes = [2, 8, 8], strides = [1, 1, 1]} : vector<2x8x96xf32> to vector<2x8x8xf32>
    %80 = arith.truncf %79 : vector<2x8x8xf32> to vector<2x8x8xbf16>
    %81 = vector.extract_strided_slice %13 {offsets = [0, 0, 88], sizes = [2, 8, 8], strides = [1, 1, 1]} : vector<2x8x96xf32> to vector<2x8x8xf32>
    %82 = arith.truncf %81 : vector<2x8x8xf32> to vector<2x8x8xbf16>
    "tpu.trace_start"() <{level = 10 : i32, message = "bqd,bkd->bqk"}> : () -> ()
    %cst_26 = arith.constant dense<0.000000e+00> : vector<2x8x8xf32>
    %83 = tpu.matmul %78, %80, %cst_26 {dimension_numbers = #tpu.dot_dimension_numbers<[2], [2], [1], [1], [0, 0, 0, 1, 1, 1], [0], [0]>} : vector<2x8x8xbf16>, vector<2x8x8xbf16>, vector<2x8x8xf32> -> vector<2x8x8xf32>
    "tpu.trace_stop"() : () -> ()
    %cst_27 = arith.constant 0.353553385 : f32
    %84 = vector.broadcast %cst_27 : f32 to vector<2x8x8xf32>
    %85 = arith.mulf %83, %84 : vector<2x8x8xf32>
    %cst_28 = arith.constant dense<0xFF800000> : vector<2x8xf32>
    %86 = vector.multi_reduction <maximumf>, %85, %cst_28 [2] : vector<2x8x8xf32> to vector<2x8xf32>
    %87 = vector.shape_cast %86 : vector<2x8xf32> to vector<2x8x1xf32>
    %88 = vector.broadcast %87 : vector<2x8x1xf32> to vector<2x8x8xf32>
    %89 = arith.subf %85, %88 : vector<2x8x8xf32>
    %90 = math.exp %89 : vector<2x8x8xf32>
    %cst_29 = arith.constant dense<0.000000e+00> : vector<2x8xf32>
    %91 = vector.multi_reduction <add>, %90, %cst_29 [2] : vector<2x8x8xf32> to vector<2x8xf32>
    %92 = vector.shape_cast %91 : vector<2x8xf32> to vector<2x8x1xf32>
    %93 = tpu.reciprocal %92 : vector<2x8x1xf32> -> vector<2x8x1xf32>
    %94 = vector.broadcast %93 : vector<2x8x1xf32> to vector<2x8x8xf32>
    %95 = arith.mulf %90, %94 : vector<2x8x8xf32>
    %96 = arith.truncf %95 : vector<2x8x8xf32> to vector<2x8x8xbf16>
    "tpu.trace_start"() <{level = 10 : i32, message = "bqk,bkd->bqd"}> : () -> ()
    %cst_30 = arith.constant dense<0.000000e+00> : vector<2x8x8xf32>
    %97 = tpu.matmul %96, %82, %cst_30 {dimension_numbers = #tpu.dot_dimension_numbers<[2], [1], [1], [2], [0, 0, 0, 1, 1, 2], [0], [0]>} : vector<2x8x8xbf16>, vector<2x8x8xbf16>, vector<2x8x8xf32> -> vector<2x8x8xf32>
    "tpu.trace_stop"() : () -> ()
    %98 = tpu.concatenate %34, %55, %76, %97 in 2 : vector<2x8x8xf32>, vector<2x8x8xf32>, vector<2x8x8xf32>, vector<2x8x8xf32> -> vector<2x8x32xf32>
    %99 = vector.shape_cast %98 : vector<2x8x32xf32> to vector<16x32xf32>
    %100 = arith.truncf %99 : vector<16x32xf32> to vector<16x32xbf16>
    %c0_31 = arith.constant 0 : index
    %c0_32 = arith.constant 0 : index
    %101 = vector.load %arg4[%c0_31, %c0_32] : memref<32x32xbf16, #tpu.memory_space<vmem>>, vector<32x32xbf16>
    %cst_33 = arith.constant dense<0.000000e+00> : vector<16x32xf32>
    %102 = tpu.matmul %100, %101, %cst_33 {dimension_numbers = #tpu.dot_dimension_numbers<[1], [0], [0], [1], [0, 0, 1, 1], [], []>} : vector<16x32xbf16>, vector<32x32xbf16>, vector<16x32xf32> -> vector<16x32xf32>
    %103 = vector.broadcast %2 : vector<1x32xf32> to vector<16x32xf32>
    %104 = arith.addf %102, %103 : vector<16x32xf32>
    %105 = arith.addf %0, %104 : vector<16x32xf32>
    %cst_34 = arith.constant dense<0.000000e+00> : vector<16xf32>
    %106 = vector.multi_reduction <add>, %105, %cst_34 [1] : vector<16x32xf32> to vector<16xf32>
    %107 = vector.shape_cast %106 : vector<16xf32> to vector<16x1xf32>
    %cst_35 = arith.constant 3.200000e+01 : f32
    %108 = vector.broadcast %cst_35 : f32 to vector<16x1xf32>
    %109 = arith.divf %107, %108 : vector<16x1xf32>
    %110 = vector.broadcast %109 : vector<16x1xf32> to vector<16x32xf32>
    %111 = arith.subf %105, %110 : vector<16x32xf32>
    %112 = arith.mulf %111, %111 : vector<16x32xf32>
    %cst_36 = arith.constant dense<0.000000e+00> : vector<16xf32>
    %113 = vector.multi_reduction <add>, %112, %cst_36 [1] : vector<16x32xf32> to vector<16xf32>
    %114 = vector.shape_cast %113 : vector<16xf32> to vector<16x1xf32>
    %cst_37 = arith.constant 3.200000e+01 : f32
    %115 = vector.broadcast %cst_37 : f32 to vector<16x1xf32>
    %116 = arith.divf %114, %115 : vector<16x1xf32>
    %cst_38 = arith.constant 9.99999974E-6 : f32
    %117 = vector.broadcast %cst_38 : f32 to vector<16x1xf32>
    %118 = arith.addf %116, %117 : vector<16x1xf32>
    %119 = math.rsqrt %118 : vector<16x1xf32>
    %120 = vector.broadcast %119 : vector<16x1xf32> to vector<16x32xf32>
    %121 = arith.mulf %111, %120 : vector<16x32xf32>
    %122 = vector.broadcast %4 : vector<1x32xf32> to vector<16x32xf32>
    %123 = arith.mulf %121, %122 : vector<16x32xf32>
    %124 = vector.broadcast %5 : vector<1x32xf32> to vector<16x32xf32>
    %125 = arith.addf %123, %124 : vector<16x32xf32>
    %126 = arith.truncf %125 : vector<16x32xf32> to vector<16x32xbf16>
    %cst_39 = arith.constant 0.000000e+00 : f32
    %127 = vector.broadcast %cst_39 : f32 to vector<16x32xf32>
    %c0_40 = arith.constant 0 : index
    %c0_41 = arith.constant 0 : index
    %128 = vector.load %arg5[%c0_40, %c0_41] : memref<32x2048xbf16, #tpu.memory_space<vmem>>, vector<32x512xbf16>
    %cst_42 = arith.constant dense<0.000000e+00> : vector<16x512xf32>
    %129 = tpu.matmul %126, %128, %cst_42 {dimension_numbers = #tpu.dot_dimension_numbers<[1], [0], [0], [1], [0, 0, 1, 1], [], []>} : vector<16x32xbf16>, vector<32x512xbf16>, vector<16x512xf32> -> vector<16x512xf32>
    %c2 = arith.constant 2 : index
    %c0_43 = arith.constant 0 : index
    %130 = vector.load %arg2[%c2, %c0_43] : memref<19x2048xf32, #tpu.memory_space<vmem>>, vector<1x512xf32>
    %131 = vector.broadcast %130 : vector<1x512xf32> to vector<16x512xf32>
    %132 = arith.addf %129, %131 : vector<16x512xf32>
    %cst_44 = arith.constant 0.000000e+00 : f32
    %133 = vector.broadcast %cst_44 : f32 to vector<16x512xf32>
    %134 = arith.maximumf %132, %133 : vector<16x512xf32>
    %135 = arith.truncf %134 : vector<16x512xf32> to vector<16x512xbf16>
    %c0_45 = arith.constant 0 : index
    %c0_46 = arith.constant 0 : index
    %136 = vector.load %arg6[%c0_45, %c0_46] : memref<2048x32xbf16, #tpu.memory_space<vmem>>, vector<512x32xbf16>
    %cst_47 = arith.constant dense<0.000000e+00> : vector<16x32xf32>
    %137 = tpu.matmul %135, %136, %cst_47 {dimension_numbers = #tpu.dot_dimension_numbers<[1], [0], [0], [1], [0, 0, 1, 1], [], []>} : vector<16x512xbf16>, vector<512x32xbf16>, vector<16x32xf32> -> vector<16x32xf32>
    %138 = arith.addf %127, %137 : vector<16x32xf32>
    %c0_48 = arith.constant 0 : index
    %c512 = arith.constant 512 : index
    %139 = vector.load %arg5[%c0_48, %c512] : memref<32x2048xbf16, #tpu.memory_space<vmem>>, vector<32x512xbf16>
    %cst_49 = arith.constant dense<0.000000e+00> : vector<16x512xf32>
    %140 = tpu.matmul %126, %139, %cst_49 {dimension_numbers = #tpu.dot_dimension_numbers<[1], [0], [0], [1], [0, 0, 1, 1], [], []>} : vector<16x32xbf16>, vector<32x512xbf16>, vector<16x512xf32> -> vector<16x512xf32>
    %c2_50 = arith.constant 2 : index
    %c512_51 = arith.constant 512 : index
    %141 = vector.load %arg2[%c2_50, %c512_51] : memref<19x2048xf32, #tpu.memory_space<vmem>>, vector<1x512xf32>
    %142 = vector.broadcast %141 : vector<1x512xf32> to vector<16x512xf32>
    %143 = arith.addf %140, %142 : vector<16x512xf32>
    %cst_52 = arith.constant 0.000000e+00 : f32
    %144 = vector.broadcast %cst_52 : f32 to vector<16x512xf32>
    %145 = arith.maximumf %143, %144 : vector<16x512xf32>
    %146 = arith.truncf %145 : vector<16x512xf32> to vector<16x512xbf16>
    %c512_53 = arith.constant 512 : index
    %c0_54 = arith.constant 0 : index
    %147 = vector.load %arg6[%c512_53, %c0_54] : memref<2048x32xbf16, #tpu.memory_space<vmem>>, vector<512x32xbf16>
    %cst_55 = arith.constant dense<0.000000e+00> : vector<16x32xf32>
    %148 = tpu.matmul %146, %147, %cst_55 {dimension_numbers = #tpu.dot_dimension_numbers<[1], [0], [0], [1], [0, 0, 1, 1], [], []>} : vector<16x512xbf16>, vector<512x32xbf16>, vector<16x32xf32> -> vector<16x32xf32>
    %149 = arith.addf %138, %148 : vector<16x32xf32>
    %c0_56 = arith.constant 0 : index
    %c1024 = arith.constant 1024 : index
    %150 = vector.load %arg5[%c0_56, %c1024] : memref<32x2048xbf16, #tpu.memory_space<vmem>>, vector<32x512xbf16>
    %cst_57 = arith.constant dense<0.000000e+00> : vector<16x512xf32>
    %151 = tpu.matmul %126, %150, %cst_57 {dimension_numbers = #tpu.dot_dimension_numbers<[1], [0], [0], [1], [0, 0, 1, 1], [], []>} : vector<16x32xbf16>, vector<32x512xbf16>, vector<16x512xf32> -> vector<16x512xf32>
    %c2_58 = arith.constant 2 : index
    %c1024_59 = arith.constant 1024 : index
    %152 = vector.load %arg2[%c2_58, %c1024_59] : memref<19x2048xf32, #tpu.memory_space<vmem>>, vector<1x512xf32>
    %153 = vector.broadcast %152 : vector<1x512xf32> to vector<16x512xf32>
    %154 = arith.addf %151, %153 : vector<16x512xf32>
    %cst_60 = arith.constant 0.000000e+00 : f32
    %155 = vector.broadcast %cst_60 : f32 to vector<16x512xf32>
    %156 = arith.maximumf %154, %155 : vector<16x512xf32>
    %157 = arith.truncf %156 : vector<16x512xf32> to vector<16x512xbf16>
    %c1024_61 = arith.constant 1024 : index
    %c0_62 = arith.constant 0 : index
    %158 = vector.load %arg6[%c1024_61, %c0_62] : memref<2048x32xbf16, #tpu.memory_space<vmem>>, vector<512x32xbf16>
    %cst_63 = arith.constant dense<0.000000e+00> : vector<16x32xf32>
    %159 = tpu.matmul %157, %158, %cst_63 {dimension_numbers = #tpu.dot_dimension_numbers<[1], [0], [0], [1], [0, 0, 1, 1], [], []>} : vector<16x512xbf16>, vector<512x32xbf16>, vector<16x32xf32> -> vector<16x32xf32>
    %160 = arith.addf %149, %159 : vector<16x32xf32>
    %c0_64 = arith.constant 0 : index
    %c1536 = arith.constant 1536 : index
    %161 = vector.load %arg5[%c0_64, %c1536] : memref<32x2048xbf16, #tpu.memory_space<vmem>>, vector<32x512xbf16>
    %cst_65 = arith.constant dense<0.000000e+00> : vector<16x512xf32>
    %162 = tpu.matmul %126, %161, %cst_65 {dimension_numbers = #tpu.dot_dimension_numbers<[1], [0], [0], [1], [0, 0, 1, 1], [], []>} : vector<16x32xbf16>, vector<32x512xbf16>, vector<16x512xf32> -> vector<16x512xf32>
    %c2_66 = arith.constant 2 : index
    %c1536_67 = arith.constant 1536 : index
    %163 = vector.load %arg2[%c2_66, %c1536_67] : memref<19x2048xf32, #tpu.memory_space<vmem>>, vector<1x512xf32>
    %164 = vector.broadcast %163 : vector<1x512xf32> to vector<16x512xf32>
    %165 = arith.addf %162, %164 : vector<16x512xf32>
    %cst_68 = arith.constant 0.000000e+00 : f32
    %166 = vector.broadcast %cst_68 : f32 to vector<16x512xf32>
    %167 = arith.maximumf %165, %166 : vector<16x512xf32>
    %168 = arith.truncf %167 : vector<16x512xf32> to vector<16x512xbf16>
    %c1536_69 = arith.constant 1536 : index
    %c0_70 = arith.constant 0 : index
    %169 = vector.load %arg6[%c1536_69, %c0_70] : memref<2048x32xbf16, #tpu.memory_space<vmem>>, vector<512x32xbf16>
    %cst_71 = arith.constant dense<0.000000e+00> : vector<16x32xf32>
    %170 = tpu.matmul %168, %169, %cst_71 {dimension_numbers = #tpu.dot_dimension_numbers<[1], [0], [0], [1], [0, 0, 1, 1], [], []>} : vector<16x512xbf16>, vector<512x32xbf16>, vector<16x32xf32> -> vector<16x32xf32>
    %171 = arith.addf %160, %170 : vector<16x32xf32>
    %172 = arith.addf %125, %171 : vector<16x32xf32>
    %173 = vector.broadcast %3 : vector<1x32xf32> to vector<16x32xf32>
    %174 = arith.addf %172, %173 : vector<16x32xf32>
    %cst_72 = arith.constant dense<0.000000e+00> : vector<16xf32>
    %175 = vector.multi_reduction <add>, %174, %cst_72 [1] : vector<16x32xf32> to vector<16xf32>
    %176 = vector.shape_cast %175 : vector<16xf32> to vector<16x1xf32>
    %cst_73 = arith.constant 3.200000e+01 : f32
    %177 = vector.broadcast %cst_73 : f32 to vector<16x1xf32>
    %178 = arith.divf %176, %177 : vector<16x1xf32>
    %179 = vector.broadcast %178 : vector<16x1xf32> to vector<16x32xf32>
    %180 = arith.subf %174, %179 : vector<16x32xf32>
    %181 = arith.mulf %180, %180 : vector<16x32xf32>
    %cst_74 = arith.constant dense<0.000000e+00> : vector<16xf32>
    %182 = vector.multi_reduction <add>, %181, %cst_74 [1] : vector<16x32xf32> to vector<16xf32>
    %183 = vector.shape_cast %182 : vector<16xf32> to vector<16x1xf32>
    %cst_75 = arith.constant 3.200000e+01 : f32
    %184 = vector.broadcast %cst_75 : f32 to vector<16x1xf32>
    %185 = arith.divf %183, %184 : vector<16x1xf32>
    %cst_76 = arith.constant 9.99999974E-6 : f32
    %186 = vector.broadcast %cst_76 : f32 to vector<16x1xf32>
    %187 = arith.addf %185, %186 : vector<16x1xf32>
    %188 = math.rsqrt %187 : vector<16x1xf32>
    %189 = vector.broadcast %188 : vector<16x1xf32> to vector<16x32xf32>
    %190 = arith.mulf %180, %189 : vector<16x32xf32>
    %191 = vector.broadcast %6 : vector<1x32xf32> to vector<16x32xf32>
    %192 = arith.mulf %190, %191 : vector<16x32xf32>
    %193 = vector.broadcast %7 : vector<1x32xf32> to vector<16x32xf32>
    %194 = arith.addf %192, %193 : vector<16x32xf32>
    %c8 = arith.constant 8 : index
    %c0_77 = arith.constant 0 : index
    %195 = vector.load %arg2[%c8, %c0_77] : memref<19x2048xf32, #tpu.memory_space<vmem>>, vector<1x96xf32>
    %c9 = arith.constant 9 : index
    %c0_78 = arith.constant 0 : index
    %196 = vector.load %arg2[%c9, %c0_78] : memref<19x2048xf32, #tpu.memory_space<vmem>>, vector<1x32xf32>
    %c11 = arith.constant 11 : index
    %c0_79 = arith.constant 0 : index
    %197 = vector.load %arg2[%c11, %c0_79] : memref<19x2048xf32, #tpu.memory_space<vmem>>, vector<1x32xf32>
    %c12 = arith.constant 12 : index
    %c0_80 = arith.constant 0 : index
    %198 = vector.load %arg2[%c12, %c0_80] : memref<19x2048xf32, #tpu.memory_space<vmem>>, vector<1x32xf32>
    %c13 = arith.constant 13 : index
    %c0_81 = arith.constant 0 : index
    %199 = vector.load %arg2[%c13, %c0_81] : memref<19x2048xf32, #tpu.memory_space<vmem>>, vector<1x32xf32>
    %c14 = arith.constant 14 : index
    %c0_82 = arith.constant 0 : index
    %200 = vector.load %arg2[%c14, %c0_82] : memref<19x2048xf32, #tpu.memory_space<vmem>>, vector<1x32xf32>
    %c15 = arith.constant 15 : index
    %c0_83 = arith.constant 0 : index
    %201 = vector.load %arg2[%c15, %c0_83] : memref<19x2048xf32, #tpu.memory_space<vmem>>, vector<1x32xf32>
    %202 = arith.truncf %194 : vector<16x32xf32> to vector<16x32xbf16>
    %c0_84 = arith.constant 0 : index
    %c0_85 = arith.constant 0 : index
    %203 = vector.load %arg7[%c0_84, %c0_85] : memref<32x96xbf16, #tpu.memory_space<vmem>>, vector<32x96xbf16>
    %cst_86 = arith.constant dense<0.000000e+00> : vector<16x96xf32>
    %204 = tpu.matmul %202, %203, %cst_86 {dimension_numbers = #tpu.dot_dimension_numbers<[1], [0], [0], [1], [0, 0, 1, 1], [], []>} : vector<16x32xbf16>, vector<32x96xbf16>, vector<16x96xf32> -> vector<16x96xf32>
    %205 = vector.broadcast %195 : vector<1x96xf32> to vector<16x96xf32>
    %206 = arith.addf %204, %205 : vector<16x96xf32>
    %207 = vector.shape_cast %206 : vector<16x96xf32> to vector<2x8x96xf32>
    %208 = vector.extract_strided_slice %207 {offsets = [0, 0, 0], sizes = [2, 8, 8], strides = [1, 1, 1]} : vector<2x8x96xf32> to vector<2x8x8xf32>
    %209 = arith.truncf %208 : vector<2x8x8xf32> to vector<2x8x8xbf16>
    %210 = vector.extract_strided_slice %207 {offsets = [0, 0, 32], sizes = [2, 8, 8], strides = [1, 1, 1]} : vector<2x8x96xf32> to vector<2x8x8xf32>
    %211 = arith.truncf %210 : vector<2x8x8xf32> to vector<2x8x8xbf16>
    %212 = vector.extract_strided_slice %207 {offsets = [0, 0, 64], sizes = [2, 8, 8], strides = [1, 1, 1]} : vector<2x8x96xf32> to vector<2x8x8xf32>
    %213 = arith.truncf %212 : vector<2x8x8xf32> to vector<2x8x8xbf16>
    "tpu.trace_start"() <{level = 10 : i32, message = "bqd,bkd->bqk"}> : () -> ()
    %cst_87 = arith.constant dense<0.000000e+00> : vector<2x8x8xf32>
    %214 = tpu.matmul %209, %211, %cst_87 {dimension_numbers = #tpu.dot_dimension_numbers<[2], [2], [1], [1], [0, 0, 0, 1, 1, 1], [0], [0]>} : vector<2x8x8xbf16>, vector<2x8x8xbf16>, vector<2x8x8xf32> -> vector<2x8x8xf32>
    "tpu.trace_stop"() : () -> ()
    %cst_88 = arith.constant 0.353553385 : f32
    %215 = vector.broadcast %cst_88 : f32 to vector<2x8x8xf32>
    %216 = arith.mulf %214, %215 : vector<2x8x8xf32>
    %cst_89 = arith.constant dense<0xFF800000> : vector<2x8xf32>
    %217 = vector.multi_reduction <maximumf>, %216, %cst_89 [2] : vector<2x8x8xf32> to vector<2x8xf32>
    %218 = vector.shape_cast %217 : vector<2x8xf32> to vector<2x8x1xf32>
    %219 = vector.broadcast %218 : vector<2x8x1xf32> to vector<2x8x8xf32>
    %220 = arith.subf %216, %219 : vector<2x8x8xf32>
    %221 = math.exp %220 : vector<2x8x8xf32>
    %cst_90 = arith.constant dense<0.000000e+00> : vector<2x8xf32>
    %222 = vector.multi_reduction <add>, %221, %cst_90 [2] : vector<2x8x8xf32> to vector<2x8xf32>
    %223 = vector.shape_cast %222 : vector<2x8xf32> to vector<2x8x1xf32>
    %224 = tpu.reciprocal %223 : vector<2x8x1xf32> -> vector<2x8x1xf32>
    %225 = vector.broadcast %224 : vector<2x8x1xf32> to vector<2x8x8xf32>
    %226 = arith.mulf %221, %225 : vector<2x8x8xf32>
    %227 = arith.truncf %226 : vector<2x8x8xf32> to vector<2x8x8xbf16>
    "tpu.trace_start"() <{level = 10 : i32, message = "bqk,bkd->bqd"}> : () -> ()
    %cst_91 = arith.constant dense<0.000000e+00> : vector<2x8x8xf32>
    %228 = tpu.matmul %227, %213, %cst_91 {dimension_numbers = #tpu.dot_dimension_numbers<[2], [1], [1], [2], [0, 0, 0, 1, 1, 2], [0], [0]>} : vector<2x8x8xbf16>, vector<2x8x8xbf16>, vector<2x8x8xf32> -> vector<2x8x8xf32>
    "tpu.trace_stop"() : () -> ()
    %229 = vector.extract_strided_slice %207 {offsets = [0, 0, 8], sizes = [2, 8, 8], strides = [1, 1, 1]} : vector<2x8x96xf32> to vector<2x8x8xf32>
    %230 = arith.truncf %229 : vector<2x8x8xf32> to vector<2x8x8xbf16>
    %231 = vector.extract_strided_slice %207 {offsets = [0, 0, 40], sizes = [2, 8, 8], strides = [1, 1, 1]} : vector<2x8x96xf32> to vector<2x8x8xf32>
    %232 = arith.truncf %231 : vector<2x8x8xf32> to vector<2x8x8xbf16>
    %233 = vector.extract_strided_slice %207 {offsets = [0, 0, 72], sizes = [2, 8, 8], strides = [1, 1, 1]} : vector<2x8x96xf32> to vector<2x8x8xf32>
    %234 = arith.truncf %233 : vector<2x8x8xf32> to vector<2x8x8xbf16>
    "tpu.trace_start"() <{level = 10 : i32, message = "bqd,bkd->bqk"}> : () -> ()
    %cst_92 = arith.constant dense<0.000000e+00> : vector<2x8x8xf32>
    %235 = tpu.matmul %230, %232, %cst_92 {dimension_numbers = #tpu.dot_dimension_numbers<[2], [2], [1], [1], [0, 0, 0, 1, 1, 1], [0], [0]>} : vector<2x8x8xbf16>, vector<2x8x8xbf16>, vector<2x8x8xf32> -> vector<2x8x8xf32>
    "tpu.trace_stop"() : () -> ()
    %cst_93 = arith.constant 0.353553385 : f32
    %236 = vector.broadcast %cst_93 : f32 to vector<2x8x8xf32>
    %237 = arith.mulf %235, %236 : vector<2x8x8xf32>
    %cst_94 = arith.constant dense<0xFF800000> : vector<2x8xf32>
    %238 = vector.multi_reduction <maximumf>, %237, %cst_94 [2] : vector<2x8x8xf32> to vector<2x8xf32>
    %239 = vector.shape_cast %238 : vector<2x8xf32> to vector<2x8x1xf32>
    %240 = vector.broadcast %239 : vector<2x8x1xf32> to vector<2x8x8xf32>
    %241 = arith.subf %237, %240 : vector<2x8x8xf32>
    %242 = math.exp %241 : vector<2x8x8xf32>
    %cst_95 = arith.constant dense<0.000000e+00> : vector<2x8xf32>
    %243 = vector.multi_reduction <add>, %242, %cst_95 [2] : vector<2x8x8xf32> to vector<2x8xf32>
    %244 = vector.shape_cast %243 : vector<2x8xf32> to vector<2x8x1xf32>
    %245 = tpu.reciprocal %244 : vector<2x8x1xf32> -> vector<2x8x1xf32>
    %246 = vector.broadcast %245 : vector<2x8x1xf32> to vector<2x8x8xf32>
    %247 = arith.mulf %242, %246 : vector<2x8x8xf32>
    %248 = arith.truncf %247 : vector<2x8x8xf32> to vector<2x8x8xbf16>
    "tpu.trace_start"() <{level = 10 : i32, message = "bqk,bkd->bqd"}> : () -> ()
    %cst_96 = arith.constant dense<0.000000e+00> : vector<2x8x8xf32>
    %249 = tpu.matmul %248, %234, %cst_96 {dimension_numbers = #tpu.dot_dimension_numbers<[2], [1], [1], [2], [0, 0, 0, 1, 1, 2], [0], [0]>} : vector<2x8x8xbf16>, vector<2x8x8xbf16>, vector<2x8x8xf32> -> vector<2x8x8xf32>
    "tpu.trace_stop"() : () -> ()
    %250 = vector.extract_strided_slice %207 {offsets = [0, 0, 16], sizes = [2, 8, 8], strides = [1, 1, 1]} : vector<2x8x96xf32> to vector<2x8x8xf32>
    %251 = arith.truncf %250 : vector<2x8x8xf32> to vector<2x8x8xbf16>
    %252 = vector.extract_strided_slice %207 {offsets = [0, 0, 48], sizes = [2, 8, 8], strides = [1, 1, 1]} : vector<2x8x96xf32> to vector<2x8x8xf32>
    %253 = arith.truncf %252 : vector<2x8x8xf32> to vector<2x8x8xbf16>
    %254 = vector.extract_strided_slice %207 {offsets = [0, 0, 80], sizes = [2, 8, 8], strides = [1, 1, 1]} : vector<2x8x96xf32> to vector<2x8x8xf32>
    %255 = arith.truncf %254 : vector<2x8x8xf32> to vector<2x8x8xbf16>
    "tpu.trace_start"() <{level = 10 : i32, message = "bqd,bkd->bqk"}> : () -> ()
    %cst_97 = arith.constant dense<0.000000e+00> : vector<2x8x8xf32>
    %256 = tpu.matmul %251, %253, %cst_97 {dimension_numbers = #tpu.dot_dimension_numbers<[2], [2], [1], [1], [0, 0, 0, 1, 1, 1], [0], [0]>} : vector<2x8x8xbf16>, vector<2x8x8xbf16>, vector<2x8x8xf32> -> vector<2x8x8xf32>
    "tpu.trace_stop"() : () -> ()
    %cst_98 = arith.constant 0.353553385 : f32
    %257 = vector.broadcast %cst_98 : f32 to vector<2x8x8xf32>
    %258 = arith.mulf %256, %257 : vector<2x8x8xf32>
    %cst_99 = arith.constant dense<0xFF800000> : vector<2x8xf32>
    %259 = vector.multi_reduction <maximumf>, %258, %cst_99 [2] : vector<2x8x8xf32> to vector<2x8xf32>
    %260 = vector.shape_cast %259 : vector<2x8xf32> to vector<2x8x1xf32>
    %261 = vector.broadcast %260 : vector<2x8x1xf32> to vector<2x8x8xf32>
    %262 = arith.subf %258, %261 : vector<2x8x8xf32>
    %263 = math.exp %262 : vector<2x8x8xf32>
    %cst_100 = arith.constant dense<0.000000e+00> : vector<2x8xf32>
    %264 = vector.multi_reduction <add>, %263, %cst_100 [2] : vector<2x8x8xf32> to vector<2x8xf32>
    %265 = vector.shape_cast %264 : vector<2x8xf32> to vector<2x8x1xf32>
    %266 = tpu.reciprocal %265 : vector<2x8x1xf32> -> vector<2x8x1xf32>
    %267 = vector.broadcast %266 : vector<2x8x1xf32> to vector<2x8x8xf32>
    %268 = arith.mulf %263, %267 : vector<2x8x8xf32>
    %269 = arith.truncf %268 : vector<2x8x8xf32> to vector<2x8x8xbf16>
    "tpu.trace_start"() <{level = 10 : i32, message = "bqk,bkd->bqd"}> : () -> ()
    %cst_101 = arith.constant dense<0.000000e+00> : vector<2x8x8xf32>
    %270 = tpu.matmul %269, %255, %cst_101 {dimension_numbers = #tpu.dot_dimension_numbers<[2], [1], [1], [2], [0, 0, 0, 1, 1, 2], [0], [0]>} : vector<2x8x8xbf16>, vector<2x8x8xbf16>, vector<2x8x8xf32> -> vector<2x8x8xf32>
    "tpu.trace_stop"() : () -> ()
    %271 = vector.extract_strided_slice %207 {offsets = [0, 0, 24], sizes = [2, 8, 8], strides = [1, 1, 1]} : vector<2x8x96xf32> to vector<2x8x8xf32>
    %272 = arith.truncf %271 : vector<2x8x8xf32> to vector<2x8x8xbf16>
    %273 = vector.extract_strided_slice %207 {offsets = [0, 0, 56], sizes = [2, 8, 8], strides = [1, 1, 1]} : vector<2x8x96xf32> to vector<2x8x8xf32>
    %274 = arith.truncf %273 : vector<2x8x8xf32> to vector<2x8x8xbf16>
    %275 = vector.extract_strided_slice %207 {offsets = [0, 0, 88], sizes = [2, 8, 8], strides = [1, 1, 1]} : vector<2x8x96xf32> to vector<2x8x8xf32>
    %276 = arith.truncf %275 : vector<2x8x8xf32> to vector<2x8x8xbf16>
    "tpu.trace_start"() <{level = 10 : i32, message = "bqd,bkd->bqk"}> : () -> ()
    %cst_102 = arith.constant dense<0.000000e+00> : vector<2x8x8xf32>
    %277 = tpu.matmul %272, %274, %cst_102 {dimension_numbers = #tpu.dot_dimension_numbers<[2], [2], [1], [1], [0, 0, 0, 1, 1, 1], [0], [0]>} : vector<2x8x8xbf16>, vector<2x8x8xbf16>, vector<2x8x8xf32> -> vector<2x8x8xf32>
    "tpu.trace_stop"() : () -> ()
    %cst_103 = arith.constant 0.353553385 : f32
    %278 = vector.broadcast %cst_103 : f32 to vector<2x8x8xf32>
    %279 = arith.mulf %277, %278 : vector<2x8x8xf32>
    %cst_104 = arith.constant dense<0xFF800000> : vector<2x8xf32>
    %280 = vector.multi_reduction <maximumf>, %279, %cst_104 [2] : vector<2x8x8xf32> to vector<2x8xf32>
    %281 = vector.shape_cast %280 : vector<2x8xf32> to vector<2x8x1xf32>
    %282 = vector.broadcast %281 : vector<2x8x1xf32> to vector<2x8x8xf32>
    %283 = arith.subf %279, %282 : vector<2x8x8xf32>
    %284 = math.exp %283 : vector<2x8x8xf32>
    %cst_105 = arith.constant dense<0.000000e+00> : vector<2x8xf32>
    %285 = vector.multi_reduction <add>, %284, %cst_105 [2] : vector<2x8x8xf32> to vector<2x8xf32>
    %286 = vector.shape_cast %285 : vector<2x8xf32> to vector<2x8x1xf32>
    %287 = tpu.reciprocal %286 : vector<2x8x1xf32> -> vector<2x8x1xf32>
    %288 = vector.broadcast %287 : vector<2x8x1xf32> to vector<2x8x8xf32>
    %289 = arith.mulf %284, %288 : vector<2x8x8xf32>
    %290 = arith.truncf %289 : vector<2x8x8xf32> to vector<2x8x8xbf16>
    "tpu.trace_start"() <{level = 10 : i32, message = "bqk,bkd->bqd"}> : () -> ()
    %cst_106 = arith.constant dense<0.000000e+00> : vector<2x8x8xf32>
    %291 = tpu.matmul %290, %276, %cst_106 {dimension_numbers = #tpu.dot_dimension_numbers<[2], [1], [1], [2], [0, 0, 0, 1, 1, 2], [0], [0]>} : vector<2x8x8xbf16>, vector<2x8x8xbf16>, vector<2x8x8xf32> -> vector<2x8x8xf32>
    "tpu.trace_stop"() : () -> ()
    %292 = tpu.concatenate %228, %249, %270, %291 in 2 : vector<2x8x8xf32>, vector<2x8x8xf32>, vector<2x8x8xf32>, vector<2x8x8xf32> -> vector<2x8x32xf32>
    %293 = vector.shape_cast %292 : vector<2x8x32xf32> to vector<16x32xf32>
    %294 = arith.truncf %293 : vector<16x32xf32> to vector<16x32xbf16>
    %c0_107 = arith.constant 0 : index
    %c0_108 = arith.constant 0 : index
    %295 = vector.load %arg8[%c0_107, %c0_108] : memref<32x32xbf16, #tpu.memory_space<vmem>>, vector<32x32xbf16>
    %cst_109 = arith.constant dense<0.000000e+00> : vector<16x32xf32>
    %296 = tpu.matmul %294, %295, %cst_109 {dimension_numbers = #tpu.dot_dimension_numbers<[1], [0], [0], [1], [0, 0, 1, 1], [], []>} : vector<16x32xbf16>, vector<32x32xbf16>, vector<16x32xf32> -> vector<16x32xf32>
    %297 = vector.broadcast %196 : vector<1x32xf32> to vector<16x32xf32>
    %298 = arith.addf %296, %297 : vector<16x32xf32>
    %299 = arith.addf %194, %298 : vector<16x32xf32>
    %cst_110 = arith.constant dense<0.000000e+00> : vector<16xf32>
    %300 = vector.multi_reduction <add>, %299, %cst_110 [1] : vector<16x32xf32> to vector<16xf32>
    %301 = vector.shape_cast %300 : vector<16xf32> to vector<16x1xf32>
    %cst_111 = arith.constant 3.200000e+01 : f32
    %302 = vector.broadcast %cst_111 : f32 to vector<16x1xf32>
    %303 = arith.divf %301, %302 : vector<16x1xf32>
    %304 = vector.broadcast %303 : vector<16x1xf32> to vector<16x32xf32>
    %305 = arith.subf %299, %304 : vector<16x32xf32>
    %306 = arith.mulf %305, %305 : vector<16x32xf32>
    %cst_112 = arith.constant dense<0.000000e+00> : vector<16xf32>
    %307 = vector.multi_reduction <add>, %306, %cst_112 [1] : vector<16x32xf32> to vector<16xf32>
    %308 = vector.shape_cast %307 : vector<16xf32> to vector<16x1xf32>
    %cst_113 = arith.constant 3.200000e+01 : f32
    %309 = vector.broadcast %cst_113 : f32 to vector<16x1xf32>
    %310 = arith.divf %308, %309 : vector<16x1xf32>
    %cst_114 = arith.constant 9.99999974E-6 : f32
    %311 = vector.broadcast %cst_114 : f32 to vector<16x1xf32>
    %312 = arith.addf %310, %311 : vector<16x1xf32>
    %313 = math.rsqrt %312 : vector<16x1xf32>
    %314 = vector.broadcast %313 : vector<16x1xf32> to vector<16x32xf32>
    %315 = arith.mulf %305, %314 : vector<16x32xf32>
    %316 = vector.broadcast %198 : vector<1x32xf32> to vector<16x32xf32>
    %317 = arith.mulf %315, %316 : vector<16x32xf32>
    %318 = vector.broadcast %199 : vector<1x32xf32> to vector<16x32xf32>
    %319 = arith.addf %317, %318 : vector<16x32xf32>
    %320 = arith.truncf %319 : vector<16x32xf32> to vector<16x32xbf16>
    %cst_115 = arith.constant 0.000000e+00 : f32
    %321 = vector.broadcast %cst_115 : f32 to vector<16x32xf32>
    %c0_116 = arith.constant 0 : index
    %c0_117 = arith.constant 0 : index
    %322 = vector.load %arg9[%c0_116, %c0_117] : memref<32x2048xbf16, #tpu.memory_space<vmem>>, vector<32x512xbf16>
    %cst_118 = arith.constant dense<0.000000e+00> : vector<16x512xf32>
    %323 = tpu.matmul %320, %322, %cst_118 {dimension_numbers = #tpu.dot_dimension_numbers<[1], [0], [0], [1], [0, 0, 1, 1], [], []>} : vector<16x32xbf16>, vector<32x512xbf16>, vector<16x512xf32> -> vector<16x512xf32>
    %c10 = arith.constant 10 : index
    %c0_119 = arith.constant 0 : index
    %324 = vector.load %arg2[%c10, %c0_119] : memref<19x2048xf32, #tpu.memory_space<vmem>>, vector<1x512xf32>
    %325 = vector.broadcast %324 : vector<1x512xf32> to vector<16x512xf32>
    %326 = arith.addf %323, %325 : vector<16x512xf32>
    %cst_120 = arith.constant 0.000000e+00 : f32
    %327 = vector.broadcast %cst_120 : f32 to vector<16x512xf32>
    %328 = arith.maximumf %326, %327 : vector<16x512xf32>
    %329 = arith.truncf %328 : vector<16x512xf32> to vector<16x512xbf16>
    %c0_121 = arith.constant 0 : index
    %c0_122 = arith.constant 0 : index
    %330 = vector.load %arg10[%c0_121, %c0_122] : memref<2048x32xbf16, #tpu.memory_space<vmem>>, vector<512x32xbf16>
    %cst_123 = arith.constant dense<0.000000e+00> : vector<16x32xf32>
    %331 = tpu.matmul %329, %330, %cst_123 {dimension_numbers = #tpu.dot_dimension_numbers<[1], [0], [0], [1], [0, 0, 1, 1], [], []>} : vector<16x512xbf16>, vector<512x32xbf16>, vector<16x32xf32> -> vector<16x32xf32>
    %332 = arith.addf %321, %331 : vector<16x32xf32>
    %c0_124 = arith.constant 0 : index
    %c512_125 = arith.constant 512 : index
    %333 = vector.load %arg9[%c0_124, %c512_125] : memref<32x2048xbf16, #tpu.memory_space<vmem>>, vector<32x512xbf16>
    %cst_126 = arith.constant dense<0.000000e+00> : vector<16x512xf32>
    %334 = tpu.matmul %320, %333, %cst_126 {dimension_numbers = #tpu.dot_dimension_numbers<[1], [0], [0], [1], [0, 0, 1, 1], [], []>} : vector<16x32xbf16>, vector<32x512xbf16>, vector<16x512xf32> -> vector<16x512xf32>
    %c10_127 = arith.constant 10 : index
    %c512_128 = arith.constant 512 : index
    %335 = vector.load %arg2[%c10_127, %c512_128] : memref<19x2048xf32, #tpu.memory_space<vmem>>, vector<1x512xf32>
    %336 = vector.broadcast %335 : vector<1x512xf32> to vector<16x512xf32>
    %337 = arith.addf %334, %336 : vector<16x512xf32>
    %cst_129 = arith.constant 0.000000e+00 : f32
    %338 = vector.broadcast %cst_129 : f32 to vector<16x512xf32>
    %339 = arith.maximumf %337, %338 : vector<16x512xf32>
    %340 = arith.truncf %339 : vector<16x512xf32> to vector<16x512xbf16>
    %c512_130 = arith.constant 512 : index
    %c0_131 = arith.constant 0 : index
    %341 = vector.load %arg10[%c512_130, %c0_131] : memref<2048x32xbf16, #tpu.memory_space<vmem>>, vector<512x32xbf16>
    %cst_132 = arith.constant dense<0.000000e+00> : vector<16x32xf32>
    %342 = tpu.matmul %340, %341, %cst_132 {dimension_numbers = #tpu.dot_dimension_numbers<[1], [0], [0], [1], [0, 0, 1, 1], [], []>} : vector<16x512xbf16>, vector<512x32xbf16>, vector<16x32xf32> -> vector<16x32xf32>
    %343 = arith.addf %332, %342 : vector<16x32xf32>
    %c0_133 = arith.constant 0 : index
    %c1024_134 = arith.constant 1024 : index
    %344 = vector.load %arg9[%c0_133, %c1024_134] : memref<32x2048xbf16, #tpu.memory_space<vmem>>, vector<32x512xbf16>
    %cst_135 = arith.constant dense<0.000000e+00> : vector<16x512xf32>
    %345 = tpu.matmul %320, %344, %cst_135 {dimension_numbers = #tpu.dot_dimension_numbers<[1], [0], [0], [1], [0, 0, 1, 1], [], []>} : vector<16x32xbf16>, vector<32x512xbf16>, vector<16x512xf32> -> vector<16x512xf32>
    %c10_136 = arith.constant 10 : index
    %c1024_137 = arith.constant 1024 : index
    %346 = vector.load %arg2[%c10_136, %c1024_137] : memref<19x2048xf32, #tpu.memory_space<vmem>>, vector<1x512xf32>
    %347 = vector.broadcast %346 : vector<1x512xf32> to vector<16x512xf32>
    %348 = arith.addf %345, %347 : vector<16x512xf32>
    %cst_138 = arith.constant 0.000000e+00 : f32
    %349 = vector.broadcast %cst_138 : f32 to vector<16x512xf32>
    %350 = arith.maximumf %348, %349 : vector<16x512xf32>
    %351 = arith.truncf %350 : vector<16x512xf32> to vector<16x512xbf16>
    %c1024_139 = arith.constant 1024 : index
    %c0_140 = arith.constant 0 : index
    %352 = vector.load %arg10[%c1024_139, %c0_140] : memref<2048x32xbf16, #tpu.memory_space<vmem>>, vector<512x32xbf16>
    %cst_141 = arith.constant dense<0.000000e+00> : vector<16x32xf32>
    %353 = tpu.matmul %351, %352, %cst_141 {dimension_numbers = #tpu.dot_dimension_numbers<[1], [0], [0], [1], [0, 0, 1, 1], [], []>} : vector<16x512xbf16>, vector<512x32xbf16>, vector<16x32xf32> -> vector<16x32xf32>
    %354 = arith.addf %343, %353 : vector<16x32xf32>
    %c0_142 = arith.constant 0 : index
    %c1536_143 = arith.constant 1536 : index
    %355 = vector.load %arg9[%c0_142, %c1536_143] : memref<32x2048xbf16, #tpu.memory_space<vmem>>, vector<32x512xbf16>
    %cst_144 = arith.constant dense<0.000000e+00> : vector<16x512xf32>
    %356 = tpu.matmul %320, %355, %cst_144 {dimension_numbers = #tpu.dot_dimension_numbers<[1], [0], [0], [1], [0, 0, 1, 1], [], []>} : vector<16x32xbf16>, vector<32x512xbf16>, vector<16x512xf32> -> vector<16x512xf32>
    %c10_145 = arith.constant 10 : index
    %c1536_146 = arith.constant 1536 : index
    %357 = vector.load %arg2[%c10_145, %c1536_146] : memref<19x2048xf32, #tpu.memory_space<vmem>>, vector<1x512xf32>
    %358 = vector.broadcast %357 : vector<1x512xf32> to vector<16x512xf32>
    %359 = arith.addf %356, %358 : vector<16x512xf32>
    %cst_147 = arith.constant 0.000000e+00 : f32
    %360 = vector.broadcast %cst_147 : f32 to vector<16x512xf32>
    %361 = arith.maximumf %359, %360 : vector<16x512xf32>
    %362 = arith.truncf %361 : vector<16x512xf32> to vector<16x512xbf16>
    %c1536_148 = arith.constant 1536 : index
    %c0_149 = arith.constant 0 : index
    %363 = vector.load %arg10[%c1536_148, %c0_149] : memref<2048x32xbf16, #tpu.memory_space<vmem>>, vector<512x32xbf16>
    %cst_150 = arith.constant dense<0.000000e+00> : vector<16x32xf32>
    %364 = tpu.matmul %362, %363, %cst_150 {dimension_numbers = #tpu.dot_dimension_numbers<[1], [0], [0], [1], [0, 0, 1, 1], [], []>} : vector<16x512xbf16>, vector<512x32xbf16>, vector<16x32xf32> -> vector<16x32xf32>
    %365 = arith.addf %354, %364 : vector<16x32xf32>
    %366 = arith.addf %319, %365 : vector<16x32xf32>
    %367 = vector.broadcast %197 : vector<1x32xf32> to vector<16x32xf32>
    %368 = arith.addf %366, %367 : vector<16x32xf32>
    %cst_151 = arith.constant dense<0.000000e+00> : vector<16xf32>
    %369 = vector.multi_reduction <add>, %368, %cst_151 [1] : vector<16x32xf32> to vector<16xf32>
    %370 = vector.shape_cast %369 : vector<16xf32> to vector<16x1xf32>
    %cst_152 = arith.constant 3.200000e+01 : f32
    %371 = vector.broadcast %cst_152 : f32 to vector<16x1xf32>
    %372 = arith.divf %370, %371 : vector<16x1xf32>
    %373 = vector.broadcast %372 : vector<16x1xf32> to vector<16x32xf32>
    %374 = arith.subf %368, %373 : vector<16x32xf32>
    %375 = arith.mulf %374, %374 : vector<16x32xf32>
    %cst_153 = arith.constant dense<0.000000e+00> : vector<16xf32>
    %376 = vector.multi_reduction <add>, %375, %cst_153 [1] : vector<16x32xf32> to vector<16xf32>
    %377 = vector.shape_cast %376 : vector<16xf32> to vector<16x1xf32>
    %cst_154 = arith.constant 3.200000e+01 : f32
    %378 = vector.broadcast %cst_154 : f32 to vector<16x1xf32>
    %379 = arith.divf %377, %378 : vector<16x1xf32>
    %cst_155 = arith.constant 9.99999974E-6 : f32
    %380 = vector.broadcast %cst_155 : f32 to vector<16x1xf32>
    %381 = arith.addf %379, %380 : vector<16x1xf32>
    %382 = math.rsqrt %381 : vector<16x1xf32>
    %383 = vector.broadcast %382 : vector<16x1xf32> to vector<16x32xf32>
    %384 = arith.mulf %374, %383 : vector<16x32xf32>
    %385 = vector.broadcast %200 : vector<1x32xf32> to vector<16x32xf32>
    %386 = arith.mulf %384, %385 : vector<16x32xf32>
    %387 = vector.broadcast %201 : vector<1x32xf32> to vector<16x32xf32>
    %388 = arith.addf %386, %387 : vector<16x32xf32>
    %c16 = arith.constant 16 : index
    %c0_156 = arith.constant 0 : index
    %389 = vector.load %arg2[%c16, %c0_156] : memref<19x2048xf32, #tpu.memory_space<vmem>>, vector<1x128xf32>
    %c17 = arith.constant 17 : index
    %c0_157 = arith.constant 0 : index
    %390 = vector.load %arg2[%c17, %c0_157] : memref<19x2048xf32, #tpu.memory_space<vmem>>, vector<1x64xf32>
    %c18 = arith.constant 18 : index
    %c0_158 = arith.constant 0 : index
    %391 = vector.load %arg2[%c18, %c0_158] : memref<19x2048xf32, #tpu.memory_space<vmem>>, vector<1x1xf32>
    %c0_159 = arith.constant 0 : index
    %c0_160 = arith.constant 0 : index
    %392 = vector.load %arg15[%c0_159, %c0_160] : memref<16x32xf32, #tpu.memory_space<vmem>>, vector<16x32xf32>
    tpu.vector_store %arg15[%c0_159, %c0_160], %388 {strides = array<i32>} : memref<16x32xf32, #tpu.memory_space<vmem>>, vector<16x32xf32>,
    %c0_161 = arith.constant 0 : index
    %c0_162 = arith.constant 0 : index
    %393 = tpu.strided_load %arg15[%c0_161, %c0_162] {strides = array<i32: 8, 1>} : memref<16x32xf32, #tpu.memory_space<vmem>>, vector<2x32xf32>
    %c0_163 = arith.constant 0 : index
    %c0_164 = arith.constant 0 : index
    %394 = vector.load %arg16[%c0_163, %c0_164] : memref<2x256xf32, #tpu.memory_space<vmem>>, vector<2x32xf32>
    tpu.vector_store %arg16[%c0_163, %c0_164], %393 {strides = array<i32>} : memref<2x256xf32, #tpu.memory_space<vmem>>, vector<2x32xf32>,
    %c1_165 = arith.constant 1 : index
    %c0_166 = arith.constant 0 : index
    %395 = tpu.strided_load %arg15[%c1_165, %c0_166] {strides = array<i32: 8, 1>} : memref<16x32xf32, #tpu.memory_space<vmem>>, vector<2x32xf32>
    %c0_167 = arith.constant 0 : index
    %c32 = arith.constant 32 : index
    %396 = vector.load %arg16[%c0_167, %c32] : memref<2x256xf32, #tpu.memory_space<vmem>>, vector<2x32xf32>
    tpu.vector_store %arg16[%c0_167, %c32], %395 {strides = array<i32>} : memref<2x256xf32, #tpu.memory_space<vmem>>, vector<2x32xf32>,
    %c2_168 = arith.constant 2 : index
    %c0_169 = arith.constant 0 : index
    %397 = tpu.strided_load %arg15[%c2_168, %c0_169] {strides = array<i32: 8, 1>} : memref<16x32xf32, #tpu.memory_space<vmem>>, vector<2x32xf32>
    %c0_170 = arith.constant 0 : index
    %c64 = arith.constant 64 : index
    %398 = vector.load %arg16[%c0_170, %c64] : memref<2x256xf32, #tpu.memory_space<vmem>>, vector<2x32xf32>
    tpu.vector_store %arg16[%c0_170, %c64], %397 {strides = array<i32>} : memref<2x256xf32, #tpu.memory_space<vmem>>, vector<2x32xf32>,
    %c3_171 = arith.constant 3 : index
    %c0_172 = arith.constant 0 : index
    %399 = tpu.strided_load %arg15[%c3_171, %c0_172] {strides = array<i32: 8, 1>} : memref<16x32xf32, #tpu.memory_space<vmem>>, vector<2x32xf32>
    %c0_173 = arith.constant 0 : index
    %c96 = arith.constant 96 : index
    %400 = vector.load %arg16[%c0_173, %c96] : memref<2x256xf32, #tpu.memory_space<vmem>>, vector<2x32xf32>
    tpu.vector_store %arg16[%c0_173, %c96], %399 {strides = array<i32>} : memref<2x256xf32, #tpu.memory_space<vmem>>, vector<2x32xf32>,
    %c4_174 = arith.constant 4 : index
    %c0_175 = arith.constant 0 : index
    %401 = tpu.strided_load %arg15[%c4_174, %c0_175] {strides = array<i32: 8, 1>} : memref<16x32xf32, #tpu.memory_space<vmem>>, vector<2x32xf32>
    %c0_176 = arith.constant 0 : index
    %c128 = arith.constant 128 : index
    %402 = vector.load %arg16[%c0_176, %c128] : memref<2x256xf32, #tpu.memory_space<vmem>>, vector<2x32xf32>
    tpu.vector_store %arg16[%c0_176, %c128], %401 {strides = array<i32>} : memref<2x256xf32, #tpu.memory_space<vmem>>, vector<2x32xf32>,
    %c5_177 = arith.constant 5 : index
    %c0_178 = arith.constant 0 : index
    %403 = tpu.strided_load %arg15[%c5_177, %c0_178] {strides = array<i32: 8, 1>} : memref<16x32xf32, #tpu.memory_space<vmem>>, vector<2x32xf32>
    %c0_179 = arith.constant 0 : index
    %c160 = arith.constant 160 : index
    %404 = vector.load %arg16[%c0_179, %c160] : memref<2x256xf32, #tpu.memory_space<vmem>>, vector<2x32xf32>
    tpu.vector_store %arg16[%c0_179, %c160], %403 {strides = array<i32>} : memref<2x256xf32, #tpu.memory_space<vmem>>, vector<2x32xf32>,
    %c6_180 = arith.constant 6 : index
    %c0_181 = arith.constant 0 : index
    %405 = tpu.strided_load %arg15[%c6_180, %c0_181] {strides = array<i32: 8, 1>} : memref<16x32xf32, #tpu.memory_space<vmem>>, vector<2x32xf32>
    %c0_182 = arith.constant 0 : index
    %c192 = arith.constant 192 : index
    %406 = vector.load %arg16[%c0_182, %c192] : memref<2x256xf32, #tpu.memory_space<vmem>>, vector<2x32xf32>
    tpu.vector_store %arg16[%c0_182, %c192], %405 {strides = array<i32>} : memref<2x256xf32, #tpu.memory_space<vmem>>, vector<2x32xf32>,
    %c7_183 = arith.constant 7 : index
    %c0_184 = arith.constant 0 : index
    %407 = tpu.strided_load %arg15[%c7_183, %c0_184] {strides = array<i32: 8, 1>} : memref<16x32xf32, #tpu.memory_space<vmem>>, vector<2x32xf32>
    %c0_185 = arith.constant 0 : index
    %c224 = arith.constant 224 : index
    %408 = vector.load %arg16[%c0_185, %c224] : memref<2x256xf32, #tpu.memory_space<vmem>>, vector<2x32xf32>
    tpu.vector_store %arg16[%c0_185, %c224], %407 {strides = array<i32>} : memref<2x256xf32, #tpu.memory_space<vmem>>, vector<2x32xf32>,
    %c0_186 = arith.constant 0 : index
    %c0_187 = arith.constant 0 : index
    %409 = vector.load %arg16[%c0_186, %c0_187] : memref<2x256xf32, #tpu.memory_space<vmem>>, vector<2x256xf32>
    %410 = arith.truncf %409 : vector<2x256xf32> to vector<2x256xbf16>
    %c0_188 = arith.constant 0 : index
    %c0_189 = arith.constant 0 : index
    %411 = vector.load %arg11[%c0_188, %c0_189] : memref<256x128xbf16, #tpu.memory_space<vmem>>, vector<256x128xbf16>
    %cst_190 = arith.constant dense<0.000000e+00> : vector<2x128xf32>
    %412 = tpu.matmul %410, %411, %cst_190 {dimension_numbers = #tpu.dot_dimension_numbers<[1], [0], [0], [1], [0, 0, 1, 1], [], []>} : vector<2x256xbf16>, vector<256x128xbf16>, vector<2x128xf32> -> vector<2x128xf32>
    %413 = vector.broadcast %389 : vector<1x128xf32> to vector<2x128xf32>
    %414 = arith.addf %412, %413 : vector<2x128xf32>
    %cst_191 = arith.constant 0.000000e+00 : f32
    %415 = vector.broadcast %cst_191 : f32 to vector<2x128xf32>
    %416 = arith.cmpf ogt, %414, %415 : vector<2x128xf32>
    %417 = math.exp %414 : vector<2x128xf32>
    %cst_192 = arith.constant 1.000000e+00 : f32
    %418 = vector.broadcast %cst_192 : f32 to vector<2x128xf32>
    %419 = arith.subf %417, %418 : vector<2x128xf32>
    %cst_193 = arith.constant 1.67326319 : f32
    %420 = vector.broadcast %cst_193 : f32 to vector<2x128xf32>
    %421 = arith.mulf %420, %419 : vector<2x128xf32>
    %422 = arith.select %416, %414, %421 : vector<2x128xi1>, vector<2x128xf32>
    %cst_194 = arith.constant 1.05070102 : f32
    %423 = vector.broadcast %cst_194 : f32 to vector<2x128xf32>
    %424 = arith.mulf %423, %422 : vector<2x128xf32>
    %425 = arith.truncf %424 : vector<2x128xf32> to vector<2x128xbf16>
    %c0_195 = arith.constant 0 : index
    %c0_196 = arith.constant 0 : index
    %426 = vector.load %arg12[%c0_195, %c0_196] : memref<128x64xbf16, #tpu.memory_space<vmem>>, vector<128x64xbf16>
    %cst_197 = arith.constant dense<0.000000e+00> : vector<2x64xf32>
    %427 = tpu.matmul %425, %426, %cst_197 {dimension_numbers = #tpu.dot_dimension_numbers<[1], [0], [0], [1], [0, 0, 1, 1], [], []>} : vector<2x128xbf16>, vector<128x64xbf16>, vector<2x64xf32> -> vector<2x64xf32>
    %428 = vector.broadcast %390 : vector<1x64xf32> to vector<2x64xf32>
    %429 = arith.addf %427, %428 : vector<2x64xf32>
    %430 = arith.truncf %429 : vector<2x64xf32> to vector<2x64xbf16>
    %c0_198 = arith.constant 0 : index
    %c0_199 = arith.constant 0 : index
    %431 = vector.load %arg13[%c0_198, %c0_199] : memref<64x1xbf16, #tpu.memory_space<vmem>>, vector<64x1xbf16>
    %cst_200 = arith.constant dense<0.000000e+00> : vector<2x1xf32>
    %432 = tpu.matmul %430, %431, %cst_200 {dimension_numbers = #tpu.dot_dimension_numbers<[1], [0], [0], [1], [0, 0, 1, 1], [], []>} : vector<2x64xbf16>, vector<64x1xbf16>, vector<2x1xf32> -> vector<2x1xf32>
    %433 = vector.broadcast %391 : vector<1x1xf32> to vector<2x1xf32>
    %434 = arith.addf %432, %433 : vector<2x1xf32>
    %c0_201 = arith.constant 0 : index
    %c0_202 = arith.constant 0 : index
    %435 = vector.load %arg14[%c0_201, %c0_202] : memref<2x1xf32, #tpu.memory_space<vmem>>, vector<2x1xf32>
    tpu.vector_store %arg14[%c0_201, %c0_202], %434 {strides = array<i32>} : memref<2x1xf32, #tpu.memory_space<vmem>>, vector<2x1xf32>,
    return
  }
  func.func @transform_0(%arg0: i32) -> (i32, i32) {
    %c0_i32 = arith.constant 0 : i32
    %c0_i32_0 = arith.constant 0 : i32
    return %arg0, %c0_i32 : i32, i32
  }
  func.func @transform_1(%arg0: i32) -> (i32, i32) {
    %c0_i32 = arith.constant 0 : i32
    %c0_i32_0 = arith.constant 0 : i32
    %c0_i32_1 = arith.constant 0 : i32
    return %c0_i32, %c0_i32_0 : i32, i32
  }
  func.func @transform_2(%arg0: i32) -> (i32, i32) {
    %c0_i32 = arith.constant 0 : i32
    %c0_i32_0 = arith.constant 0 : i32
    %c0_i32_1 = arith.constant 0 : i32
    return %c0_i32, %c0_i32_0 : i32, i32
  }
  func.func @transform_3(%arg0: i32) -> (i32, i32) {
    %c0_i32 = arith.constant 0 : i32
    %c0_i32_0 = arith.constant 0 : i32
    %c0_i32_1 = arith.constant 0 : i32
    return %c0_i32, %c0_i32_0 : i32, i32
  }
  func.func @transform_4(%arg0: i32) -> (i32, i32) {
    %c0_i32 = arith.constant 0 : i32
    %c0_i32_0 = arith.constant 0 : i32
    %c0_i32_1 = arith.constant 0 : i32
    return %c0_i32, %c0_i32_0 : i32, i32
  }
  func.func @transform_5(%arg0: i32) -> (i32, i32) {
    %c0_i32 = arith.constant 0 : i32
    %c0_i32_0 = arith.constant 0 : i32
    %c0_i32_1 = arith.constant 0 : i32
    return %c0_i32, %c0_i32_0 : i32, i32
  }
  func.func @transform_6(%arg0: i32) -> (i32, i32) {
    %c0_i32 = arith.constant 0 : i32
    %c0_i32_0 = arith.constant 0 : i32
    %c0_i32_1 = arith.constant 0 : i32
    return %c0_i32, %c0_i32_0 : i32, i32
  }
  func.func @transform_7(%arg0: i32) -> (i32, i32) {
    %c0_i32 = arith.constant 0 : i32
    %c0_i32_0 = arith.constant 0 : i32
    %c0_i32_1 = arith.constant 0 : i32
    return %c0_i32, %c0_i32_0 : i32, i32
  }
  func.func @transform_8(%arg0: i32) -> (i32, i32) {
    %c0_i32 = arith.constant 0 : i32
    %c0_i32_0 = arith.constant 0 : i32
    %c0_i32_1 = arith.constant 0 : i32
    return %c0_i32, %c0_i32_0 : i32, i32
  }
  func.func @transform_9(%arg0: i32) -> (i32, i32) {
    %c0_i32 = arith.constant 0 : i32
    %c0_i32_0 = arith.constant 0 : i32
    %c0_i32_1 = arith.constant 0 : i32
    return %c0_i32, %c0_i32_0 : i32, i32
  }
  func.func @transform_10(%arg0: i32) -> (i32, i32) {
    %c0_i32 = arith.constant 0 : i32
    %c0_i32_0 = arith.constant 0 : i32
    %c0_i32_1 = arith.constant 0 : i32
    return %c0_i32, %c0_i32_0 : i32, i32
  }
  func.func @transform_11(%arg0: i32) -> (i32, i32) {
    %c0_i32 = arith.constant 0 : i32
    %c0_i32_0 = arith.constant 0 : i32
    %c0_i32_1 = arith.constant 0 : i32
    return %c0_i32, %c0_i32_0 : i32, i32
  }
  func.func @transform_12(%arg0: i32) -> (i32, i32) {
    %c0_i32 = arith.constant 0 : i32
    %c0_i32_0 = arith.constant 0 : i32
    %c0_i32_1 = arith.constant 0 : i32
    return %c0_i32, %c0_i32_0 : i32, i32
  }
  func.func @transform_13(%arg0: i32) -> (i32, i32) {
    %c0_i32 = arith.constant 0 : i32
    %c0_i32_0 = arith.constant 0 : i32
    return %arg0, %c0_i32 : i32, i32
  }
}

</mosaic_0001>

<llo_original>
// kernel: transformer_layer_forward.1
$region0: #{transformer_layer_forward.1}
  #allocation0 [shape = 'u32[]', space=smem, size = 0x4, offset = 0x4, fixed_abs, tag = 'smem constant byte address 0x4 - core index']
  #allocation1 [shape = 'u32[72,128]{1,0:T(1,128)}', space=vmem, size = 0x9000, scoped, tag = 'internal scratch']
  #allocation2 [shape = 'f32[16,32]{1,0:T(8,128)}', space=vmem, size = 0x2000, scoped, tag = 'scratch operand']
  #allocation3 [shape = 'f32[2,256]{1,0:T(2,128)}', space=vmem, size = 0x800, scoped, tag = 'scratch operand']
  %s0 = inlined_call_operand.vmem [shape: f32[16,32], index: 0, kind: input, shape index: {}]
  %s1 = inlined_call_operand.vmem [shape: f32[19,2048], index: 1, kind: input, shape index: {}]
  %s2 = inlined_call_operand.vmem [shape: bf16[32,96], index: 2, kind: input, shape index: {}]
  %s3 = inlined_call_operand.vmem [shape: bf16[32,32], index: 3, kind: input, shape index: {}]
  %s4 = inlined_call_operand.vmem [shape: bf16[32,2048], index: 4, kind: input, shape index: {}]
  %s5 = inlined_call_operand.vmem [shape: bf16[2048,32], index: 5, kind: input, shape index: {}]
  %s6 = inlined_call_operand.vmem [shape: bf16[32,96], index: 6, kind: input, shape index: {}]
  %s7 = inlined_call_operand.vmem [shape: bf16[32,32], index: 7, kind: input, shape index: {}]
  %s8 = inlined_call_operand.vmem [shape: bf16[32,2048], index: 8, kind: input, shape index: {}]
  %s9 = inlined_call_operand.vmem [shape: bf16[2048,32], index: 9, kind: input, shape index: {}]
  %s10 = inlined_call_operand.vmem [shape: bf16[256,128], index: 10, kind: input, shape index: {}]
  %s11 = inlined_call_operand.vmem [shape: bf16[128,64], index: 11, kind: input, shape index: {}]
  %s12 = inlined_call_operand.vmem [shape: bf16[64,1], index: 12, kind: input, shape index: {}]
  %s13 = inlined_call_operand.vmem [shape: f32[2,1], index: 13, kind: output, shape index: {}]
  %s14 = sld [smem:[#allocation0]]
  $region62: #{transformer_layer_forward.1} parent=0
    _
  %s16 = ssub.s32 1, %s14
  %s17 = scalar_select 0, %s16, %s14
  // Predicated region
  $region2: #{transformer_layer_forward.1} parent=0 // pred_check
    _
  $region3: #{transformer_layer_forward.1} parent=0 // pred_check_branch
    %19 = sbr.rel (0) target = $region5
  $region4: #{transformer_layer_forward.1} parent=0 // pred_region
    _
  $region5: #{transformer_layer_forward.1} parent=0 // pred_fallthru
    _
  // Predicated region
  $region6: #{transformer_layer_forward.1} parent=0 // pred_check
    _
  $region7: #{transformer_layer_forward.1} parent=0 // pred_check_branch
    %21 = sbr.rel (0) target = $region9
  $region8: #{transformer_layer_forward.1} parent=0 // pred_region
    _
  $region9: #{transformer_layer_forward.1} parent=0 // pred_fallthru
    _
  // Predicated region
  $region10: #{transformer_layer_forward.1} parent=0 // pred_check
    _
  $region11: #{transformer_layer_forward.1} parent=0 // pred_check_branch
    %23 = sbr.rel (0) target = $region13
  $region12: #{transformer_layer_forward.1} parent=0 // pred_region
    _
  $region13: #{transformer_layer_forward.1} parent=0 // pred_fallthru
    _
  // Predicated region
  $region14: #{transformer_layer_forward.1} parent=0 // pred_check
    _
  $region15: #{transformer_layer_forward.1} parent=0 // pred_check_branch
    %25 = sbr.rel (0) target = $region17
  $region16: #{transformer_layer_forward.1} parent=0 // pred_region
    _
  $region17: #{transformer_layer_forward.1} parent=0 // pred_fallthru
    _
  // Predicated region
  $region18: #{transformer_layer_forward.1} parent=0 // pred_check
    _
  $region19: #{transformer_layer_forward.1} parent=0 // pred_check_branch
    %27 = sbr.rel (0) target = $region21
  $region20: #{transformer_layer_forward.1} parent=0 // pred_region
    _
  $region21: #{transformer_layer_forward.1} parent=0 // pred_fallthru
    _
  // Predicated region
  $region22: #{transformer_layer_forward.1} parent=0 // pred_check
    _
  $region23: #{transformer_layer_forward.1} parent=0 // pred_check_branch
    %29 = sbr.rel (0) target = $region25
  $region24: #{transformer_layer_forward.1} parent=0 // pred_region
    _
  $region25: #{transformer_layer_forward.1} parent=0 // pred_fallthru
    _
  // Predicated region
  $region26: #{transformer_layer_forward.1} parent=0 // pred_check
    _
  $region27: #{transformer_layer_forward.1} parent=0 // pred_check_branch
    %31 = sbr.rel (0) target = $region29
  $region28: #{transformer_layer_forward.1} parent=0 // pred_region
    _
  $region29: #{transformer_layer_forward.1} parent=0 // pred_fallthru
    _
  // Predicated region
  $region30: #{transformer_layer_forward.1} parent=0 // pred_check
    _
  $region31: #{transformer_layer_forward.1} parent=0 // pred_check_branch
    %33 = sbr.rel (0) target = $region33
  $region32: #{transformer_layer_forward.1} parent=0 // pred_region
    _
  $region33: #{transformer_layer_forward.1} parent=0 // pred_fallthru
    _
  // Predicated region
  $region34: #{transformer_layer_forward.1} parent=0 // pred_check
    _
  $region35: #{transformer_layer_forward.1} parent=0 // pred_check_branch
    %35 = sbr.rel (0) target = $region37
  $region36: #{transformer_layer_forward.1} parent=0 // pred_region
    _
  $region37: #{transformer_layer_forward.1} parent=0 // pred_fallthru
    _
  // Predicated region
  $region38: #{transformer_layer_forward.1} parent=0 // pred_check
    _
  $region39: #{transformer_layer_forward.1} parent=0 // pred_check_branch
    %37 = sbr.rel (0) target = $region41
  $region40: #{transformer_layer_forward.1} parent=0 // pred_region
    _
  $region41: #{transformer_layer_forward.1} parent=0 // pred_fallthru
    _
  // Predicated region
  $region42: #{transformer_layer_forward.1} parent=0 // pred_check
    _
  $region43: #{transformer_layer_forward.1} parent=0 // pred_check_branch
    %39 = sbr.rel (0) target = $region45
  $region44: #{transformer_layer_forward.1} parent=0 // pred_region
    _
  $region45: #{transformer_layer_forward.1} parent=0 // pred_fallthru
    _
  // Predicated region
  $region46: #{transformer_layer_forward.1} parent=0 // pred_check
    _
  $region47: #{transformer_layer_forward.1} parent=0 // pred_check_branch
    %41 = sbr.rel (0) target = $region49
  $region48: #{transformer_layer_forward.1} parent=0 // pred_region
    _
  $region49: #{transformer_layer_forward.1} parent=0 // pred_fallthru
    _
  // Predicated region
  $region50: #{transformer_layer_forward.1} parent=0 // pred_check
    _
  $region51: #{transformer_layer_forward.1} parent=0 // pred_check_branch
    %43 = sbr.rel (0) target = $region53
  $region52: #{transformer_layer_forward.1} parent=0 // pred_region
    _
  $region53: #{transformer_layer_forward.1} parent=0 // pred_fallthru
    _
  %v45 = vld [vmem:[%s0] sm:$0xff]
  %v46 = vld [vmem:[%s0 + $0x8] sm:$0xff]
  %v47 = vld [vmem:[%s1] ss:$0 sm:$0xff]
  %v48 = vld [vmem:[%s1 + $0x1] ss:$0 sm:$0xff]
  %v49 = vld [vmem:[%s1 + $0x3] ss:$0 sm:$0xff]
  %v50 = vld [vmem:[%s1 + $0x4] ss:$0 sm:$0xff]
  %v51 = vld [vmem:[%s1 + $0x5] ss:$0 sm:$0xff]
  %v52 = vld [vmem:[%s1 + $0x6] ss:$0 sm:$0xff]
  %v53 = vld [vmem:[%s1 + $0x7] ss:$0 sm:$0xff]
  %v54 = vpack.c.bf16 %v46, %v45
  %v55 = vld [vmem:[%s2] sm:$0xf]
  %v56 = vld [vmem:[%s2 + $0x4] sm:$0xf]
  %v57 = vld [vmem:[%s2 + $0x8] sm:$0xf]
  %v58 = vld [vmem:[%s2 + $0xc] sm:$0xf]
  %v63 = vunpack.c.l.b16 %v55
  %v64 = vunpack.c.l.b16 %v56
  %v65 = vunpack.c.l.b16 %v57
  %v66 = vunpack.c.l.b16 %v58
  %v67 = vpack.c.b16 %v64, %v63
  %v68 = vpack.c.b16 %v66, %v65
  %vm71 = vcmask 261120
  %v73 = vsel %vm71, %v54, 0
  %75 = vmatpush.bf16.msra.mxu0 0
  %76 = vmatpush.bf16.msra.mxu0 0
  %77 = vmatpush.bf16.msra.mxu0 0
  %78 = vmatpush.bf16.msra.mxu0 0
  %79 = vmatpush.bf16.msra.mxu0 0
  %80 = vmatpush.bf16.msra.mxu0 0
  %81 = vmatpush.bf16.msra.mxu0 %v68
  %82 = vmatpush.bf16.msra.mxu0 %v67
  %83 = vmatmul.bf16.gmra.mxu0 %v73
  %v84 = vpop.f32.mrf.mxu0
  %v85 = vadd.f32 %v47, %v84
  %v86 = vpop.f32.mrf.mxu0
  %v87 = vadd.f32 %v47, %v86
  %88 = vdwg.mxu0
  %v89 = vpack.c.bf16 %v85, %v85
  %v90 = vpack.c.bf16 %v87, %v87
  %v92 = vunpack.c.l.b16 %v89
  %v93 = vpack.c.b16 %v92, %v92
  %94 = vrot.lane.b32.xlu0 %v93, 96
  %v95 = vpop.permute.xlu0 %94
  %vm96 = vcmask 64512
  %v98 = vsel %vm96, %v89, 0
  %v101 = vsel %vm96, %v95, 0
  %103 = vmatpush.bf16.xpose.msra.mxu0 0
  %104 = vmatpush.bf16.xpose.msra.mxu0 0
  %105 = vmatpush.bf16.xpose.msra.mxu0 0
  %106 = vmatpush.bf16.xpose.msra.mxu0 0
  %107 = vmatpush.bf16.xpose.msra.mxu0 0
  %108 = vmatpush.bf16.xpose.msra.mxu0 0
  %109 = vmatpush.bf16.xpose.msra.mxu0 0
  %110 = vmatpush.bf16.xpose.msra.mxu0 %v101
  %111 = vmatmul.bf16.gmra.mxu0 %v98
  %v112 = vpop.f32.mrf.mxu0
  %v113 = vadd.f32 0.0, %v112
  %v114 = vpop.f32.mrf.mxu0
  %115 = vdwg.mxu0
  %v117 = vunpack.c.l.b16 %v90
  %v118 = vpack.c.b16 %v117, %v117
  %119 = vrot.lane.b32.xlu0 %v118, 96
  %v120 = vpop.permute.xlu0 %119
  %v122 = vsel %vm96, %v90, 0
  %v125 = vsel %vm96, %v120, 0
  %127 = vmatpush.bf16.xpose.msra.mxu0 0
  %128 = vmatpush.bf16.xpose.msra.mxu0 0
  %129 = vmatpush.bf16.xpose.msra.mxu0 0
  %130 = vmatpush.bf16.xpose.msra.mxu0 0
  %131 = vmatpush.bf16.xpose.msra.mxu0 0
  %132 = vmatpush.bf16.xpose.msra.mxu0 0
  %133 = vmatpush.bf16.xpose.msra.mxu0 0
  %134 = vmatpush.bf16.xpose.msra.mxu0 %v125
  %135 = vmatmul.bf16.gmra.mxu0 %v122
  %v136 = vpop.f32.mrf.mxu0
  %v137 = vadd.f32 0.0, %v136
  %v138 = vpop.f32.mrf.mxu0
  %139 = vdwg.mxu0
  %v140 = vmul.f32 %v113, 0.35355338
  %v141 = vmul.f32 %v137, 0.35355338
  %v142 = vsel %vm96, %v140, -inf
  %143 = vmax.xlane.f32.xlu0 %v142
  %v144 = vpop.xlane.xlu0 %143
  %v145 = vsel %vm96, %v141, -inf
  %146 = vmax.xlane.f32.xlu0 %v145
  %v147 = vpop.xlane.xlu0 %146
  %v148 = vsub.f32 %v140, %v144
  %v149 = vsub.f32 %v141, %v147
  %v150 = vmul.f32 %v148, 1.442695
  %v151 = vpow.pop %v150
  %v152 = vmul.f32 %v149, 1.442695
  %v153 = vpow.pop %v152
  %v154 = vsel %vm96, %v151, 0.0
  %155 = vadd.xlane.f32.xlu0 %v154
  %v156 = vpop.xlane.xlu0 %155
  %v157 = vsel %vm96, %v153, 0.0
  %158 = vadd.xlane.f32.xlu0 %v157
  %v159 = vpop.xlane.xlu0 %158
  %v160 = vrcp.pop %v156
  %v161 = vmul.f32 %v156, %v160
  %v162 = vsub.f32 1.0, %v161
  %v163 = vmul.f32 %v160, %v162
  %v164 = vadd.f32 %v160, %v163
  %vm165 = vweird.f32 %v156
  %vm166 = vweird.f32 %v160
  %vm167 = vmor %vm165, %vm166
  %v168 = vsel %vm167, %v160, %v164
  %v169 = vand.u32 2147483647, %v156
  %vm170 = vcmp.eq.f32.partialorder %v169, 8.507059e+37
  %v171 = vand.u32 %v156, 2147483648
  %v172 = vor.u32 1.1754944e-38, %v171
  %v173 = vsel %vm170, %v172, %v168
  %v174 = vrcp.pop %v159
  %v175 = vmul.f32 %v159, %v174
  %v176 = vsub.f32 1.0, %v175
  %v177 = vmul.f32 %v174, %v176
  %v178 = vadd.f32 %v174, %v177
  %vm179 = vweird.f32 %v159
  %vm180 = vweird.f32 %v174
  %vm181 = vmor %vm179, %vm180
  %v182 = vsel %vm181, %v174, %v178
  %v183 = vand.u32 2147483647, %v159
  %vm184 = vcmp.eq.f32.partialorder %v183, 8.507059e+37
  %v185 = vand.u32 %v159, 2147483648
  %v186 = vor.u32 1.1754944e-38, %v185
  %v187 = vsel %vm184, %v186, %v182
  %v188 = vmul.f32 %v151, %v173
  %v189 = vmul.f32 %v153, %v187
  %v190 = vpack.c.bf16 %v188, %v188
  %v191 = vpack.c.bf16 %v189, %v189
  %192 = vrot.lane.b32.xlu0 %v93, 64
  %v193 = vpop.permute.xlu0 %192
  %v195 = vsel %vm96, %v190, 0
  %vm197 = vcmask 1043456
  %v199 = vsel %vm197, %v193, 0
  %201 = vmatpush.bf16.msra.mxu0 0
  %202 = vmatpush.bf16.msra.mxu0 0
  %203 = vmatpush.bf16.msra.mxu0 0
  %204 = vmatpush.bf16.msra.mxu0 0
  %205 = vmatpush.bf16.msra.mxu0 0
  %206 = vmatpush.bf16.msra.mxu0 0
  %207 = vmatpush.bf16.msra.mxu0 0
  %208 = vmatpush.bf16.msra.mxu0 %v199
  %209 = vmatmul.bf16.gmra.mxu0 %v195
  %v210 = vpop.f32.mrf.mxu0
  %v211 = vadd.f32 0.0, %v210
  %v212 = vpop.f32.mrf.mxu0
  %213 = vdwg.mxu0
  %214 = vrot.lane.b32.xlu0 %v118, 64
  %v215 = vpop.permute.xlu0 %214
  %v217 = vsel %vm96, %v191, 0
  %v220 = vsel %vm197, %v215, 0
  %222 = vmatpush.bf16.msra.mxu0 0
  %223 = vmatpush.bf16.msra.mxu0 0
  %224 = vmatpush.bf16.msra.mxu0 0
  %225 = vmatpush.bf16.msra.mxu0 0
  %226 = vmatpush.bf16.msra.mxu0 0
  %227 = vmatpush.bf16.msra.mxu0 0
  %228 = vmatpush.bf16.msra.mxu0 0
  %229 = vmatpush.bf16.msra.mxu0 %v220
  %230 = vmatmul.bf16.gmra.mxu0 %v217
  %v231 = vpop.f32.mrf.mxu0
  %v232 = vadd.f32 0.0, %v231
  %v233 = vpop.f32.mrf.mxu0
  %234 = vdwg.mxu0
  %235 = vrot.lane.b32.xlu0 %v93, 120
  %v236 = vpop.permute.xlu0 %235
  %237 = vrot.lane.b32.xlu0 %v93, 88
  %v238 = vpop.permute.xlu0 %237
  %v240 = vsel %vm96, %v236, 0
  %v243 = vsel %vm96, %v238, 0
  %245 = vmatpush.bf16.xpose.msra.mxu0 0
  %246 = vmatpush.bf16.xpose.msra.mxu0 0
  %247 = vmatpush.bf16.xpose.msra.mxu0 0
  %248 = vmatpush.bf16.xpose.msra.mxu0 0
  %249 = vmatpush.bf16.xpose.msra.mxu0 0
  %250 = vmatpush.bf16.xpose.msra.mxu0 0
  %251 = vmatpush.bf16.xpose.msra.mxu0 0
  %252 = vmatpush.bf16.xpose.msra.mxu0 %v243
  %253 = vmatmul.bf16.gmra.mxu0 %v240
  %v254 = vpop.f32.mrf.mxu0
  %v255 = vadd.f32 0.0, %v254
  %v256 = vpop.f32.mrf.mxu0
  %257 = vdwg.mxu0
  %258 = vrot.lane.b32.xlu0 %v118, 120
  %v259 = vpop.permute.xlu0 %258
  %260 = vrot.lane.b32.xlu0 %v118, 88
  %v261 = vpop.permute.xlu0 %260
  %v263 = vsel %vm96, %v259, 0
  %v266 = vsel %vm96, %v261, 0
  %268 = vmatpush.bf16.xpose.msra.mxu0 0
  %269 = vmatpush.bf16.xpose.msra.mxu0 0
  %270 = vmatpush.bf16.xpose.msra.mxu0 0
  %271 = vmatpush.bf16.xpose.msra.mxu0 0
  %272 = vmatpush.bf16.xpose.msra.mxu0 0
  %273 = vmatpush.bf16.xpose.msra.mxu0 0
  %274 = vmatpush.bf16.xpose.msra.mxu0 0
  %275 = vmatpush.bf16.xpose.msra.mxu0 %v266
  %276 = vmatmul.bf16.gmra.mxu0 %v263
  %v277 = vpop.f32.mrf.mxu0
  %v278 = vadd.f32 0.0, %v277
  %v279 = vpop.f32.mrf.mxu0
  %280 = vdwg.mxu0
  %v281 = vmul.f32 %v255, 0.35355338
  %v282 = vmul.f32 %v278, 0.35355338
  %v283 = vsel %vm96, %v281, -inf
  %284 = vmax.xlane.f32.xlu0 %v283
  %v285 = vpop.xlane.xlu0 %284
  %v286 = vsel %vm96, %v282, -inf
  %287 = vmax.xlane.f32.xlu0 %v286
  %v288 = vpop.xlane.xlu0 %287
  %v289 = vsub.f32 %v281, %v285
  %v290 = vsub.f32 %v282, %v288
  %v291 = vmul.f32 %v289, 1.442695
  %v292 = vpow.pop %v291
  %v293 = vmul.f32 %v290, 1.442695
  %v294 = vpow.pop %v293
  %v295 = vsel %vm96, %v292, 0.0
  %296 = vadd.xlane.f32.xlu0 %v295
  %v297 = vpop.xlane.xlu0 %296
  %v298 = vsel %vm96, %v294, 0.0
  %299 = vadd.xlane.f32.xlu0 %v298
  %v300 = vpop.xlane.xlu0 %299
  %v301 = vrcp.pop %v297
  %v302 = vmul.f32 %v297, %v301
  %v303 = vsub.f32 1.0, %v302
  %v304 = vmul.f32 %v301, %v303
  %v305 = vadd.f32 %v301, %v304
  %vm306 = vweird.f32 %v297
  %vm307 = vweird.f32 %v301
  %vm308 = vmor %vm306, %vm307
  %v309 = vsel %vm308, %v301, %v305
  %v310 = vand.u32 2147483647, %v297
  %vm311 = vcmp.eq.f32.partialorder %v310, 8.507059e+37
  %v312 = vand.u32 %v297, 2147483648
  %v313 = vor.u32 1.1754944e-38, %v312
  %v314 = vsel %vm311, %v313, %v309
  %v315 = vrcp.pop %v300
  %v316 = vmul.f32 %v300, %v315
  %v317 = vsub.f32 1.0, %v316
  %v318 = vmul.f32 %v315, %v317
  %v319 = vadd.f32 %v315, %v318
  %vm320 = vweird.f32 %v300
  %vm321 = vweird.f32 %v315
  %vm322 = vmor %vm320, %vm321
  %v323 = vsel %vm322, %v315, %v319
  %v324 = vand.u32 2147483647, %v300
  %vm325 = vcmp.eq.f32.partialorder %v324, 8.507059e+37
  %v326 = vand.u32 %v300, 2147483648
  %v327 = vor.u32 1.1754944e-38, %v326
  %v328 = vsel %vm325, %v327, %v323
  %v329 = vmul.f32 %v292, %v314
  %v330 = vmul.f32 %v294, %v328
  %v331 = vpack.c.bf16 %v329, %v329
  %v332 = vpack.c.bf16 %v330, %v330
  %333 = vrot.lane.b32.xlu0 %v93, 56
  %v334 = vpop.permute.xlu0 %333
  %v336 = vsel %vm96, %v331, 0
  %v339 = vsel %vm197, %v334, 0
  %341 = vmatpush.bf16.msra.mxu0 0
  %342 = vmatpush.bf16.msra.mxu0 0
  %343 = vmatpush.bf16.msra.mxu0 0
  %344 = vmatpush.bf16.msra.mxu0 0
  %345 = vmatpush.bf16.msra.mxu0 0
  %346 = vmatpush.bf16.msra.mxu0 0
  %347 = vmatpush.bf16.msra.mxu0 0
  %348 = vmatpush.bf16.msra.mxu0 %v339
  %349 = vmatmul.bf16.gmra.mxu0 %v336
  %v350 = vpop.f32.mrf.mxu0
  %v351 = vadd.f32 0.0, %v350
  %v352 = vpop.f32.mrf.mxu0
  %353 = vdwg.mxu0
  %354 = vrot.lane.b32.xlu0 %v118, 56
  %v355 = vpop.permute.xlu0 %354
  %v357 = vsel %vm96, %v332, 0
  %v360 = vsel %vm197, %v355, 0
  %362 = vmatpush.bf16.msra.mxu0 0
  %363 = vmatpush.bf16.msra.mxu0 0
  %364 = vmatpush.bf16.msra.mxu0 0
  %365 = vmatpush.bf16.msra.mxu0 0
  %366 = vmatpush.bf16.msra.mxu0 0
  %367 = vmatpush.bf16.msra.mxu0 0
  %368 = vmatpush.bf16.msra.mxu0 0
  %369 = vmatpush.bf16.msra.mxu0 %v360
  %370 = vmatmul.bf16.gmra.mxu0 %v357
  %v371 = vpop.f32.mrf.mxu0
  %v372 = vadd.f32 0.0, %v371
  %v373 = vpop.f32.mrf.mxu0
  %374 = vdwg.mxu0
  %375 = vrot.lane.b32.xlu0 %v93, 112
  %v376 = vpop.permute.xlu0 %375
  %377 = vrot.lane.b32.xlu0 %v93, 80
  %v378 = vpop.permute.xlu0 %377
  %v380 = vsel %vm96, %v376, 0
  %v383 = vsel %vm96, %v378, 0
  %385 = vmatpush.bf16.xpose.msra.mxu0 0
  %386 = vmatpush.bf16.xpose.msra.mxu0 0
  %387 = vmatpush.bf16.xpose.msra.mxu0 0
  %388 = vmatpush.bf16.xpose.msra.mxu0 0
  %389 = vmatpush.bf16.xpose.msra.mxu0 0
  %390 = vmatpush.bf16.xpose.msra.mxu0 0
  %391 = vmatpush.bf16.xpose.msra.mxu0 0
  %392 = vmatpush.bf16.xpose.msra.mxu0 %v383
  %393 = vmatmul.bf16.gmra.mxu0 %v380
  %v394 = vpop.f32.mrf.mxu0
  %v395 = vadd.f32 0.0, %v394
  %v396 = vpop.f32.mrf.mxu0
  %397 = vdwg.mxu0
  %398 = vrot.lane.b32.xlu0 %v118, 112
  %v399 = vpop.permute.xlu0 %398
  %400 = vrot.lane.b32.xlu0 %v118, 80
  %v401 = vpop.permute.xlu0 %400
  %v403 = vsel %vm96, %v399, 0
  %v406 = vsel %vm96, %v401, 0
  %408 = vmatpush.bf16.xpose.msra.mxu0 0
  %409 = vmatpush.bf16.xpose.msra.mxu0 0
  %410 = vmatpush.bf16.xpose.msra.mxu0 0
  %411 = vmatpush.bf16.xpose.msra.mxu0 0
  %412 = vmatpush.bf16.xpose.msra.mxu0 0
  %413 = vmatpush.bf16.xpose.msra.mxu0 0
  %414 = vmatpush.bf16.xpose.msra.mxu0 0
  %415 = vmatpush.bf16.xpose.msra.mxu0 %v406
  %416 = vmatmul.bf16.gmra.mxu0 %v403
  %v417 = vpop.f32.mrf.mxu0
  %v418 = vadd.f32 0.0, %v417
  %v419 = vpop.f32.mrf.mxu0
  %420 = vdwg.mxu0
  %v421 = vmul.f32 %v395, 0.35355338
  %v422 = vmul.f32 %v418, 0.35355338
  %v423 = vsel %vm96, %v421, -inf
  %424 = vmax.xlane.f32.xlu0 %v423
  %v425 = vpop.xlane.xlu0 %424
  %v426 = vsel %vm96, %v422, -inf
  %427 = vmax.xlane.f32.xlu0 %v426
  %v428 = vpop.xlane.xlu0 %427
  %v429 = vsub.f32 %v421, %v425
  %v430 = vsub.f32 %v422, %v428
  %v431 = vmul.f32 %v429, 1.442695
  %v432 = vpow.pop %v431
  %v433 = vmul.f32 %v430, 1.442695
  %v434 = vpow.pop %v433
  %v435 = vsel %vm96, %v432, 0.0
  %436 = vadd.xlane.f32.xlu0 %v435
  %v437 = vpop.xlane.xlu0 %436
  %v438 = vsel %vm96, %v434, 0.0
  %439 = vadd.xlane.f32.xlu0 %v438
  %v440 = vpop.xlane.xlu0 %439
  %v441 = vrcp.pop %v437
  %v442 = vmul.f32 %v437, %v441
  %v443 = vsub.f32 1.0, %v442
  %v444 = vmul.f32 %v441, %v443
  %v445 = vadd.f32 %v441, %v444
  %vm446 = vweird.f32 %v437
  %vm447 = vweird.f32 %v441
  %vm448 = vmor %vm446, %vm447
  %v449 = vsel %vm448, %v441, %v445
  %v450 = vand.u32 2147483647, %v437
  %vm451 = vcmp.eq.f32.partialorder %v450, 8.507059e+37
  %v452 = vand.u32 %v437, 2147483648
  %v453 = vor.u32 1.1754944e-38, %v452
  %v454 = vsel %vm451, %v453, %v449
  %v455 = vrcp.pop %v440
  %v456 = vmul.f32 %v440, %v455
  %v457 = vsub.f32 1.0, %v456
  %v458 = vmul.f32 %v455, %v457
  %v459 = vadd.f32 %v455, %v458
  %vm460 = vweird.f32 %v440
  %vm461 = vweird.f32 %v455
  %vm462 = vmor %vm460, %vm461
  %v463 = vsel %vm462, %v455, %v459
  %v464 = vand.u32 2147483647, %v440
  %vm465 = vcmp.eq.f32.partialorder %v464, 8.507059e+37
  %v466 = vand.u32 %v440, 2147483648
  %v467 = vor.u32 1.1754944e-38, %v466
  %v468 = vsel %vm465, %v467, %v463
  %v469 = vmul.f32 %v432, %v454
  %v470 = vmul.f32 %v434, %v468
  %v471 = vpack.c.bf16 %v469, %v469
  %v472 = vpack.c.bf16 %v470, %v470
  %473 = vrot.lane.b32.xlu0 %v93, 48
  %v474 = vpop.permute.xlu0 %473
  %v476 = vsel %vm96, %v471, 0
  %v479 = vsel %vm197, %v474, 0
  %481 = vmatpush.bf16.msra.mxu0 0
  %482 = vmatpush.bf16.msra.mxu0 0
  %483 = vmatpush.bf16.msra.mxu0 0
  %484 = vmatpush.bf16.msra.mxu0 0
  %485 = vmatpush.bf16.msra.mxu0 0
  %486 = vmatpush.bf16.msra.mxu0 0
  %487 = vmatpush.bf16.msra.mxu0 0
  %488 = vmatpush.bf16.msra.mxu0 %v479
  %489 = vmatmul.bf16.gmra.mxu0 %v476
  %v490 = vpop.f32.mrf.mxu0
  %v491 = vadd.f32 0.0, %v490
  %v492 = vpop.f32.mrf.mxu0
  %493 = vdwg.mxu0
  %494 = vrot.lane.b32.xlu0 %v118, 48
  %v495 = vpop.permute.xlu0 %494
  %v497 = vsel %vm96, %v472, 0
  %v500 = vsel %vm197, %v495, 0
  %502 = vmatpush.bf16.msra.mxu0 0
  %503 = vmatpush.bf16.msra.mxu0 0
  %504 = vmatpush.bf16.msra.mxu0 0
  %505 = vmatpush.bf16.msra.mxu0 0
  %506 = vmatpush.bf16.msra.mxu0 0
  %507 = vmatpush.bf16.msra.mxu0 0
  %508 = vmatpush.bf16.msra.mxu0 0
  %509 = vmatpush.bf16.msra.mxu0 %v500
  %510 = vmatmul.bf16.gmra.mxu0 %v497
  %v511 = vpop.f32.mrf.mxu0
  %v512 = vadd.f32 0.0, %v511
  %v513 = vpop.f32.mrf.mxu0
  %514 = vdwg.mxu0
  %515 = vrot.lane.b32.xlu0 %v93, 104
  %v516 = vpop.permute.xlu0 %515
  %517 = vrot.lane.b32.xlu0 %v93, 72
  %v518 = vpop.permute.xlu0 %517
  %v520 = vsel %vm96, %v516, 0
  %v523 = vsel %vm96, %v518, 0
  %525 = vmatpush.bf16.xpose.msra.mxu0 0
  %526 = vmatpush.bf16.xpose.msra.mxu0 0
  %527 = vmatpush.bf16.xpose.msra.mxu0 0
  %528 = vmatpush.bf16.xpose.msra.mxu0 0
  %529 = vmatpush.bf16.xpose.msra.mxu0 0
  %530 = vmatpush.bf16.xpose.msra.mxu0 0
  %531 = vmatpush.bf16.xpose.msra.mxu0 0
  %532 = vmatpush.bf16.xpose.msra.mxu0 %v523
  %533 = vmatmul.bf16.gmra.mxu0 %v520
  %v534 = vpop.f32.mrf.mxu0
  %v535 = vadd.f32 0.0, %v534
  %v536 = vpop.f32.mrf.mxu0
  %537 = vdwg.mxu0
  %538 = vrot.lane.b32.xlu0 %v118, 104
  %v539 = vpop.permute.xlu0 %538
  %540 = vrot.lane.b32.xlu0 %v118, 72
  %v541 = vpop.permute.xlu0 %540
  %v543 = vsel %vm96, %v539, 0
  %v546 = vsel %vm96, %v541, 0
  %548 = vmatpush.bf16.xpose.msra.mxu0 0
  %549 = vmatpush.bf16.xpose.msra.mxu0 0
  %550 = vmatpush.bf16.xpose.msra.mxu0 0
  %551 = vmatpush.bf16.xpose.msra.mxu0 0
  %552 = vmatpush.bf16.xpose.msra.mxu0 0
  %553 = vmatpush.bf16.xpose.msra.mxu0 0
  %554 = vmatpush.bf16.xpose.msra.mxu0 0
  %555 = vmatpush.bf16.xpose.msra.mxu0 %v546
  %556 = vmatmul.bf16.gmra.mxu0 %v543
  %v557 = vpop.f32.mrf.mxu0
  %v558 = vadd.f32 0.0, %v557
  %v559 = vpop.f32.mrf.mxu0
  %560 = vdwg.mxu0
  %v561 = vmul.f32 %v535, 0.35355338
  %v562 = vmul.f32 %v558, 0.35355338
  %v563 = vsel %vm96, %v561, -inf
  %564 = vmax.xlane.f32.xlu0 %v563
  %v565 = vpop.xlane.xlu0 %564
  %v566 = vsel %vm96, %v562, -inf
  %567 = vmax.xlane.f32.xlu0 %v566
  %v568 = vpop.xlane.xlu0 %567
  %v569 = vsub.f32 %v561, %v565
  %v570 = vsub.f32 %v562, %v568
  %v571 = vmul.f32 %v569, 1.442695
  %v572 = vpow.pop %v571
  %v573 = vmul.f32 %v570, 1.442695
  %v574 = vpow.pop %v573
  %v575 = vsel %vm96, %v572, 0.0
  %576 = vadd.xlane.f32.xlu0 %v575
  %v577 = vpop.xlane.xlu0 %576
  %v578 = vsel %vm96, %v574, 0.0
  %579 = vadd.xlane.f32.xlu0 %v578
  %v580 = vpop.xlane.xlu0 %579
  %v581 = vrcp.pop %v577
  %v582 = vmul.f32 %v577, %v581
  %v583 = vsub.f32 1.0, %v582
  %v584 = vmul.f32 %v581, %v583
  %v585 = vadd.f32 %v581, %v584
  %vm586 = vweird.f32 %v577
  %vm587 = vweird.f32 %v581
  %vm588 = vmor %vm586, %vm587
  %v589 = vsel %vm588, %v581, %v585
  %v590 = vand.u32 2147483647, %v577
  %vm591 = vcmp.eq.f32.partialorder %v590, 8.507059e+37
  %v592 = vand.u32 %v577, 2147483648
  %v593 = vor.u32 1.1754944e-38, %v592
  %v594 = vsel %vm591, %v593, %v589
  %v595 = vrcp.pop %v580
  %v596 = vmul.f32 %v580, %v595
  %v597 = vsub.f32 1.0, %v596
  %v598 = vmul.f32 %v595, %v597
  %v599 = vadd.f32 %v595, %v598
  %vm600 = vweird.f32 %v580
  %vm601 = vweird.f32 %v595
  %vm602 = vmor %vm600, %vm601
  %v603 = vsel %vm602, %v595, %v599
  %v604 = vand.u32 2147483647, %v580
  %vm605 = vcmp.eq.f32.partialorder %v604, 8.507059e+37
  %v606 = vand.u32 %v580, 2147483648
  %v607 = vor.u32 1.1754944e-38, %v606
  %v608 = vsel %vm605, %v607, %v603
  %v609 = vmul.f32 %v572, %v594
  %v610 = vmul.f32 %v574, %v608
  %v611 = vpack.c.bf16 %v609, %v609
  %v612 = vpack.c.bf16 %v610, %v610
  %613 = vrot.lane.b32.xlu0 %v93, 40
  %v614 = vpop.permute.xlu0 %613
  %v616 = vsel %vm96, %v611, 0
  %v619 = vsel %vm197, %v614, 0
  %621 = vmatpush.bf16.msra.mxu0 0
  %622 = vmatpush.bf16.msra.mxu0 0
  %623 = vmatpush.bf16.msra.mxu0 0
  %624 = vmatpush.bf16.msra.mxu0 0
  %625 = vmatpush.bf16.msra.mxu0 0
  %626 = vmatpush.bf16.msra.mxu0 0
  %627 = vmatpush.bf16.msra.mxu0 0
  %628 = vmatpush.bf16.msra.mxu0 %v619
  %629 = vmatmul.bf16.gmra.mxu0 %v616
  %v630 = vpop.f32.mrf.mxu0
  %v631 = vadd.f32 0.0, %v630
  %v632 = vpop.f32.mrf.mxu0
  %633 = vdwg.mxu0
  %634 = vrot.lane.b32.xlu0 %v118, 40
  %v635 = vpop.permute.xlu0 %634
  %v637 = vsel %vm96, %v612, 0
  %v640 = vsel %vm197, %v635, 0
  %642 = vmatpush.bf16.msra.mxu0 0
  %643 = vmatpush.bf16.msra.mxu0 0
  %644 = vmatpush.bf16.msra.mxu0 0
  %645 = vmatpush.bf16.msra.mxu0 0
  %646 = vmatpush.bf16.msra.mxu0 0
  %647 = vmatpush.bf16.msra.mxu0 0
  %648 = vmatpush.bf16.msra.mxu0 0
  %649 = vmatpush.bf16.msra.mxu0 %v640
  %650 = vmatmul.bf16.gmra.mxu0 %v637
  %v651 = vpop.f32.mrf.mxu0
  %v652 = vadd.f32 0.0, %v651
  %v653 = vpop.f32.mrf.mxu0
  %654 = vdwg.mxu0
  %657 = vrot.lane.b32.xlu0 %v351, 8
  %v658 = vpop.permute.xlu0 %657
  %659 = vrot.lane.b32.xlu0 %v372, 8
  %v660 = vpop.permute.xlu0 %659
  %665 = vrot.lane.b32.xlu0 %v491, 16
  %v666 = vpop.permute.xlu0 %665
  %667 = vrot.lane.b32.xlu0 %v512, 16
  %v668 = vpop.permute.xlu0 %667
  %673 = vrot.lane.b32.xlu0 %v631, 24
  %v674 = vpop.permute.xlu0 %673
  %675 = vrot.lane.b32.xlu0 %v652, 24
  %v676 = vpop.permute.xlu0 %675
  %v679 = vsel %vm96, %v211, %v658
  %v680 = vsel %vm96, %v232, %v660
  %vm681 = vcmask 130048
  %v682 = vsel %vm681, %v679, %v666
  %v683 = vsel %vm681, %v680, %v668
  %vm684 = vcmask 195584
  %v685 = vsel %vm684, %v682, %v674
  %v686 = vsel %vm684, %v683, %v676
  %v687 = vpack.c.bf16 %v686, %v685
  %v688 = vld [vmem:[%s3] sm:$0xf]
  %v689 = vld [vmem:[%s3 + $0x4] sm:$0xf]
  %v690 = vld [vmem:[%s3 + $0x8] sm:$0xf]
  %v691 = vld [vmem:[%s3 + $0xc] sm:$0xf]
  %v696 = vunpack.c.l.b16 %v688
  %v697 = vunpack.c.l.b16 %v689
  %v698 = vunpack.c.l.b16 %v690
  %v699 = vunpack.c.l.b16 %v691
  %v700 = vpack.c.b16 %v697, %v696
  %v701 = vpack.c.b16 %v699, %v698
  %v705 = vsel %vm71, %v687, 0
  %707 = vmatpush.bf16.msra.mxu0 0
  %708 = vmatpush.bf16.msra.mxu0 0
  %709 = vmatpush.bf16.msra.mxu0 0
  %710 = vmatpush.bf16.msra.mxu0 0
  %711 = vmatpush.bf16.msra.mxu0 0
  %712 = vmatpush.bf16.msra.mxu0 0
  %713 = vmatpush.bf16.msra.mxu0 %v701
  %714 = vmatpush.bf16.msra.mxu0 %v700
  %715 = vmatmul.bf16.gmra.mxu0 %v705
  %v716 = vpop.f32.mrf.mxu0
  %v717 = vadd.f32 %v48, %v716
  %v718 = vpop.f32.mrf.mxu0
  %v719 = vadd.f32 %v48, %v718
  %720 = vdwg.mxu0
  %v721 = vadd.f32 %v45, %v717
  %v722 = vadd.f32 %v46, %v719
  %v723 = vsel %vm71, %v721, 0.0
  %724 = vadd.xlane.f32.xlu0 %v723
  %v725 = vpop.xlane.xlu0 %724
  %v726 = vsel %vm71, %v722, 0.0
  %727 = vadd.xlane.f32.xlu0 %v726
  %v728 = vpop.xlane.xlu0 %727
  %v729 = vrcp.pop 32.0
  %v730 = vmul.f32 32.0, %v729
  %v731 = vsub.f32 1.0, %v730
  %v732 = vmul.f32 %v729, %v731
  %v733 = vadd.f32 %v729, %v732
  %vm734 = vweird.f32 %v729
  %v735 = vsel %vm734, %v729, %v733
  %v736 = vmul.f32 %v725, %v735
  %v737 = vmul.f32 %v728, %v735
  %v738 = vsub.f32 %v721, %v736
  %v739 = vsub.f32 %v722, %v737
  %v740 = vmul.f32 %v738, %v738
  %v741 = vmul.f32 %v739, %v739
  %v742 = vsel %vm71, %v740, 0.0
  %743 = vadd.xlane.f32.xlu0 %v742
  %v744 = vpop.xlane.xlu0 %743
  %v745 = vsel %vm71, %v741, 0.0
  %746 = vadd.xlane.f32.xlu0 %v745
  %v747 = vpop.xlane.xlu0 %746
  %v748 = vmul.f32 %v744, %v735
  %v749 = vmul.f32 %v747, %v735
  %v750 = vadd.f32 %v748, 1e-05
  %v751 = vadd.f32 %v749, 1e-05
  %v752 = vrsqrt.pop %v750
  %v753 = vmul.f32 %v752, %v750
  %v754 = vmul.f32 %v753, %v752
  %v755 = vmul.f32 0.5, %v754
  %v756 = vsub.f32 1.5, %v755
  %v757 = vmul.f32 %v752, %v756
  %vm758 = vweird.f32 %v750
  %vm759 = vweird.f32 %v752
  %vm760 = vmor %vm758, %vm759
  %v761 = vsel %vm760, %v752, %v757
  %v762 = vrsqrt.pop %v751
  %v763 = vmul.f32 %v762, %v751
  %v764 = vmul.f32 %v763, %v762
  %v765 = vmul.f32 0.5, %v764
  %v766 = vsub.f32 1.5, %v765
  %v767 = vmul.f32 %v762, %v766
  %vm768 = vweird.f32 %v751
  %vm769 = vweird.f32 %v762
  %vm770 = vmor %vm768, %vm769
  %v771 = vsel %vm770, %v762, %v767
  %v772 = vmul.f32 %v738, %v761
  %v773 = vmul.f32 %v739, %v771
  %v774 = vmul.f32 %v772, %v50
  %v775 = vmul.f32 %v773, %v50
  %v776 = vadd.f32 %v774, %v51
  %v777 = vadd.f32 %v775, %v51
  %v778 = vpack.c.bf16 %v777, %v776
  %v779 = vld [vmem:[%s4] sm:$0xff]
  %v780 = vld [vmem:[%s4 + $0x8] sm:$0xff]
  %v781 = vld [vmem:[%s4 + $0x40] sm:$0xff]
  %v782 = vld [vmem:[%s4 + $0x48] sm:$0xff]
  %v783 = vld [vmem:[%s4 + $0x80] sm:$0xff]
  %v784 = vld [vmem:[%s4 + $0x88] sm:$0xff]
  %v785 = vld [vmem:[%s4 + $0xc0] sm:$0xff]
  %v786 = vld [vmem:[%s4 + $0xc8] sm:$0xff]
  %s787 = scalar_lea.vmem %s1, 2
  %v788 = vld [vmem:[%s787] ss:$8 sm:$0xf]
  %v790 = vperm.slane %v788, 0
  %v791 = vperm.slane %v788, 1
  %v792 = vperm.slane %v788, 2
  %v793 = vperm.slane %v788, 3
  %v806 = vunpack.c.l.b16 %v779
  %v807 = vunpack.c.h.b16 %v779
  %v808 = vunpack.c.l.b16 %v780
  %v809 = vunpack.c.h.b16 %v780
  %v810 = vunpack.c.l.b16 %v781
  %v811 = vunpack.c.h.b16 %v781
  %v812 = vunpack.c.l.b16 %v782
  %v813 = vunpack.c.h.b16 %v782
  %v814 = vunpack.c.l.b16 %v783
  %v815 = vunpack.c.h.b16 %v783
  %v816 = vunpack.c.l.b16 %v784
  %v817 = vunpack.c.h.b16 %v784
  %v818 = vunpack.c.l.b16 %v785
  %v819 = vunpack.c.h.b16 %v785
  %v820 = vunpack.c.l.b16 %v786
  %v821 = vunpack.c.h.b16 %v786
  %v822 = vpack.c.b16 %v810, %v806
  %v823 = vpack.c.b16 %v811, %v807
  %v824 = vpack.c.b16 %v812, %v808
  %v825 = vpack.c.b16 %v813, %v809
  %v826 = vpack.c.b16 %v818, %v814
  %v827 = vpack.c.b16 %v819, %v815
  %v828 = vpack.c.b16 %v820, %v816
  %v829 = vpack.c.b16 %v821, %v817
  %v839 = vsel %vm71, %v778, 0
  %841 = vmatpush.bf16.msra.mxu0 0
  %842 = vmatpush.bf16.msra.mxu0 0
  %843 = vmatpush.bf16.msra.mxu0 0
  %844 = vmatpush.bf16.msra.mxu0 0
  %845 = vmatpush.bf16.msra.mxu0 0
  %846 = vmatpush.bf16.msra.mxu0 0
  %847 = vmatpush.bf16.msra.mxu0 %v826
  %848 = vmatpush.bf16.msra.mxu0 %v822
  %849 = vmatmul.bf16.gmra.mxu0 %v839
  %v850 = vpop.f32.mrf.mxu0
  %v851 = vadd.f32 %v790, %v850
  %v852 = vpop.f32.mrf.mxu0
  %v853 = vadd.f32 %v790, %v852
  %854 = vdwg.mxu0
  %855 = vmatpush.bf16.msra.mxu0 0
  %856 = vmatpush.bf16.msra.mxu0 0
  %857 = vmatpush.bf16.msra.mxu0 0
  %858 = vmatpush.bf16.msra.mxu0 0
  %859 = vmatpush.bf16.msra.mxu0 0
  %860 = vmatpush.bf16.msra.mxu0 0
  %861 = vmatpush.bf16.msra.mxu0 %v827
  %862 = vmatpush.bf16.msra.mxu0 %v823
  %863 = vmatmul.bf16.gmra.mxu0 %v839
  %v864 = vpop.f32.mrf.mxu0
  %v865 = vadd.f32 %v791, %v864
  %v866 = vpop.f32.mrf.mxu0
  %v867 = vadd.f32 %v791, %v866
  %868 = vdwg.mxu0
  %869 = vmatpush.bf16.msra.mxu0 0
  %870 = vmatpush.bf16.msra.mxu0 0
  %871 = vmatpush.bf16.msra.mxu0 0
  %872 = vmatpush.bf16.msra.mxu0 0
  %873 = vmatpush.bf16.msra.mxu0 0
  %874 = vmatpush.bf16.msra.mxu0 0
  %875 = vmatpush.bf16.msra.mxu0 %v828
  %876 = vmatpush.bf16.msra.mxu0 %v824
  %877 = vmatmul.bf16.gmra.mxu0 %v839
  %v878 = vpop.f32.mrf.mxu0
  %v879 = vadd.f32 %v792, %v878
  %v880 = vpop.f32.mrf.mxu0
  %v881 = vadd.f32 %v792, %v880
  %882 = vdwg.mxu0
  %883 = vmatpush.bf16.msra.mxu0 0
  %884 = vmatpush.bf16.msra.mxu0 0
  %885 = vmatpush.bf16.msra.mxu0 0
  %886 = vmatpush.bf16.msra.mxu0 0
  %887 = vmatpush.bf16.msra.mxu0 0
  %888 = vmatpush.bf16.msra.mxu0 0
  %889 = vmatpush.bf16.msra.mxu0 %v829
  %890 = vmatpush.bf16.msra.mxu0 %v825
  %891 = vmatmul.bf16.gmra.mxu0 %v839
  %v892 = vpop.f32.mrf.mxu0
  %v893 = vadd.f32 %v793, %v892
  %v894 = vpop.f32.mrf.mxu0
  %v895 = vadd.f32 %v793, %v894
  %896 = vdwg.mxu0
  %v897 = vmax.f32 %v851, 0.0
  %v898 = vmax.f32 %v865, 0.0
  %v899 = vmax.f32 %v879, 0.0
  %v900 = vmax.f32 %v893, 0.0
  %v901 = vmax.f32 %v853, 0.0
  %v902 = vmax.f32 %v867, 0.0
  %v903 = vmax.f32 %v881, 0.0
  %v904 = vmax.f32 %v895, 0.0
  %v905 = vpack.c.bf16 %v901, %v897
  %v906 = vpack.c.bf16 %v902, %v898
  %v907 = vpack.c.bf16 %v903, %v899
  %v908 = vpack.c.bf16 %v904, %v900
  %v909 = vld [vmem:[%s5] sm:$0xf]
  %v910 = vld [vmem:[%s5 + $0x4] sm:$0xf]
  %v911 = vld [vmem:[%s5 + $0x8] sm:$0xf]
  %v912 = vld [vmem:[%s5 + $0xc] sm:$0xf]
  %v913 = vld [vmem:[%s5 + $0x10] sm:$0xf]
  %v914 = vld [vmem:[%s5 + $0x14] sm:$0xf]
  %v915 = vld [vmem:[%s5 + $0x18] sm:$0xf]
  %v916 = vld [vmem:[%s5 + $0x1c] sm:$0xf]
  %v917 = vld [vmem:[%s5 + $0x20] sm:$0xf]
  %v918 = vld [vmem:[%s5 + $0x24] sm:$0xf]
  %v919 = vld [vmem:[%s5 + $0x28] sm:$0xf]
  %v920 = vld [vmem:[%s5 + $0x2c] sm:$0xf]
  %v921 = vld [vmem:[%s5 + $0x30] sm:$0xf]
  %v922 = vld [vmem:[%s5 + $0x34] sm:$0xf]
  %v923 = vld [vmem:[%s5 + $0x38] sm:$0xf]
  %v924 = vld [vmem:[%s5 + $0x3c] sm:$0xf]
  %v925 = vld [vmem:[%s5 + $0x40] sm:$0xf]
  %v926 = vld [vmem:[%s5 + $0x44] sm:$0xf]
  %v927 = vld [vmem:[%s5 + $0x48] sm:$0xf]
  %v928 = vld [vmem:[%s5 + $0x4c] sm:$0xf]
  %v929 = vld [vmem:[%s5 + $0x50] sm:$0xf]
  %v930 = vld [vmem:[%s5 + $0x54] sm:$0xf]
  %v931 = vld [vmem:[%s5 + $0x58] sm:$0xf]
  %v932 = vld [vmem:[%s5 + $0x5c] sm:$0xf]
  %v933 = vld [vmem:[%s5 + $0x60] sm:$0xf]
  %v934 = vld [vmem:[%s5 + $0x64] sm:$0xf]
  %v935 = vld [vmem:[%s5 + $0x68] sm:$0xf]
  %v936 = vld [vmem:[%s5 + $0x6c] sm:$0xf]
  %v937 = vld [vmem:[%s5 + $0x70] sm:$0xf]
  %v938 = vld [vmem:[%s5 + $0x74] sm:$0xf]
  %v939 = vld [vmem:[%s5 + $0x78] sm:$0xf]
  %v940 = vld [vmem:[%s5 + $0x7c] sm:$0xf]
  %v941 = vld [vmem:[%s5 + $0x80] sm:$0xf]
  %v942 = vld [vmem:[%s5 + $0x84] sm:$0xf]
  %v943 = vld [vmem:[%s5 + $0x88] sm:$0xf]
  %v944 = vld [vmem:[%s5 + $0x8c] sm:$0xf]
  %v945 = vld [vmem:[%s5 + $0x90] sm:$0xf]
  %v946 = vld [vmem:[%s5 + $0x94] sm:$0xf]
  %v947 = vld [vmem:[%s5 + $0x98] sm:$0xf]
  %v948 = vld [vmem:[%s5 + $0x9c] sm:$0xf]
  %v949 = vld [vmem:[%s5 + $0xa0] sm:$0xf]
  %v950 = vld [vmem:[%s5 + $0xa4] sm:$0xf]
  %v951 = vld [vmem:[%s5 + $0xa8] sm:$0xf]
  %v952 = vld [vmem:[%s5 + $0xac] sm:$0xf]
  %v953 = vld [vmem:[%s5 + $0xb0] sm:$0xf]
  %v954 = vld [vmem:[%s5 + $0xb4] sm:$0xf]
  %v955 = vld [vmem:[%s5 + $0xb8] sm:$0xf]
  %v956 = vld [vmem:[%s5 + $0xbc] sm:$0xf]
  %v957 = vld [vmem:[%s5 + $0xc0] sm:$0xf]
  %v958 = vld [vmem:[%s5 + $0xc4] sm:$0xf]
  %v959 = vld [vmem:[%s5 + $0xc8] sm:$0xf]
  %v960 = vld [vmem:[%s5 + $0xcc] sm:$0xf]
  %v961 = vld [vmem:[%s5 + $0xd0] sm:$0xf]
  %v962 = vld [vmem:[%s5 + $0xd4] sm:$0xf]
  %v963 = vld [vmem:[%s5 + $0xd8] sm:$0xf]
  %v964 = vld [vmem:[%s5 + $0xdc] sm:$0xf]
  %v965 = vld [vmem:[%s5 + $0xe0] sm:$0xf]
  %v966 = vld [vmem:[%s5 + $0xe4] sm:$0xf]
  %v967 = vld [vmem:[%s5 + $0xe8] sm:$0xf]
  %v968 = vld [vmem:[%s5 + $0xec] sm:$0xf]
  %v969 = vld [vmem:[%s5 + $0xf0] sm:$0xf]
  %v970 = vld [vmem:[%s5 + $0xf4] sm:$0xf]
  %v971 = vld [vmem:[%s5 + $0xf8] sm:$0xf]
  %v972 = vld [vmem:[%s5 + $0xfc] sm:$0xf]
  %v973 = vld [vmem:[%s4 + $0x10] sm:$0xff]
  %v974 = vld [vmem:[%s4 + $0x18] sm:$0xff]
  %v975 = vld [vmem:[%s4 + $0x50] sm:$0xff]
  %v976 = vld [vmem:[%s4 + $0x58] sm:$0xff]
  %v977 = vld [vmem:[%s4 + $0x90] sm:$0xff]
  %v978 = vld [vmem:[%s4 + $0x98] sm:$0xff]
  %v979 = vld [vmem:[%s4 + $0xd0] sm:$0xff]
  %v980 = vld [vmem:[%s4 + $0xd8] sm:$0xff]
  %s981 = scalar_lea.vmem %s1, 34
  %v982 = vld [vmem:[%s981] ss:$8 sm:$0xf]
  %v984 = vperm.slane %v982, 0
  %v985 = vperm.slane %v982, 1
  %v986 = vperm.slane %v982, 2
  %v987 = vperm.slane %v982, 3
  %v1000 = vunpack.c.l.b16 %v973
  %v1001 = vunpack.c.h.b16 %v973
  %v1002 = vunpack.c.l.b16 %v974
  %v1003 = vunpack.c.h.b16 %v974
  %v1004 = vunpack.c.l.b16 %v975
  %v1005 = vunpack.c.h.b16 %v975
  %v1006 = vunpack.c.l.b16 %v976
  %v1007 = vunpack.c.h.b16 %v976
  %v1008 = vunpack.c.l.b16 %v977
  %v1009 = vunpack.c.h.b16 %v977
  %v1010 = vunpack.c.l.b16 %v978
  %v1011 = vunpack.c.h.b16 %v978
  %v1012 = vunpack.c.l.b16 %v979
  %v1013 = vunpack.c.h.b16 %v979
  %v1014 = vunpack.c.l.b16 %v980
  %v1015 = vunpack.c.h.b16 %v980
  %v1016 = vpack.c.b16 %v1004, %v1000
  %v1017 = vpack.c.b16 %v1005, %v1001
  %v1018 = vpack.c.b16 %v1006, %v1002
  %v1019 = vpack.c.b16 %v1007, %v1003
  %v1020 = vpack.c.b16 %v1012, %v1008
  %v1021 = vpack.c.b16 %v1013, %v1009
  %v1022 = vpack.c.b16 %v1014, %v1010
  %v1023 = vpack.c.b16 %v1015, %v1011
  %1032 = vmatpush.bf16.msra.mxu0 0
  %1033 = vmatpush.bf16.msra.mxu0 0
  %1034 = vmatpush.bf16.msra.mxu0 0
  %1035 = vmatpush.bf16.msra.mxu0 0
  %1036 = vmatpush.bf16.msra.mxu0 0
  %1037 = vmatpush.bf16.msra.mxu0 0
  %1038 = vmatpush.bf16.msra.mxu0 %v1020
  %1039 = vmatpush.bf16.msra.mxu0 %v1016
  %1040 = vmatmul.bf16.gmra.mxu0 %v839
  %v1041 = vpop.f32.mrf.mxu0
  %v1042 = vadd.f32 %v984, %v1041
  %v1043 = vpop.f32.mrf.mxu0
  %v1044 = vadd.f32 %v984, %v1043
  %1045 = vdwg.mxu0
  %1046 = vmatpush.bf16.msra.mxu0 0
  %1047 = vmatpush.bf16.msra.mxu0 0
  %1048 = vmatpush.bf16.msra.mxu0 0
  %1049 = vmatpush.bf16.msra.mxu0 0
  %1050 = vmatpush.bf16.msra.mxu0 0
  %1051 = vmatpush.bf16.msra.mxu0 0
  %1052 = vmatpush.bf16.msra.mxu0 %v1021
  %1053 = vmatpush.bf16.msra.mxu0 %v1017
  %1054 = vmatmul.bf16.gmra.mxu0 %v839
  %v1055 = vpop.f32.mrf.mxu0
  %v1056 = vadd.f32 %v985, %v1055
  %v1057 = vpop.f32.mrf.mxu0
  %v1058 = vadd.f32 %v985, %v1057
  %1059 = vdwg.mxu0
  %1060 = vmatpush.bf16.msra.mxu0 0
  %1061 = vmatpush.bf16.msra.mxu0 0
  %1062 = vmatpush.bf16.msra.mxu0 0
  %1063 = vmatpush.bf16.msra.mxu0 0
  %1064 = vmatpush.bf16.msra.mxu0 0
  %1065 = vmatpush.bf16.msra.mxu0 0
  %1066 = vmatpush.bf16.msra.mxu0 %v1022
  %1067 = vmatpush.bf16.msra.mxu0 %v1018
  %1068 = vmatmul.bf16.gmra.mxu0 %v839
  %v1069 = vpop.f32.mrf.mxu0
  %v1070 = vadd.f32 %v986, %v1069
  %v1071 = vpop.f32.mrf.mxu0
  %v1072 = vadd.f32 %v986, %v1071
  %1073 = vdwg.mxu0
  %1074 = vmatpush.bf16.msra.mxu0 0
  %1075 = vmatpush.bf16.msra.mxu0 0
  %1076 = vmatpush.bf16.msra.mxu0 0
  %1077 = vmatpush.bf16.msra.mxu0 0
  %1078 = vmatpush.bf16.msra.mxu0 0
  %1079 = vmatpush.bf16.msra.mxu0 0
  %1080 = vmatpush.bf16.msra.mxu0 %v1023
  %1081 = vmatpush.bf16.msra.mxu0 %v1019
  %1082 = vmatmul.bf16.gmra.mxu0 %v839
  %v1083 = vpop.f32.mrf.mxu0
  %v1084 = vadd.f32 %v987, %v1083
  %v1085 = vpop.f32.mrf.mxu0
  %v1086 = vadd.f32 %v987, %v1085
  %1087 = vdwg.mxu0
  %v1088 = vmax.f32 %v1042, 0.0
  %v1089 = vmax.f32 %v1056, 0.0
  %v1090 = vmax.f32 %v1070, 0.0
  %v1091 = vmax.f32 %v1084, 0.0
  %v1092 = vmax.f32 %v1044, 0.0
  %v1093 = vmax.f32 %v1058, 0.0
  %v1094 = vmax.f32 %v1072, 0.0
  %v1095 = vmax.f32 %v1086, 0.0
  %v1096 = vpack.c.bf16 %v1092, %v1088
  %v1097 = vpack.c.bf16 %v1093, %v1089
  %v1098 = vpack.c.bf16 %v1094, %v1090
  %v1099 = vpack.c.bf16 %v1095, %v1091
  %v1100 = vld [vmem:[%s5 + $0x100] sm:$0xf]
  %v1101 = vld [vmem:[%s5 + $0x104] sm:$0xf]
  %v1102 = vld [vmem:[%s5 + $0x108] sm:$0xf]
  %v1103 = vld [vmem:[%s5 + $0x10c] sm:$0xf]
  %v1104 = vld [vmem:[%s5 + $0x110] sm:$0xf]
  %v1105 = vld [vmem:[%s5 + $0x114] sm:$0xf]
  %v1106 = vld [vmem:[%s5 + $0x118] sm:$0xf]
  %v1107 = vld [vmem:[%s5 + $0x11c] sm:$0xf]
  %v1108 = vld [vmem:[%s5 + $0x120] sm:$0xf]
  %v1109 = vld [vmem:[%s5 + $0x124] sm:$0xf]
  %v1110 = vld [vmem:[%s5 + $0x128] sm:$0xf]
  %v1111 = vld [vmem:[%s5 + $0x12c] sm:$0xf]
  %v1112 = vld [vmem:[%s5 + $0x130] sm:$0xf]
  %v1113 = vld [vmem:[%s5 + $0x134] sm:$0xf]
  %v1114 = vld [vmem:[%s5 + $0x138] sm:$0xf]
  %v1115 = vld [vmem:[%s5 + $0x13c] sm:$0xf]
  %v1116 = vld [vmem:[%s5 + $0x140] sm:$0xf]
  %v1117 = vld [vmem:[%s5 + $0x144] sm:$0xf]
  %v1118 = vld [vmem:[%s5 + $0x148] sm:$0xf]
  %v1119 = vld [vmem:[%s5 + $0x14c] sm:$0xf]
  %v1120 = vld [vmem:[%s5 + $0x150] sm:$0xf]
  %v1121 = vld [vmem:[%s5 + $0x154] sm:$0xf]
  %v1122 = vld [vmem:[%s5 + $0x158] sm:$0xf]
  %v1123 = vld [vmem:[%s5 + $0x15c] sm:$0xf]
  %v1124 = vld [vmem:[%s5 + $0x160] sm:$0xf]
  %v1125 = vld [vmem:[%s5 + $0x164] sm:$0xf]
  %v1126 = vld [vmem:[%s5 + $0x168] sm:$0xf]
  %v1127 = vld [vmem:[%s5 + $0x16c] sm:$0xf]
  %v1128 = vld [vmem:[%s5 + $0x170] sm:$0xf]
  %v1129 = vld [vmem:[%s5 + $0x174] sm:$0xf]
  %v1130 = vld [vmem:[%s5 + $0x178] sm:$0xf]
  %v1131 = vld [vmem:[%s5 + $0x17c] sm:$0xf]
  %v1132 = vld [vmem:[%s5 + $0x180] sm:$0xf]
  %v1133 = vld [vmem:[%s5 + $0x184] sm:$0xf]
  %v1134 = vld [vmem:[%s5 + $0x188] sm:$0xf]
  %v1135 = vld [vmem:[%s5 + $0x18c] sm:$0xf]
  %v1136 = vld [vmem:[%s5 + $0x190] sm:$0xf]
  %v1137 = vld [vmem:[%s5 + $0x194] sm:$0xf]
  %v1138 = vld [vmem:[%s5 + $0x198] sm:$0xf]
  %v1139 = vld [vmem:[%s5 + $0x19c] sm:$0xf]
  %v1140 = vld [vmem:[%s5 + $0x1a0] sm:$0xf]
  %v1141 = vld [vmem:[%s5 + $0x1a4] sm:$0xf]
  %v1142 = vld [vmem:[%s5 + $0x1a8] sm:$0xf]
  %v1143 = vld [vmem:[%s5 + $0x1ac] sm:$0xf]
  %v1144 = vld [vmem:[%s5 + $0x1b0] sm:$0xf]
  %v1145 = vld [vmem:[%s5 + $0x1b4] sm:$0xf]
  %v1146 = vld [vmem:[%s5 + $0x1b8] sm:$0xf]
  %v1147 = vld [vmem:[%s5 + $0x1bc] sm:$0xf]
  %v1148 = vld [vmem:[%s5 + $0x1c0] sm:$0xf]
  %v1149 = vld [vmem:[%s5 + $0x1c4] sm:$0xf]
  %v1150 = vld [vmem:[%s5 + $0x1c8] sm:$0xf]
  %v1151 = vld [vmem:[%s5 + $0x1cc] sm:$0xf]
  %v1152 = vld [vmem:[%s5 + $0x1d0] sm:$0xf]
  %v1153 = vld [vmem:[%s5 + $0x1d4] sm:$0xf]
  %v1154 = vld [vmem:[%s5 + $0x1d8] sm:$0xf]
  %v1155 = vld [vmem:[%s5 + $0x1dc] sm:$0xf]
  %v1156 = vld [vmem:[%s5 + $0x1e0] sm:$0xf]
  %v1157 = vld [vmem:[%s5 + $0x1e4] sm:$0xf]
  %v1158 = vld [vmem:[%s5 + $0x1e8] sm:$0xf]
  %v1159 = vld [vmem:[%s5 + $0x1ec] sm:$0xf]
  %v1160 = vld [vmem:[%s5 + $0x1f0] sm:$0xf]
  %v1161 = vld [vmem:[%s5 + $0x1f4] sm:$0xf]
  %v1162 = vld [vmem:[%s5 + $0x1f8] sm:$0xf]
  %v1163 = vld [vmem:[%s5 + $0x1fc] sm:$0xf]
  %v1228 = vunpack.c.l.b16 %v1100
  %v1229 = vunpack.c.l.b16 %v1101
  %v1230 = vunpack.c.l.b16 %v1102
  %v1231 = vunpack.c.l.b16 %v1103
  %v1232 = vunpack.c.l.b16 %v1104
  %v1233 = vunpack.c.l.b16 %v1105
  %v1234 = vunpack.c.l.b16 %v1106
  %v1235 = vunpack.c.l.b16 %v1107
  %v1236 = vunpack.c.l.b16 %v1108
  %v1237 = vunpack.c.l.b16 %v1109
  %v1238 = vunpack.c.l.b16 %v1110
  %v1239 = vunpack.c.l.b16 %v1111
  %v1240 = vunpack.c.l.b16 %v1112
  %v1241 = vunpack.c.l.b16 %v1113
  %v1242 = vunpack.c.l.b16 %v1114
  %v1243 = vunpack.c.l.b16 %v1115
  %v1244 = vunpack.c.l.b16 %v1116
  %v1245 = vunpack.c.l.b16 %v1117
  %v1246 = vunpack.c.l.b16 %v1118
  %v1247 = vunpack.c.l.b16 %v1119
  %v1248 = vunpack.c.l.b16 %v1120
  %v1249 = vunpack.c.l.b16 %v1121
  %v1250 = vunpack.c.l.b16 %v1122
  %v1251 = vunpack.c.l.b16 %v1123
  %v1252 = vunpack.c.l.b16 %v1124
  %v1253 = vunpack.c.l.b16 %v1125
  %v1254 = vunpack.c.l.b16 %v1126
  %v1255 = vunpack.c.l.b16 %v1127
  %v1256 = vunpack.c.l.b16 %v1128
  %v1257 = vunpack.c.l.b16 %v1129
  %v1258 = vunpack.c.l.b16 %v1130
  %v1259 = vunpack.c.l.b16 %v1131
  %v1260 = vunpack.c.l.b16 %v1132
  %v1261 = vunpack.c.l.b16 %v1133
  %v1262 = vunpack.c.l.b16 %v1134
  %v1263 = vunpack.c.l.b16 %v1135
  %v1264 = vunpack.c.l.b16 %v1136
  %v1265 = vunpack.c.l.b16 %v1137
  %v1266 = vunpack.c.l.b16 %v1138
  %v1267 = vunpack.c.l.b16 %v1139
  %v1268 = vunpack.c.l.b16 %v1140
  %v1269 = vunpack.c.l.b16 %v1141
  %v1270 = vunpack.c.l.b16 %v1142
  %v1271 = vunpack.c.l.b16 %v1143
  %v1272 = vunpack.c.l.b16 %v1144
  %v1273 = vunpack.c.l.b16 %v1145
  %v1274 = vunpack.c.l.b16 %v1146
  %v1275 = vunpack.c.l.b16 %v1147
  %v1276 = vunpack.c.l.b16 %v1148
  %v1277 = vunpack.c.l.b16 %v1149
  %v1278 = vunpack.c.l.b16 %v1150
  %v1279 = vunpack.c.l.b16 %v1151
  %v1280 = vunpack.c.l.b16 %v1152
  %v1281 = vunpack.c.l.b16 %v1153
  %v1282 = vunpack.c.l.b16 %v1154
  %v1283 = vunpack.c.l.b16 %v1155
  %v1284 = vunpack.c.l.b16 %v1156
  %v1285 = vunpack.c.l.b16 %v1157
  %v1286 = vunpack.c.l.b16 %v1158
  %v1287 = vunpack.c.l.b16 %v1159
  %v1288 = vunpack.c.l.b16 %v1160
  %v1289 = vunpack.c.l.b16 %v1161
  %v1290 = vunpack.c.l.b16 %v1162
  %v1291 = vunpack.c.l.b16 %v1163
  %v1292 = vpack.c.b16 %v1229, %v1228
  %v1293 = vpack.c.b16 %v1231, %v1230
  %v1294 = vpack.c.b16 %v1233, %v1232
  %v1295 = vpack.c.b16 %v1235, %v1234
  %v1296 = vpack.c.b16 %v1237, %v1236
  %v1297 = vpack.c.b16 %v1239, %v1238
  %v1298 = vpack.c.b16 %v1241, %v1240
  %v1299 = vpack.c.b16 %v1243, %v1242
  %v1300 = vpack.c.b16 %v1245, %v1244
  %v1301 = vpack.c.b16 %v1247, %v1246
  %v1302 = vpack.c.b16 %v1249, %v1248
  %v1303 = vpack.c.b16 %v1251, %v1250
  %v1304 = vpack.c.b16 %v1253, %v1252
  %v1305 = vpack.c.b16 %v1255, %v1254
  %v1306 = vpack.c.b16 %v1257, %v1256
  %v1307 = vpack.c.b16 %v1259, %v1258
  %v1308 = vpack.c.b16 %v1261, %v1260
  %v1309 = vpack.c.b16 %v1263, %v1262
  %v1310 = vpack.c.b16 %v1265, %v1264
  %v1311 = vpack.c.b16 %v1267, %v1266
  %v1312 = vpack.c.b16 %v1269, %v1268
  %v1313 = vpack.c.b16 %v1271, %v1270
  %v1314 = vpack.c.b16 %v1273, %v1272
  %v1315 = vpack.c.b16 %v1275, %v1274
  %v1316 = vpack.c.b16 %v1277, %v1276
  %v1317 = vpack.c.b16 %v1279, %v1278
  %v1318 = vpack.c.b16 %v1281, %v1280
  %v1319 = vpack.c.b16 %v1283, %v1282
  %v1320 = vpack.c.b16 %v1285, %v1284
  %v1321 = vpack.c.b16 %v1287, %v1286
  %v1322 = vpack.c.b16 %v1289, %v1288
  %v1323 = vpack.c.b16 %v1291, %v1290
  %1356 = vmatpush.bf16.msra.mxu0 %v1299
  %1357 = vmatpush.bf16.msra.mxu0 %v1298
  %1358 = vmatpush.bf16.msra.mxu0 %v1297
  %1359 = vmatpush.bf16.msra.mxu0 %v1296
  %1360 = vmatpush.bf16.msra.mxu0 %v1295
  %1361 = vmatpush.bf16.msra.mxu0 %v1294
  %1362 = vmatpush.bf16.msra.mxu0 %v1293
  %1363 = vmatpush.bf16.msra.mxu0 %v1292
  %1364 = vmatmul.bf16.gmra.mxu0 %v1096
  %v1365 = vpop.f32.mrf.mxu0
  %v1366 = vadd.f32 0.0, %v1365
  %v1367 = vpop.f32.mrf.mxu0
  %v1368 = vadd.f32 0.0, %v1367
  %1369 = vdwg.mxu0
  %1370 = vmatpush.bf16.msra.mxu0 %v1307
  %1371 = vmatpush.bf16.msra.mxu0 %v1306
  %1372 = vmatpush.bf16.msra.mxu0 %v1305
  %1373 = vmatpush.bf16.msra.mxu0 %v1304
  %1374 = vmatpush.bf16.msra.mxu0 %v1303
  %1375 = vmatpush.bf16.msra.mxu0 %v1302
  %1376 = vmatpush.bf16.msra.mxu0 %v1301
  %1377 = vmatpush.bf16.msra.mxu0 %v1300
  %1378 = vmatmul.bf16.gmra.mxu0 %v1097
  %v1379 = vpop.f32.mrf.mxu0
  %v1380 = vadd.f32 %v1366, %v1379
  %v1381 = vpop.f32.mrf.mxu0
  %v1382 = vadd.f32 %v1368, %v1381
  %1383 = vdwg.mxu0
  %1384 = vmatpush.bf16.msra.mxu0 %v1315
  %1385 = vmatpush.bf16.msra.mxu0 %v1314
  %1386 = vmatpush.bf16.msra.mxu0 %v1313
  %1387 = vmatpush.bf16.msra.mxu0 %v1312
  %1388 = vmatpush.bf16.msra.mxu0 %v1311
  %1389 = vmatpush.bf16.msra.mxu0 %v1310
  %1390 = vmatpush.bf16.msra.mxu0 %v1309
  %1391 = vmatpush.bf16.msra.mxu0 %v1308
  %1392 = vmatmul.bf16.gmra.mxu0 %v1098
  %v1393 = vpop.f32.mrf.mxu0
  %v1394 = vadd.f32 %v1380, %v1393
  %v1395 = vpop.f32.mrf.mxu0
  %v1396 = vadd.f32 %v1382, %v1395
  %1397 = vdwg.mxu0
  %1398 = vmatpush.bf16.msra.mxu0 %v1323
  %1399 = vmatpush.bf16.msra.mxu0 %v1322
  %1400 = vmatpush.bf16.msra.mxu0 %v1321
  %1401 = vmatpush.bf16.msra.mxu0 %v1320
  %1402 = vmatpush.bf16.msra.mxu0 %v1319
  %1403 = vmatpush.bf16.msra.mxu0 %v1318
  %1404 = vmatpush.bf16.msra.mxu0 %v1317
  %1405 = vmatpush.bf16.msra.mxu0 %v1316
  %1406 = vmatmul.bf16.gmra.mxu0 %v1099
  %v1407 = vpop.f32.mrf.mxu0
  %v1408 = vadd.f32 %v1394, %v1407
  %v1409 = vpop.f32.mrf.mxu0
  %v1410 = vadd.f32 %v1396, %v1409
  %1411 = vdwg.mxu0
  %v1476 = vunpack.c.l.b16 %v909
  %v1477 = vunpack.c.l.b16 %v910
  %v1478 = vunpack.c.l.b16 %v911
  %v1479 = vunpack.c.l.b16 %v912
  %v1480 = vunpack.c.l.b16 %v913
  %v1481 = vunpack.c.l.b16 %v914
  %v1482 = vunpack.c.l.b16 %v915
  %v1483 = vunpack.c.l.b16 %v916
  %v1484 = vunpack.c.l.b16 %v917
  %v1485 = vunpack.c.l.b16 %v918
  %v1486 = vunpack.c.l.b16 %v919
  %v1487 = vunpack.c.l.b16 %v920
  %v1488 = vunpack.c.l.b16 %v921
  %v1489 = vunpack.c.l.b16 %v922
  %v1490 = vunpack.c.l.b16 %v923
  %v1491 = vunpack.c.l.b16 %v924
  %v1492 = vunpack.c.l.b16 %v925
  %v1493 = vunpack.c.l.b16 %v926
  %v1494 = vunpack.c.l.b16 %v927
  %v1495 = vunpack.c.l.b16 %v928
  %v1496 = vunpack.c.l.b16 %v929
  %v1497 = vunpack.c.l.b16 %v930
  %v1498 = vunpack.c.l.b16 %v931
  %v1499 = vunpack.c.l.b16 %v932
  %v1500 = vunpack.c.l.b16 %v933
  %v1501 = vunpack.c.l.b16 %v934
  %v1502 = vunpack.c.l.b16 %v935
  %v1503 = vunpack.c.l.b16 %v936
  %v1504 = vunpack.c.l.b16 %v937
  %v1505 = vunpack.c.l.b16 %v938
  %v1506 = vunpack.c.l.b16 %v939
  %v1507 = vunpack.c.l.b16 %v940
  %v1508 = vunpack.c.l.b16 %v941
  %v1509 = vunpack.c.l.b16 %v942
  %v1510 = vunpack.c.l.b16 %v943
  %v1511 = vunpack.c.l.b16 %v944
  %v1512 = vunpack.c.l.b16 %v945
  %v1513 = vunpack.c.l.b16 %v946
  %v1514 = vunpack.c.l.b16 %v947
  %v1515 = vunpack.c.l.b16 %v948
  %v1516 = vunpack.c.l.b16 %v949
  %v1517 = vunpack.c.l.b16 %v950
  %v1518 = vunpack.c.l.b16 %v951
  %v1519 = vunpack.c.l.b16 %v952
  %v1520 = vunpack.c.l.b16 %v953
  %v1521 = vunpack.c.l.b16 %v954
  %v1522 = vunpack.c.l.b16 %v955
  %v1523 = vunpack.c.l.b16 %v956
  %v1524 = vunpack.c.l.b16 %v957
  %v1525 = vunpack.c.l.b16 %v958
  %v1526 = vunpack.c.l.b16 %v959
  %v1527 = vunpack.c.l.b16 %v960
  %v1528 = vunpack.c.l.b16 %v961
  %v1529 = vunpack.c.l.b16 %v962
  %v1530 = vunpack.c.l.b16 %v963
  %v1531 = vunpack.c.l.b16 %v964
  %v1532 = vunpack.c.l.b16 %v965
  %v1533 = vunpack.c.l.b16 %v966
  %v1534 = vunpack.c.l.b16 %v967
  %v1535 = vunpack.c.l.b16 %v968
  %v1536 = vunpack.c.l.b16 %v969
  %v1537 = vunpack.c.l.b16 %v970
  %v1538 = vunpack.c.l.b16 %v971
  %v1539 = vunpack.c.l.b16 %v972
  %v1540 = vpack.c.b16 %v1477, %v1476
  %v1541 = vpack.c.b16 %v1479, %v1478
  %v1542 = vpack.c.b16 %v1481, %v1480
  %v1543 = vpack.c.b16 %v1483, %v1482
  %v1544 = vpack.c.b16 %v1485, %v1484
  %v1545 = vpack.c.b16 %v1487, %v1486
  %v1546 = vpack.c.b16 %v1489, %v1488
  %v1547 = vpack.c.b16 %v1491, %v1490
  %v1548 = vpack.c.b16 %v1493, %v1492
  %v1549 = vpack.c.b16 %v1495, %v1494
  %v1550 = vpack.c.b16 %v1497, %v1496
  %v1551 = vpack.c.b16 %v1499, %v1498
  %v1552 = vpack.c.b16 %v1501, %v1500
  %v1553 = vpack.c.b16 %v1503, %v1502
  %v1554 = vpack.c.b16 %v1505, %v1504
  %v1555 = vpack.c.b16 %v1507, %v1506
  %v1556 = vpack.c.b16 %v1509, %v1508
  %v1557 = vpack.c.b16 %v1511, %v1510
  %v1558 = vpack.c.b16 %v1513, %v1512
  %v1559 = vpack.c.b16 %v1515, %v1514
  %v1560 = vpack.c.b16 %v1517, %v1516
  %v1561 = vpack.c.b16 %v1519, %v1518
  %v1562 = vpack.c.b16 %v1521, %v1520
  %v1563 = vpack.c.b16 %v1523, %v1522
  %v1564 = vpack.c.b16 %v1525, %v1524
  %v1565 = vpack.c.b16 %v1527, %v1526
  %v1566 = vpack.c.b16 %v1529, %v1528
  %v1567 = vpack.c.b16 %v1531, %v1530
  %v1568 = vpack.c.b16 %v1533, %v1532
  %v1569 = vpack.c.b16 %v1535, %v1534
  %v1570 = vpack.c.b16 %v1537, %v1536
  %v1571 = vpack.c.b16 %v1539, %v1538
  %1604 = vmatpush.bf16.msra.mxu0 %v1547
  %1605 = vmatpush.bf16.msra.mxu0 %v1546
  %1606 = vmatpush.bf16.msra.mxu0 %v1545
  %1607 = vmatpush.bf16.msra.mxu0 %v1544
  %1608 = vmatpush.bf16.msra.mxu0 %v1543
  %1609 = vmatpush.bf16.msra.mxu0 %v1542
  %1610 = vmatpush.bf16.msra.mxu0 %v1541
  %1611 = vmatpush.bf16.msra.mxu0 %v1540
  %1612 = vmatmul.bf16.gmra.mxu0 %v905
  %v1613 = vpop.f32.mrf.mxu0
  %v1614 = vadd.f32 %v1408, %v1613
  %v1615 = vpop.f32.mrf.mxu0
  %v1616 = vadd.f32 %v1410, %v1615
  %1617 = vdwg.mxu0
  %1618 = vmatpush.bf16.msra.mxu0 %v1555
  %1619 = vmatpush.bf16.msra.mxu0 %v1554
  %1620 = vmatpush.bf16.msra.mxu0 %v1553
  %1621 = vmatpush.bf16.msra.mxu0 %v1552
  %1622 = vmatpush.bf16.msra.mxu0 %v1551
  %1623 = vmatpush.bf16.msra.mxu0 %v1550
  %1624 = vmatpush.bf16.msra.mxu0 %v1549
  %1625 = vmatpush.bf16.msra.mxu0 %v1548
  %1626 = vmatmul.bf16.gmra.mxu0 %v906
  %v1627 = vpop.f32.mrf.mxu0
  %v1628 = vadd.f32 %v1614, %v1627
  %v1629 = vpop.f32.mrf.mxu0
  %v1630 = vadd.f32 %v1616, %v1629
  %1631 = vdwg.mxu0
  %1632 = vmatpush.bf16.msra.mxu0 %v1563
  %1633 = vmatpush.bf16.msra.mxu0 %v1562
  %1634 = vmatpush.bf16.msra.mxu0 %v1561
  %1635 = vmatpush.bf16.msra.mxu0 %v1560
  %1636 = vmatpush.bf16.msra.mxu0 %v1559
  %1637 = vmatpush.bf16.msra.mxu0 %v1558
  %1638 = vmatpush.bf16.msra.mxu0 %v1557
  %1639 = vmatpush.bf16.msra.mxu0 %v1556
  %1640 = vmatmul.bf16.gmra.mxu0 %v907
  %v1641 = vpop.f32.mrf.mxu0
  %v1642 = vadd.f32 %v1628, %v1641
  %v1643 = vpop.f32.mrf.mxu0
  %v1644 = vadd.f32 %v1630, %v1643
  %1645 = vdwg.mxu0
  %1646 = vmatpush.bf16.msra.mxu0 %v1571
  %1647 = vmatpush.bf16.msra.mxu0 %v1570
  %1648 = vmatpush.bf16.msra.mxu0 %v1569
  %1649 = vmatpush.bf16.msra.mxu0 %v1568
  %1650 = vmatpush.bf16.msra.mxu0 %v1567
  %1651 = vmatpush.bf16.msra.mxu0 %v1566
  %1652 = vmatpush.bf16.msra.mxu0 %v1565
  %1653 = vmatpush.bf16.msra.mxu0 %v1564
  %1654 = vmatmul.bf16.gmra.mxu0 %v908
  %v1655 = vpop.f32.mrf.mxu0
  %v1656 = vadd.f32 %v1642, %v1655
  %v1657 = vpop.f32.mrf.mxu0
  %v1658 = vadd.f32 %v1644, %v1657
  %1659 = vdwg.mxu0
  %v1660 = vld [vmem:[%s4 + $0x20] sm:$0xff]
  %v1661 = vld [vmem:[%s4 + $0x28] sm:$0xff]
  %v1662 = vld [vmem:[%s4 + $0x60] sm:$0xff]
  %v1663 = vld [vmem:[%s4 + $0x68] sm:$0xff]
  %v1664 = vld [vmem:[%s4 + $0xa0] sm:$0xff]
  %v1665 = vld [vmem:[%s4 + $0xa8] sm:$0xff]
  %v1666 = vld [vmem:[%s4 + $0xe0] sm:$0xff]
  %v1667 = vld [vmem:[%s4 + $0xe8] sm:$0xff]
  %s1668 = scalar_lea.vmem %s1, 66
  %v1669 = vld [vmem:[%s1668] ss:$8 sm:$0xf]
  %v1671 = vperm.slane %v1669, 0
  %v1672 = vperm.slane %v1669, 1
  %v1673 = vperm.slane %v1669, 2
  %v1674 = vperm.slane %v1669, 3
  %v1687 = vunpack.c.l.b16 %v1660
  %v1688 = vunpack.c.h.b16 %v1660
  %v1689 = vunpack.c.l.b16 %v1661
  %v1690 = vunpack.c.h.b16 %v1661
  %v1691 = vunpack.c.l.b16 %v1662
  %v1692 = vunpack.c.h.b16 %v1662
  %v1693 = vunpack.c.l.b16 %v1663
  %v1694 = vunpack.c.h.b16 %v1663
  %v1695 = vunpack.c.l.b16 %v1664
  %v1696 = vunpack.c.h.b16 %v1664
  %v1697 = vunpack.c.l.b16 %v1665
  %v1698 = vunpack.c.h.b16 %v1665
  %v1699 = vunpack.c.l.b16 %v1666
  %v1700 = vunpack.c.h.b16 %v1666
  %v1701 = vunpack.c.l.b16 %v1667
  %v1702 = vunpack.c.h.b16 %v1667
  %v1703 = vpack.c.b16 %v1691, %v1687
  %v1704 = vpack.c.b16 %v1692, %v1688
  %v1705 = vpack.c.b16 %v1693, %v1689
  %v1706 = vpack.c.b16 %v1694, %v1690
  %v1707 = vpack.c.b16 %v1699, %v1695
  %v1708 = vpack.c.b16 %v1700, %v1696
  %v1709 = vpack.c.b16 %v1701, %v1697
  %v1710 = vpack.c.b16 %v1702, %v1698
  %1719 = vmatpush.bf16.msra.mxu0 0
  %1720 = vmatpush.bf16.msra.mxu0 0
  %1721 = vmatpush.bf16.msra.mxu0 0
  %1722 = vmatpush.bf16.msra.mxu0 0
  %1723 = vmatpush.bf16.msra.mxu0 0
  %1724 = vmatpush.bf16.msra.mxu0 0
  %1725 = vmatpush.bf16.msra.mxu0 %v1707
  %1726 = vmatpush.bf16.msra.mxu0 %v1703
  %1727 = vmatmul.bf16.gmra.mxu0 %v839
  %v1728 = vpop.f32.mrf.mxu0
  %v1729 = vadd.f32 %v1671, %v1728
  %v1730 = vpop.f32.mrf.mxu0
  %v1731 = vadd.f32 %v1671, %v1730
  %1732 = vdwg.mxu0
  %1733 = vmatpush.bf16.msra.mxu0 0
  %1734 = vmatpush.bf16.msra.mxu0 0
  %1735 = vmatpush.bf16.msra.mxu0 0
  %1736 = vmatpush.bf16.msra.mxu0 0
  %1737 = vmatpush.bf16.msra.mxu0 0
  %1738 = vmatpush.bf16.msra.mxu0 0
  %1739 = vmatpush.bf16.msra.mxu0 %v1708
  %1740 = vmatpush.bf16.msra.mxu0 %v1704
  %1741 = vmatmul.bf16.gmra.mxu0 %v839
  %v1742 = vpop.f32.mrf.mxu0
  %v1743 = vadd.f32 %v1672, %v1742
  %v1744 = vpop.f32.mrf.mxu0
  %v1745 = vadd.f32 %v1672, %v1744
  %1746 = vdwg.mxu0
  %1747 = vmatpush.bf16.msra.mxu0 0
  %1748 = vmatpush.bf16.msra.mxu0 0
  %1749 = vmatpush.bf16.msra.mxu0 0
  %1750 = vmatpush.bf16.msra.mxu0 0
  %1751 = vmatpush.bf16.msra.mxu0 0
  %1752 = vmatpush.bf16.msra.mxu0 0
  %1753 = vmatpush.bf16.msra.mxu0 %v1709
  %1754 = vmatpush.bf16.msra.mxu0 %v1705
  %1755 = vmatmul.bf16.gmra.mxu0 %v839
  %v1756 = vpop.f32.mrf.mxu0
  %v1757 = vadd.f32 %v1673, %v1756
  %v1758 = vpop.f32.mrf.mxu0
  %v1759 = vadd.f32 %v1673, %v1758
  %1760 = vdwg.mxu0
  %1761 = vmatpush.bf16.msra.mxu0 0
  %1762 = vmatpush.bf16.msra.mxu0 0
  %1763 = vmatpush.bf16.msra.mxu0 0
  %1764 = vmatpush.bf16.msra.mxu0 0
  %1765 = vmatpush.bf16.msra.mxu0 0
  %1766 = vmatpush.bf16.msra.mxu0 0
  %1767 = vmatpush.bf16.msra.mxu0 %v1710
  %1768 = vmatpush.bf16.msra.mxu0 %v1706
  %1769 = vmatmul.bf16.gmra.mxu0 %v839
  %v1770 = vpop.f32.mrf.mxu0
  %v1771 = vadd.f32 %v1674, %v1770
  %v1772 = vpop.f32.mrf.mxu0
  %v1773 = vadd.f32 %v1674, %v1772
  %1774 = vdwg.mxu0
  %v1775 = vmax.f32 %v1729, 0.0
  %v1776 = vmax.f32 %v1743, 0.0
  %v1777 = vmax.f32 %v1757, 0.0
  %v1778 = vmax.f32 %v1771, 0.0
  %v1779 = vmax.f32 %v1731, 0.0
  %v1780 = vmax.f32 %v1745, 0.0
  %v1781 = vmax.f32 %v1759, 0.0
  %v1782 = vmax.f32 %v1773, 0.0
  %v1783 = vpack.c.bf16 %v1779, %v1775
  %v1784 = vpack.c.bf16 %v1780, %v1776
  %v1785 = vpack.c.bf16 %v1781, %v1777
  %v1786 = vpack.c.bf16 %v1782, %v1778
  %v1787 = vld [vmem:[%s5 + $0x200] sm:$0xf]
  %v1788 = vld [vmem:[%s5 + $0x204] sm:$0xf]
  %v1789 = vld [vmem:[%s5 + $0x208] sm:$0xf]
  %v1790 = vld [vmem:[%s5 + $0x20c] sm:$0xf]
  %v1791 = vld [vmem:[%s5 + $0x210] sm:$0xf]
  %v1792 = vld [vmem:[%s5 + $0x214] sm:$0xf]
  %v1793 = vld [vmem:[%s5 + $0x218] sm:$0xf]
  %v1794 = vld [vmem:[%s5 + $0x21c] sm:$0xf]
  %v1795 = vld [vmem:[%s5 + $0x220] sm:$0xf]
  %v1796 = vld [vmem:[%s5 + $0x224] sm:$0xf]
  %v1797 = vld [vmem:[%s5 + $0x228] sm:$0xf]
  %v1798 = vld [vmem:[%s5 + $0x22c] sm:$0xf]
  %v1799 = vld [vmem:[%s5 + $0x230] sm:$0xf]
  %v1800 = vld [vmem:[%s5 + $0x234] sm:$0xf]
  %v1801 = vld [vmem:[%s5 + $0x238] sm:$0xf]
  %v1802 = vld [vmem:[%s5 + $0x23c] sm:$0xf]
  %v1803 = vld [vmem:[%s5 + $0x240] sm:$0xf]
  %v1804 = vld [vmem:[%s5 + $0x244] sm:$0xf]
  %v1805 = vld [vmem:[%s5 + $0x248] sm:$0xf]
  %v1806 = vld [vmem:[%s5 + $0x24c] sm:$0xf]
  %v1807 = vld [vmem:[%s5 + $0x250] sm:$0xf]
  %v1808 = vld [vmem:[%s5 + $0x254] sm:$0xf]
  %v1809 = vld [vmem:[%s5 + $0x258] sm:$0xf]
  %v1810 = vld [vmem:[%s5 + $0x25c] sm:$0xf]
  %v1811 = vld [vmem:[%s5 + $0x260] sm:$0xf]
  %v1812 = vld [vmem:[%s5 + $0x264] sm:$0xf]
  %v1813 = vld [vmem:[%s5 + $0x268] sm:$0xf]
  %v1814 = vld [vmem:[%s5 + $0x26c] sm:$0xf]
  %v1815 = vld [vmem:[%s5 + $0x270] sm:$0xf]
  %v1816 = vld [vmem:[%s5 + $0x274] sm:$0xf]
  %v1817 = vld [vmem:[%s5 + $0x278] sm:$0xf]
  %v1818 = vld [vmem:[%s5 + $0x27c] sm:$0xf]
  %v1819 = vld [vmem:[%s5 + $0x280] sm:$0xf]
  %v1820 = vld [vmem:[%s5 + $0x284] sm:$0xf]
  %v1821 = vld [vmem:[%s5 + $0x288] sm:$0xf]
  %v1822 = vld [vmem:[%s5 + $0x28c] sm:$0xf]
  %v1823 = vld [vmem:[%s5 + $0x290] sm:$0xf]
  %v1824 = vld [vmem:[%s5 + $0x294] sm:$0xf]
  %v1825 = vld [vmem:[%s5 + $0x298] sm:$0xf]
  %v1826 = vld [vmem:[%s5 + $0x29c] sm:$0xf]
  %v1827 = vld [vmem:[%s5 + $0x2a0] sm:$0xf]
  %v1828 = vld [vmem:[%s5 + $0x2a4] sm:$0xf]
  %v1829 = vld [vmem:[%s5 + $0x2a8] sm:$0xf]
  %v1830 = vld [vmem:[%s5 + $0x2ac] sm:$0xf]
  %v1831 = vld [vmem:[%s5 + $0x2b0] sm:$0xf]
  %v1832 = vld [vmem:[%s5 + $0x2b4] sm:$0xf]
  %v1833 = vld [vmem:[%s5 + $0x2b8] sm:$0xf]
  %v1834 = vld [vmem:[%s5 + $0x2bc] sm:$0xf]
  %v1835 = vld [vmem:[%s5 + $0x2c0] sm:$0xf]
  %v1836 = vld [vmem:[%s5 + $0x2c4] sm:$0xf]
  %v1837 = vld [vmem:[%s5 + $0x2c8] sm:$0xf]
  %v1838 = vld [vmem:[%s5 + $0x2cc] sm:$0xf]
  %v1839 = vld [vmem:[%s5 + $0x2d0] sm:$0xf]
  %v1840 = vld [vmem:[%s5 + $0x2d4] sm:$0xf]
  %v1841 = vld [vmem:[%s5 + $0x2d8] sm:$0xf]
  %v1842 = vld [vmem:[%s5 + $0x2dc] sm:$0xf]
  %v1843 = vld [vmem:[%s5 + $0x2e0] sm:$0xf]
  %v1844 = vld [vmem:[%s5 + $0x2e4] sm:$0xf]
  %v1845 = vld [vmem:[%s5 + $0x2e8] sm:$0xf]
  %v1846 = vld [vmem:[%s5 + $0x2ec] sm:$0xf]
  %v1847 = vld [vmem:[%s5 + $0x2f0] sm:$0xf]
  %v1848 = vld [vmem:[%s5 + $0x2f4] sm:$0xf]
  %v1849 = vld [vmem:[%s5 + $0x2f8] sm:$0xf]
  %v1850 = vld [vmem:[%s5 + $0x2fc] sm:$0xf]
  %v1915 = vunpack.c.l.b16 %v1787
  %v1916 = vunpack.c.l.b16 %v1788
  %v1917 = vunpack.c.l.b16 %v1789
  %v1918 = vunpack.c.l.b16 %v1790
  %v1919 = vunpack.c.l.b16 %v1791
  %v1920 = vunpack.c.l.b16 %v1792
  %v1921 = vunpack.c.l.b16 %v1793
  %v1922 = vunpack.c.l.b16 %v1794
  %v1923 = vunpack.c.l.b16 %v1795
  %v1924 = vunpack.c.l.b16 %v1796
  %v1925 = vunpack.c.l.b16 %v1797
  %v1926 = vunpack.c.l.b16 %v1798
  %v1927 = vunpack.c.l.b16 %v1799
  %v1928 = vunpack.c.l.b16 %v1800
  %v1929 = vunpack.c.l.b16 %v1801
  %v1930 = vunpack.c.l.b16 %v1802
  %v1931 = vunpack.c.l.b16 %v1803
  %v1932 = vunpack.c.l.b16 %v1804
  %v1933 = vunpack.c.l.b16 %v1805
  %v1934 = vunpack.c.l.b16 %v1806
  %v1935 = vunpack.c.l.b16 %v1807
  %v1936 = vunpack.c.l.b16 %v1808
  %v1937 = vunpack.c.l.b16 %v1809
  %v1938 = vunpack.c.l.b16 %v1810
  %v1939 = vunpack.c.l.b16 %v1811
  %v1940 = vunpack.c.l.b16 %v1812
  %v1941 = vunpack.c.l.b16 %v1813
  %v1942 = vunpack.c.l.b16 %v1814
  %v1943 = vunpack.c.l.b16 %v1815
  %v1944 = vunpack.c.l.b16 %v1816
  %v1945 = vunpack.c.l.b16 %v1817
  %v1946 = vunpack.c.l.b16 %v1818
  %v1947 = vunpack.c.l.b16 %v1819
  %v1948 = vunpack.c.l.b16 %v1820
  %v1949 = vunpack.c.l.b16 %v1821
  %v1950 = vunpack.c.l.b16 %v1822
  %v1951 = vunpack.c.l.b16 %v1823
  %v1952 = vunpack.c.l.b16 %v1824
  %v1953 = vunpack.c.l.b16 %v1825
  %v1954 = vunpack.c.l.b16 %v1826
  %v1955 = vunpack.c.l.b16 %v1827
  %v1956 = vunpack.c.l.b16 %v1828
  %v1957 = vunpack.c.l.b16 %v1829
  %v1958 = vunpack.c.l.b16 %v1830
  %v1959 = vunpack.c.l.b16 %v1831
  %v1960 = vunpack.c.l.b16 %v1832
  %v1961 = vunpack.c.l.b16 %v1833
  %v1962 = vunpack.c.l.b16 %v1834
  %v1963 = vunpack.c.l.b16 %v1835
  %v1964 = vunpack.c.l.b16 %v1836
  %v1965 = vunpack.c.l.b16 %v1837
  %v1966 = vunpack.c.l.b16 %v1838
  %v1967 = vunpack.c.l.b16 %v1839
  %v1968 = vunpack.c.l.b16 %v1840
  %v1969 = vunpack.c.l.b16 %v1841
  %v1970 = vunpack.c.l.b16 %v1842
  %v1971 = vunpack.c.l.b16 %v1843
  %v1972 = vunpack.c.l.b16 %v1844
  %v1973 = vunpack.c.l.b16 %v1845
  %v1974 = vunpack.c.l.b16 %v1846
  %v1975 = vunpack.c.l.b16 %v1847
  %v1976 = vunpack.c.l.b16 %v1848
  %v1977 = vunpack.c.l.b16 %v1849
  %v1978 = vunpack.c.l.b16 %v1850
  %v1979 = vpack.c.b16 %v1916, %v1915
  %v1980 = vpack.c.b16 %v1918, %v1917
  %v1981 = vpack.c.b16 %v1920, %v1919
  %v1982 = vpack.c.b16 %v1922, %v1921
  %v1983 = vpack.c.b16 %v1924, %v1923
  %v1984 = vpack.c.b16 %v1926, %v1925
  %v1985 = vpack.c.b16 %v1928, %v1927
  %v1986 = vpack.c.b16 %v1930, %v1929
  %v1987 = vpack.c.b16 %v1932, %v1931
  %v1988 = vpack.c.b16 %v1934, %v1933
  %v1989 = vpack.c.b16 %v1936, %v1935
  %v1990 = vpack.c.b16 %v1938, %v1937
  %v1991 = vpack.c.b16 %v1940, %v1939
  %v1992 = vpack.c.b16 %v1942, %v1941
  %v1993 = vpack.c.b16 %v1944, %v1943
  %v1994 = vpack.c.b16 %v1946, %v1945
  %v1995 = vpack.c.b16 %v1948, %v1947
  %v1996 = vpack.c.b16 %v1950, %v1949
  %v1997 = vpack.c.b16 %v1952, %v1951
  %v1998 = vpack.c.b16 %v1954, %v1953
  %v1999 = vpack.c.b16 %v1956, %v1955
  %v2000 = vpack.c.b16 %v1958, %v1957
  %v2001 = vpack.c.b16 %v1960, %v1959
  %v2002 = vpack.c.b16 %v1962, %v1961
  %v2003 = vpack.c.b16 %v1964, %v1963
  %v2004 = vpack.c.b16 %v1966, %v1965
  %v2005 = vpack.c.b16 %v1968, %v1967
  %v2006 = vpack.c.b16 %v1970, %v1969
  %v2007 = vpack.c.b16 %v1972, %v1971
  %v2008 = vpack.c.b16 %v1974, %v1973
  %v2009 = vpack.c.b16 %v1976, %v1975
  %v2010 = vpack.c.b16 %v1978, %v1977
  %2043 = vmatpush.bf16.msra.mxu0 %v1986
  %2044 = vmatpush.bf16.msra.mxu0 %v1985
  %2045 = vmatpush.bf16.msra.mxu0 %v1984
  %2046 = vmatpush.bf16.msra.mxu0 %v1983
  %2047 = vmatpush.bf16.msra.mxu0 %v1982
  %2048 = vmatpush.bf16.msra.mxu0 %v1981
  %2049 = vmatpush.bf16.msra.mxu0 %v1980
  %2050 = vmatpush.bf16.msra.mxu0 %v1979
  %2051 = vmatmul.bf16.gmra.mxu0 %v1783
  %v2052 = vpop.f32.mrf.mxu0
  %v2053 = vadd.f32 0.0, %v2052
  %v2054 = vpop.f32.mrf.mxu0
  %v2055 = vadd.f32 0.0, %v2054
  %2056 = vdwg.mxu0
  %2057 = vmatpush.bf16.msra.mxu0 %v1994
  %2058 = vmatpush.bf16.msra.mxu0 %v1993
  %2059 = vmatpush.bf16.msra.mxu0 %v1992
  %2060 = vmatpush.bf16.msra.mxu0 %v1991
  %2061 = vmatpush.bf16.msra.mxu0 %v1990
  %2062 = vmatpush.bf16.msra.mxu0 %v1989
  %2063 = vmatpush.bf16.msra.mxu0 %v1988
  %2064 = vmatpush.bf16.msra.mxu0 %v1987
  %2065 = vmatmul.bf16.gmra.mxu0 %v1784
  %v2066 = vpop.f32.mrf.mxu0
  %v2067 = vadd.f32 %v2053, %v2066
  %v2068 = vpop.f32.mrf.mxu0
  %v2069 = vadd.f32 %v2055, %v2068
  %2070 = vdwg.mxu0
  %2071 = vmatpush.bf16.msra.mxu0 %v2002
  %2072 = vmatpush.bf16.msra.mxu0 %v2001
  %2073 = vmatpush.bf16.msra.mxu0 %v2000
  %2074 = vmatpush.bf16.msra.mxu0 %v1999
  %2075 = vmatpush.bf16.msra.mxu0 %v1998
  %2076 = vmatpush.bf16.msra.mxu0 %v1997
  %2077 = vmatpush.bf16.msra.mxu0 %v1996
  %2078 = vmatpush.bf16.msra.mxu0 %v1995
  %2079 = vmatmul.bf16.gmra.mxu0 %v1785
  %v2080 = vpop.f32.mrf.mxu0
  %v2081 = vadd.f32 %v2067, %v2080
  %v2082 = vpop.f32.mrf.mxu0
  %v2083 = vadd.f32 %v2069, %v2082
  %2084 = vdwg.mxu0
  %2085 = vmatpush.bf16.msra.mxu0 %v2010
  %2086 = vmatpush.bf16.msra.mxu0 %v2009
  %2087 = vmatpush.bf16.msra.mxu0 %v2008
  %2088 = vmatpush.bf16.msra.mxu0 %v2007
  %2089 = vmatpush.bf16.msra.mxu0 %v2006
  %2090 = vmatpush.bf16.msra.mxu0 %v2005
  %2091 = vmatpush.bf16.msra.mxu0 %v2004
  %2092 = vmatpush.bf16.msra.mxu0 %v2003
  %2093 = vmatmul.bf16.gmra.mxu0 %v1786
  %v2094 = vpop.f32.mrf.mxu0
  %v2095 = vadd.f32 %v2081, %v2094
  %v2096 = vpop.f32.mrf.mxu0
  %v2097 = vadd.f32 %v2083, %v2096
  %2098 = vdwg.mxu0
  %v2099 = vadd.f32 %v1656, %v2095
  %v2100 = vadd.f32 %v1658, %v2097
  %v2101 = vld [vmem:[%s4 + $0x30] sm:$0xff]
  %v2102 = vld [vmem:[%s4 + $0x38] sm:$0xff]
  %v2103 = vld [vmem:[%s4 + $0x70] sm:$0xff]
  %v2104 = vld [vmem:[%s4 + $0x78] sm:$0xff]
  %v2105 = vld [vmem:[%s4 + $0xb0] sm:$0xff]
  %v2106 = vld [vmem:[%s4 + $0xb8] sm:$0xff]
  %v2107 = vld [vmem:[%s4 + $0xf0] sm:$0xff]
  %v2108 = vld [vmem:[%s4 + $0xf8] sm:$0xff]
  %s2109 = scalar_lea.vmem %s1, 98
  %v2110 = vld [vmem:[%s2109] ss:$8 sm:$0xf]
  %v2112 = vperm.slane %v2110, 0
  %v2113 = vperm.slane %v2110, 1
  %v2114 = vperm.slane %v2110, 2
  %v2115 = vperm.slane %v2110, 3
  %v2128 = vunpack.c.l.b16 %v2101
  %v2129 = vunpack.c.h.b16 %v2101
  %v2130 = vunpack.c.l.b16 %v2102
  %v2131 = vunpack.c.h.b16 %v2102
  %v2132 = vunpack.c.l.b16 %v2103
  %v2133 = vunpack.c.h.b16 %v2103
  %v2134 = vunpack.c.l.b16 %v2104
  %v2135 = vunpack.c.h.b16 %v2104
  %v2136 = vunpack.c.l.b16 %v2105
  %v2137 = vunpack.c.h.b16 %v2105
  %v2138 = vunpack.c.l.b16 %v2106
  %v2139 = vunpack.c.h.b16 %v2106
  %v2140 = vunpack.c.l.b16 %v2107
  %v2141 = vunpack.c.h.b16 %v2107
  %v2142 = vunpack.c.l.b16 %v2108
  %v2143 = vunpack.c.h.b16 %v2108
  %v2144 = vpack.c.b16 %v2132, %v2128
  %v2145 = vpack.c.b16 %v2133, %v2129
  %v2146 = vpack.c.b16 %v2134, %v2130
  %v2147 = vpack.c.b16 %v2135, %v2131
  %v2148 = vpack.c.b16 %v2140, %v2136
  %v2149 = vpack.c.b16 %v2141, %v2137
  %v2150 = vpack.c.b16 %v2142, %v2138
  %v2151 = vpack.c.b16 %v2143, %v2139
  %2160 = vmatpush.bf16.msra.mxu0 0
  %2161 = vmatpush.bf16.msra.mxu0 0
  %2162 = vmatpush.bf16.msra.mxu0 0
  %2163 = vmatpush.bf16.msra.mxu0 0
  %2164 = vmatpush.bf16.msra.mxu0 0
  %2165 = vmatpush.bf16.msra.mxu0 0
  %2166 = vmatpush.bf16.msra.mxu0 %v2148
  %2167 = vmatpush.bf16.msra.mxu0 %v2144
  %2168 = vmatmul.bf16.gmra.mxu0 %v839
  %v2169 = vpop.f32.mrf.mxu0
  %v2170 = vadd.f32 %v2112, %v2169
  %v2171 = vpop.f32.mrf.mxu0
  %v2172 = vadd.f32 %v2112, %v2171
  %2173 = vdwg.mxu0
  %2174 = vmatpush.bf16.msra.mxu0 0
  %2175 = vmatpush.bf16.msra.mxu0 0
  %2176 = vmatpush.bf16.msra.mxu0 0
  %2177 = vmatpush.bf16.msra.mxu0 0
  %2178 = vmatpush.bf16.msra.mxu0 0
  %2179 = vmatpush.bf16.msra.mxu0 0
  %2180 = vmatpush.bf16.msra.mxu0 %v2149
  %2181 = vmatpush.bf16.msra.mxu0 %v2145
  %2182 = vmatmul.bf16.gmra.mxu0 %v839
  %v2183 = vpop.f32.mrf.mxu0
  %v2184 = vadd.f32 %v2113, %v2183
  %v2185 = vpop.f32.mrf.mxu0
  %v2186 = vadd.f32 %v2113, %v2185
  %2187 = vdwg.mxu0
  %2188 = vmatpush.bf16.msra.mxu0 0
  %2189 = vmatpush.bf16.msra.mxu0 0
  %2190 = vmatpush.bf16.msra.mxu0 0
  %2191 = vmatpush.bf16.msra.mxu0 0
  %2192 = vmatpush.bf16.msra.mxu0 0
  %2193 = vmatpush.bf16.msra.mxu0 0
  %2194 = vmatpush.bf16.msra.mxu0 %v2150
  %2195 = vmatpush.bf16.msra.mxu0 %v2146
  %2196 = vmatmul.bf16.gmra.mxu0 %v839
  %v2197 = vpop.f32.mrf.mxu0
  %v2198 = vadd.f32 %v2114, %v2197
  %v2199 = vpop.f32.mrf.mxu0
  %v2200 = vadd.f32 %v2114, %v2199
  %2201 = vdwg.mxu0
  %2202 = vmatpush.bf16.msra.mxu0 0
  %2203 = vmatpush.bf16.msra.mxu0 0
  %2204 = vmatpush.bf16.msra.mxu0 0
  %2205 = vmatpush.bf16.msra.mxu0 0
  %2206 = vmatpush.bf16.msra.mxu0 0
  %2207 = vmatpush.bf16.msra.mxu0 0
  %2208 = vmatpush.bf16.msra.mxu0 %v2151
  %2209 = vmatpush.bf16.msra.mxu0 %v2147
  %2210 = vmatmul.bf16.gmra.mxu0 %v839
  %v2211 = vpop.f32.mrf.mxu0
  %v2212 = vadd.f32 %v2115, %v2211
  %v2213 = vpop.f32.mrf.mxu0
  %v2214 = vadd.f32 %v2115, %v2213
  %2215 = vdwg.mxu0
  %v2216 = vmax.f32 %v2170, 0.0
  %v2217 = vmax.f32 %v2184, 0.0
  %v2218 = vmax.f32 %v2198, 0.0
  %v2219 = vmax.f32 %v2212, 0.0
  %v2220 = vmax.f32 %v2172, 0.0
  %v2221 = vmax.f32 %v2186, 0.0
  %v2222 = vmax.f32 %v2200, 0.0
  %v2223 = vmax.f32 %v2214, 0.0
  %v2224 = vpack.c.bf16 %v2220, %v2216
  %v2225 = vpack.c.bf16 %v2221, %v2217
  %v2226 = vpack.c.bf16 %v2222, %v2218
  %v2227 = vpack.c.bf16 %v2223, %v2219
  %v2228 = vld [vmem:[%s5 + $0x300] sm:$0xf]
  %v2229 = vld [vmem:[%s5 + $0x304] sm:$0xf]
  %v2230 = vld [vmem:[%s5 + $0x308] sm:$0xf]
  %v2231 = vld [vmem:[%s5 + $0x30c] sm:$0xf]
  %v2232 = vld [vmem:[%s5 + $0x310] sm:$0xf]
  %v2233 = vld [vmem:[%s5 + $0x314] sm:$0xf]
  %v2234 = vld [vmem:[%s5 + $0x318] sm:$0xf]
  %v2235 = vld [vmem:[%s5 + $0x31c] sm:$0xf]
  %v2236 = vld [vmem:[%s5 + $0x320] sm:$0xf]
  %v2237 = vld [vmem:[%s5 + $0x324] sm:$0xf]
  %v2238 = vld [vmem:[%s5 + $0x328] sm:$0xf]
  %v2239 = vld [vmem:[%s5 + $0x32c] sm:$0xf]
  %v2240 = vld [vmem:[%s5 + $0x330] sm:$0xf]
  %v2241 = vld [vmem:[%s5 + $0x334] sm:$0xf]
  %v2242 = vld [vmem:[%s5 + $0x338] sm:$0xf]
  %v2243 = vld [vmem:[%s5 + $0x33c] sm:$0xf]
  %v2244 = vld [vmem:[%s5 + $0x340] sm:$0xf]
  %v2245 = vld [vmem:[%s5 + $0x344] sm:$0xf]
  %v2246 = vld [vmem:[%s5 + $0x348] sm:$0xf]
  %v2247 = vld [vmem:[%s5 + $0x34c] sm:$0xf]
  %v2248 = vld [vmem:[%s5 + $0x350] sm:$0xf]
  %v2249 = vld [vmem:[%s5 + $0x354] sm:$0xf]
  %v2250 = vld [vmem:[%s5 + $0x358] sm:$0xf]
  %v2251 = vld [vmem:[%s5 + $0x35c] sm:$0xf]
  %v2252 = vld [vmem:[%s5 + $0x360] sm:$0xf]
  %v2253 = vld [vmem:[%s5 + $0x364] sm:$0xf]
  %v2254 = vld [vmem:[%s5 + $0x368] sm:$0xf]
  %v2255 = vld [vmem:[%s5 + $0x36c] sm:$0xf]
  %v2256 = vld [vmem:[%s5 + $0x370] sm:$0xf]
  %v2257 = vld [vmem:[%s5 + $0x374] sm:$0xf]
  %v2258 = vld [vmem:[%s5 + $0x378] sm:$0xf]
  %v2259 = vld [vmem:[%s5 + $0x37c] sm:$0xf]
  %v2260 = vld [vmem:[%s5 + $0x380] sm:$0xf]
  %v2261 = vld [vmem:[%s5 + $0x384] sm:$0xf]
  %v2262 = vld [vmem:[%s5 + $0x388] sm:$0xf]
  %v2263 = vld [vmem:[%s5 + $0x38c] sm:$0xf]
  %v2264 = vld [vmem:[%s5 + $0x390] sm:$0xf]
  %v2265 = vld [vmem:[%s5 + $0x394] sm:$0xf]
  %v2266 = vld [vmem:[%s5 + $0x398] sm:$0xf]
  %v2267 = vld [vmem:[%s5 + $0x39c] sm:$0xf]
  %v2268 = vld [vmem:[%s5 + $0x3a0] sm:$0xf]
  %v2269 = vld [vmem:[%s5 + $0x3a4] sm:$0xf]
  %v2270 = vld [vmem:[%s5 + $0x3a8] sm:$0xf]
  %v2271 = vld [vmem:[%s5 + $0x3ac] sm:$0xf]
  %v2272 = vld [vmem:[%s5 + $0x3b0] sm:$0xf]
  %v2273 = vld [vmem:[%s5 + $0x3b4] sm:$0xf]
  %v2274 = vld [vmem:[%s5 + $0x3b8] sm:$0xf]
  %v2275 = vld [vmem:[%s5 + $0x3bc] sm:$0xf]
  %v2276 = vld [vmem:[%s5 + $0x3c0] sm:$0xf]
  %v2277 = vld [vmem:[%s5 + $0x3c4] sm:$0xf]
  %v2278 = vld [vmem:[%s5 + $0x3c8] sm:$0xf]
  %v2279 = vld [vmem:[%s5 + $0x3cc] sm:$0xf]
  %v2280 = vld [vmem:[%s5 + $0x3d0] sm:$0xf]
  %v2281 = vld [vmem:[%s5 + $0x3d4] sm:$0xf]
  %v2282 = vld [vmem:[%s5 + $0x3d8] sm:$0xf]
  %v2283 = vld [vmem:[%s5 + $0x3dc] sm:$0xf]
  %v2284 = vld [vmem:[%s5 + $0x3e0] sm:$0xf]
  %v2285 = vld [vmem:[%s5 + $0x3e4] sm:$0xf]
  %v2286 = vld [vmem:[%s5 + $0x3e8] sm:$0xf]
  %v2287 = vld [vmem:[%s5 + $0x3ec] sm:$0xf]
  %v2288 = vld [vmem:[%s5 + $0x3f0] sm:$0xf]
  %v2289 = vld [vmem:[%s5 + $0x3f4] sm:$0xf]
  %v2290 = vld [vmem:[%s5 + $0x3f8] sm:$0xf]
  %v2291 = vld [vmem:[%s5 + $0x3fc] sm:$0xf]
  %v2356 = vunpack.c.l.b16 %v2228
  %v2357 = vunpack.c.l.b16 %v2229
  %v2358 = vunpack.c.l.b16 %v2230
  %v2359 = vunpack.c.l.b16 %v2231
  %v2360 = vunpack.c.l.b16 %v2232
  %v2361 = vunpack.c.l.b16 %v2233
  %v2362 = vunpack.c.l.b16 %v2234
  %v2363 = vunpack.c.l.b16 %v2235
  %v2364 = vunpack.c.l.b16 %v2236
  %v2365 = vunpack.c.l.b16 %v2237
  %v2366 = vunpack.c.l.b16 %v2238
  %v2367 = vunpack.c.l.b16 %v2239
  %v2368 = vunpack.c.l.b16 %v2240
  %v2369 = vunpack.c.l.b16 %v2241
  %v2370 = vunpack.c.l.b16 %v2242
  %v2371 = vunpack.c.l.b16 %v2243
  %v2372 = vunpack.c.l.b16 %v2244
  %v2373 = vunpack.c.l.b16 %v2245
  %v2374 = vunpack.c.l.b16 %v2246
  %v2375 = vunpack.c.l.b16 %v2247
  %v2376 = vunpack.c.l.b16 %v2248
  %v2377 = vunpack.c.l.b16 %v2249
  %v2378 = vunpack.c.l.b16 %v2250
  %v2379 = vunpack.c.l.b16 %v2251
  %v2380 = vunpack.c.l.b16 %v2252
  %v2381 = vunpack.c.l.b16 %v2253
  %v2382 = vunpack.c.l.b16 %v2254
  %v2383 = vunpack.c.l.b16 %v2255
  %v2384 = vunpack.c.l.b16 %v2256
  %v2385 = vunpack.c.l.b16 %v2257
  %v2386 = vunpack.c.l.b16 %v2258
  %v2387 = vunpack.c.l.b16 %v2259
  %v2388 = vunpack.c.l.b16 %v2260
  %v2389 = vunpack.c.l.b16 %v2261
  %v2390 = vunpack.c.l.b16 %v2262
  %v2391 = vunpack.c.l.b16 %v2263
  %v2392 = vunpack.c.l.b16 %v2264
  %v2393 = vunpack.c.l.b16 %v2265
  %v2394 = vunpack.c.l.b16 %v2266
  %v2395 = vunpack.c.l.b16 %v2267
  %v2396 = vunpack.c.l.b16 %v2268
  %v2397 = vunpack.c.l.b16 %v2269
  %v2398 = vunpack.c.l.b16 %v2270
  %v2399 = vunpack.c.l.b16 %v2271
  %v2400 = vunpack.c.l.b16 %v2272
  %v2401 = vunpack.c.l.b16 %v2273
  %v2402 = vunpack.c.l.b16 %v2274
  %v2403 = vunpack.c.l.b16 %v2275
  %v2404 = vunpack.c.l.b16 %v2276
  %v2405 = vunpack.c.l.b16 %v2277
  %v2406 = vunpack.c.l.b16 %v2278
  %v2407 = vunpack.c.l.b16 %v2279
  %v2408 = vunpack.c.l.b16 %v2280
  %v2409 = vunpack.c.l.b16 %v2281
  %v2410 = vunpack.c.l.b16 %v2282
  %v2411 = vunpack.c.l.b16 %v2283
  %v2412 = vunpack.c.l.b16 %v2284
  %v2413 = vunpack.c.l.b16 %v2285
  %v2414 = vunpack.c.l.b16 %v2286
  %v2415 = vunpack.c.l.b16 %v2287
  %v2416 = vunpack.c.l.b16 %v2288
  %v2417 = vunpack.c.l.b16 %v2289
  %v2418 = vunpack.c.l.b16 %v2290
  %v2419 = vunpack.c.l.b16 %v2291
  %v2420 = vpack.c.b16 %v2357, %v2356
  %v2421 = vpack.c.b16 %v2359, %v2358
  %v2422 = vpack.c.b16 %v2361, %v2360
  %v2423 = vpack.c.b16 %v2363, %v2362
  %v2424 = vpack.c.b16 %v2365, %v2364
  %v2425 = vpack.c.b16 %v2367, %v2366
  %v2426 = vpack.c.b16 %v2369, %v2368
  %v2427 = vpack.c.b16 %v2371, %v2370
  %v2428 = vpack.c.b16 %v2373, %v2372
  %v2429 = vpack.c.b16 %v2375, %v2374
  %v2430 = vpack.c.b16 %v2377, %v2376
  %v2431 = vpack.c.b16 %v2379, %v2378
  %v2432 = vpack.c.b16 %v2381, %v2380
  %v2433 = vpack.c.b16 %v2383, %v2382
  %v2434 = vpack.c.b16 %v2385, %v2384
  %v2435 = vpack.c.b16 %v2387, %v2386
  %v2436 = vpack.c.b16 %v2389, %v2388
  %v2437 = vpack.c.b16 %v2391, %v2390
  %v2438 = vpack.c.b16 %v2393, %v2392
  %v2439 = vpack.c.b16 %v2395, %v2394
  %v2440 = vpack.c.b16 %v2397, %v2396
  %v2441 = vpack.c.b16 %v2399, %v2398
  %v2442 = vpack.c.b16 %v2401, %v2400
  %v2443 = vpack.c.b16 %v2403, %v2402
  %v2444 = vpack.c.b16 %v2405, %v2404
  %v2445 = vpack.c.b16 %v2407, %v2406
  %v2446 = vpack.c.b16 %v2409, %v2408
  %v2447 = vpack.c.b16 %v2411, %v2410
  %v2448 = vpack.c.b16 %v2413, %v2412
  %v2449 = vpack.c.b16 %v2415, %v2414
  %v2450 = vpack.c.b16 %v2417, %v2416
  %v2451 = vpack.c.b16 %v2419, %v2418
  %2484 = vmatpush.bf16.msra.mxu0 %v2427
  %2485 = vmatpush.bf16.msra.mxu0 %v2426
  %2486 = vmatpush.bf16.msra.mxu0 %v2425
  %2487 = vmatpush.bf16.msra.mxu0 %v2424
  %2488 = vmatpush.bf16.msra.mxu0 %v2423
  %2489 = vmatpush.bf16.msra.mxu0 %v2422
  %2490 = vmatpush.bf16.msra.mxu0 %v2421
  %2491 = vmatpush.bf16.msra.mxu0 %v2420
  %2492 = vmatmul.bf16.gmra.mxu0 %v2224
  %v2493 = vpop.f32.mrf.mxu0
  %v2494 = vadd.f32 0.0, %v2493
  %v2495 = vpop.f32.mrf.mxu0
  %v2496 = vadd.f32 0.0, %v2495
  %2497 = vdwg.mxu0
  %2498 = vmatpush.bf16.msra.mxu0 %v2435
  %2499 = vmatpush.bf16.msra.mxu0 %v2434
  %2500 = vmatpush.bf16.msra.mxu0 %v2433
  %2501 = vmatpush.bf16.msra.mxu0 %v2432
  %2502 = vmatpush.bf16.msra.mxu0 %v2431
  %2503 = vmatpush.bf16.msra.mxu0 %v2430
  %2504 = vmatpush.bf16.msra.mxu0 %v2429
  %2505 = vmatpush.bf16.msra.mxu0 %v2428
  %2506 = vmatmul.bf16.gmra.mxu0 %v2225
  %v2507 = vpop.f32.mrf.mxu0
  %v2508 = vadd.f32 %v2494, %v2507
  %v2509 = vpop.f32.mrf.mxu0
  %v2510 = vadd.f32 %v2496, %v2509
  %2511 = vdwg.mxu0
  %2512 = vmatpush.bf16.msra.mxu0 %v2443
  %2513 = vmatpush.bf16.msra.mxu0 %v2442
  %2514 = vmatpush.bf16.msra.mxu0 %v2441
  %2515 = vmatpush.bf16.msra.mxu0 %v2440
  %2516 = vmatpush.bf16.msra.mxu0 %v2439
  %2517 = vmatpush.bf16.msra.mxu0 %v2438
  %2518 = vmatpush.bf16.msra.mxu0 %v2437
  %2519 = vmatpush.bf16.msra.mxu0 %v2436
  %2520 = vmatmul.bf16.gmra.mxu0 %v2226
  %v2521 = vpop.f32.mrf.mxu0
  %v2522 = vadd.f32 %v2508, %v2521
  %v2523 = vpop.f32.mrf.mxu0
  %v2524 = vadd.f32 %v2510, %v2523
  %2525 = vdwg.mxu0
  %2526 = vmatpush.bf16.msra.mxu0 %v2451
  %2527 = vmatpush.bf16.msra.mxu0 %v2450
  %2528 = vmatpush.bf16.msra.mxu0 %v2449
  %2529 = vmatpush.bf16.msra.mxu0 %v2448
  %2530 = vmatpush.bf16.msra.mxu0 %v2447
  %2531 = vmatpush.bf16.msra.mxu0 %v2446
  %2532 = vmatpush.bf16.msra.mxu0 %v2445
  %2533 = vmatpush.bf16.msra.mxu0 %v2444
  %2534 = vmatmul.bf16.gmra.mxu0 %v2227
  %v2535 = vpop.f32.mrf.mxu0
  %v2536 = vadd.f32 %v2522, %v2535
  %v2537 = vpop.f32.mrf.mxu0
  %v2538 = vadd.f32 %v2524, %v2537
  %2539 = vdwg.mxu0
  %v2540 = vadd.f32 %v2099, %v2536
  %v2541 = vadd.f32 %v2100, %v2538
  %v2542 = vadd.f32 %v776, %v2540
  %v2543 = vadd.f32 %v777, %v2541
  %v2544 = vadd.f32 %v2542, %v49
  %v2545 = vadd.f32 %v2543, %v49
  %v2546 = vsel %vm71, %v2544, 0.0
  %2547 = vadd.xlane.f32.xlu0 %v2546
  %v2548 = vpop.xlane.xlu0 %2547
  %v2549 = vsel %vm71, %v2545, 0.0
  %2550 = vadd.xlane.f32.xlu0 %v2549
  %v2551 = vpop.xlane.xlu0 %2550
  %v2552 = vmul.f32 %v2548, %v735
  %v2553 = vmul.f32 %v2551, %v735
  %v2554 = vsub.f32 %v2544, %v2552
  %v2555 = vsub.f32 %v2545, %v2553
  %v2556 = vmul.f32 %v2554, %v2554
  %v2557 = vmul.f32 %v2555, %v2555
  %v2558 = vsel %vm71, %v2556, 0.0
  %2559 = vadd.xlane.f32.xlu0 %v2558
  %v2560 = vpop.xlane.xlu0 %2559
  %v2561 = vsel %vm71, %v2557, 0.0
  %2562 = vadd.xlane.f32.xlu0 %v2561
  %v2563 = vpop.xlane.xlu0 %2562
  %v2564 = vmul.f32 %v2560, %v735
  %v2565 = vmul.f32 %v2563, %v735
  %v2566 = vadd.f32 %v2564, 1e-05
  %v2567 = vadd.f32 %v2565, 1e-05
  %v2568 = vrsqrt.pop %v2566
  %v2569 = vmul.f32 %v2568, %v2566
  %v2570 = vmul.f32 %v2569, %v2568
  %v2571 = vmul.f32 0.5, %v2570
  %v2572 = vsub.f32 1.5, %v2571
  %v2573 = vmul.f32 %v2568, %v2572
  %vm2574 = vweird.f32 %v2566
  %vm2575 = vweird.f32 %v2568
  %vm2576 = vmor %vm2574, %vm2575
  %v2577 = vsel %vm2576, %v2568, %v2573
  %v2578 = vrsqrt.pop %v2567
  %v2579 = vmul.f32 %v2578, %v2567
  %v2580 = vmul.f32 %v2579, %v2578
  %v2581 = vmul.f32 0.5, %v2580
  %v2582 = vsub.f32 1.5, %v2581
  %v2583 = vmul.f32 %v2578, %v2582
  %vm2584 = vweird.f32 %v2567
  %vm2585 = vweird.f32 %v2578
  %vm2586 = vmor %vm2584, %vm2585
  %v2587 = vsel %vm2586, %v2578, %v2583
  %v2588 = vmul.f32 %v2554, %v2577
  %v2589 = vmul.f32 %v2555, %v2587
  %v2590 = vmul.f32 %v2588, %v52
  %v2591 = vmul.f32 %v2589, %v52
  %v2592 = vadd.f32 %v2590, %v53
  %v2593 = vadd.f32 %v2591, %v53
  %v2594 = vld [vmem:[%s1 + $0x80] ss:$0 sm:$0xff]
  %v2595 = vld [vmem:[%s1 + $0x81] ss:$0 sm:$0xff]
  %v2596 = vld [vmem:[%s1 + $0x83] ss:$0 sm:$0xff]
  %v2597 = vld [vmem:[%s1 + $0x84] ss:$0 sm:$0xff]
  %v2598 = vld [vmem:[%s1 + $0x85] ss:$0 sm:$0xff]
  %v2599 = vld [vmem:[%s1 + $0x86] ss:$0 sm:$0xff]
  %v2600 = vld [vmem:[%s1 + $0x87] ss:$0 sm:$0xff]
  %v2601 = vpack.c.bf16 %v2593, %v2592
  %v2602 = vld [vmem:[%s6] sm:$0xf]
  %v2603 = vld [vmem:[%s6 + $0x4] sm:$0xf]
  %v2604 = vld [vmem:[%s6 + $0x8] sm:$0xf]
  %v2605 = vld [vmem:[%s6 + $0xc] sm:$0xf]
  %v2610 = vunpack.c.l.b16 %v2602
  %v2611 = vunpack.c.l.b16 %v2603
  %v2612 = vunpack.c.l.b16 %v2604
  %v2613 = vunpack.c.l.b16 %v2605
  %v2614 = vpack.c.b16 %v2611, %v2610
  %v2615 = vpack.c.b16 %v2613, %v2612
  %v2619 = vsel %vm71, %v2601, 0
  %2621 = vmatpush.bf16.msra.mxu0 0
  %2622 = vmatpush.bf16.msra.mxu0 0
  %2623 = vmatpush.bf16.msra.mxu0 0
  %2624 = vmatpush.bf16.msra.mxu0 0
  %2625 = vmatpush.bf16.msra.mxu0 0
  %2626 = vmatpush.bf16.msra.mxu0 0
  %2627 = vmatpush.bf16.msra.mxu0 %v2615
  %2628 = vmatpush.bf16.msra.mxu0 %v2614
  %2629 = vmatmul.bf16.gmra.mxu0 %v2619
  %v2630 = vpop.f32.mrf.mxu0
  %v2631 = vadd.f32 %v2594, %v2630
  %v2632 = vpop.f32.mrf.mxu0
  %v2633 = vadd.f32 %v2594, %v2632
  %2634 = vdwg.mxu0
  %v2635 = vpack.c.bf16 %v2631, %v2631
  %v2636 = vpack.c.bf16 %v2633, %v2633
  %v2638 = vunpack.c.l.b16 %v2635
  %v2639 = vpack.c.b16 %v2638, %v2638
  %2640 = vrot.lane.b32.xlu0 %v2639, 96
  %v2641 = vpop.permute.xlu0 %2640
  %v2643 = vsel %vm96, %v2635, 0
  %v2646 = vsel %vm96, %v2641, 0
  %2648 = vmatpush.bf16.xpose.msra.mxu0 0
  %2649 = vmatpush.bf16.xpose.msra.mxu0 0
  %2650 = vmatpush.bf16.xpose.msra.mxu0 0
  %2651 = vmatpush.bf16.xpose.msra.mxu0 0
  %2652 = vmatpush.bf16.xpose.msra.mxu0 0
  %2653 = vmatpush.bf16.xpose.msra.mxu0 0
  %2654 = vmatpush.bf16.xpose.msra.mxu0 0
  %2655 = vmatpush.bf16.xpose.msra.mxu0 %v2646
  %2656 = vmatmul.bf16.gmra.mxu0 %v2643
  %v2657 = vpop.f32.mrf.mxu0
  %v2658 = vadd.f32 0.0, %v2657
  %v2659 = vpop.f32.mrf.mxu0
  %2660 = vdwg.mxu0
  %v2662 = vunpack.c.l.b16 %v2636
  %v2663 = vpack.c.b16 %v2662, %v2662
  %2664 = vrot.lane.b32.xlu0 %v2663, 96
  %v2665 = vpop.permute.xlu0 %2664
  %v2667 = vsel %vm96, %v2636, 0
  %v2670 = vsel %vm96, %v2665, 0
  %2672 = vmatpush.bf16.xpose.msra.mxu0 0
  %2673 = vmatpush.bf16.xpose.msra.mxu0 0
  %2674 = vmatpush.bf16.xpose.msra.mxu0 0
  %2675 = vmatpush.bf16.xpose.msra.mxu0 0
  %2676 = vmatpush.bf16.xpose.msra.mxu0 0
  %2677 = vmatpush.bf16.xpose.msra.mxu0 0
  %2678 = vmatpush.bf16.xpose.msra.mxu0 0
  %2679 = vmatpush.bf16.xpose.msra.mxu0 %v2670
  %2680 = vmatmul.bf16.gmra.mxu0 %v2667
  %v2681 = vpop.f32.mrf.mxu0
  %v2682 = vadd.f32 0.0, %v2681
  %v2683 = vpop.f32.mrf.mxu0
  %2684 = vdwg.mxu0
  %v2685 = vmul.f32 %v2658, 0.35355338
  %v2686 = vmul.f32 %v2682, 0.35355338
  %v2687 = vsel %vm96, %v2685, -inf
  %2688 = vmax.xlane.f32.xlu0 %v2687
  %v2689 = vpop.xlane.xlu0 %2688
  %v2690 = vsel %vm96, %v2686, -inf
  %2691 = vmax.xlane.f32.xlu0 %v2690
  %v2692 = vpop.xlane.xlu0 %2691
  %v2693 = vsub.f32 %v2685, %v2689
  %v2694 = vsub.f32 %v2686, %v2692
  %v2695 = vmul.f32 %v2693, 1.442695
  %v2696 = vpow.pop %v2695
  %v2697 = vmul.f32 %v2694, 1.442695
  %v2698 = vpow.pop %v2697
  %v2699 = vsel %vm96, %v2696, 0.0
  %2700 = vadd.xlane.f32.xlu0 %v2699
  %v2701 = vpop.xlane.xlu0 %2700
  %v2702 = vsel %vm96, %v2698, 0.0
  %2703 = vadd.xlane.f32.xlu0 %v2702
  %v2704 = vpop.xlane.xlu0 %2703
  %v2705 = vrcp.pop %v2701
  %v2706 = vmul.f32 %v2701, %v2705
  %v2707 = vsub.f32 1.0, %v2706
  %v2708 = vmul.f32 %v2705, %v2707
  %v2709 = vadd.f32 %v2705, %v2708
  %vm2710 = vweird.f32 %v2701
  %vm2711 = vweird.f32 %v2705
  %vm2712 = vmor %vm2710, %vm2711
  %v2713 = vsel %vm2712, %v2705, %v2709
  %v2714 = vand.u32 2147483647, %v2701
  %vm2715 = vcmp.eq.f32.partialorder %v2714, 8.507059e+37
  %v2716 = vand.u32 %v2701, 2147483648
  %v2717 = vor.u32 1.1754944e-38, %v2716
  %v2718 = vsel %vm2715, %v2717, %v2713
  %v2719 = vrcp.pop %v2704
  %v2720 = vmul.f32 %v2704, %v2719
  %v2721 = vsub.f32 1.0, %v2720
  %v2722 = vmul.f32 %v2719, %v2721
  %v2723 = vadd.f32 %v2719, %v2722
  %vm2724 = vweird.f32 %v2704
  %vm2725 = vweird.f32 %v2719
  %vm2726 = vmor %vm2724, %vm2725
  %v2727 = vsel %vm2726, %v2719, %v2723
  %v2728 = vand.u32 2147483647, %v2704
  %vm2729 = vcmp.eq.f32.partialorder %v2728, 8.507059e+37
  %v2730 = vand.u32 %v2704, 2147483648
  %v2731 = vor.u32 1.1754944e-38, %v2730
  %v2732 = vsel %vm2729, %v2731, %v2727
  %v2733 = vmul.f32 %v2696, %v2718
  %v2734 = vmul.f32 %v2698, %v2732
  %v2735 = vpack.c.bf16 %v2733, %v2733
  %v2736 = vpack.c.bf16 %v2734, %v2734
  %2737 = vrot.lane.b32.xlu0 %v2639, 64
  %v2738 = vpop.permute.xlu0 %2737
  %v2740 = vsel %vm96, %v2735, 0
  %v2743 = vsel %vm197, %v2738, 0
  %2745 = vmatpush.bf16.msra.mxu0 0
  %2746 = vmatpush.bf16.msra.mxu0 0
  %2747 = vmatpush.bf16.msra.mxu0 0
  %2748 = vmatpush.bf16.msra.mxu0 0
  %2749 = vmatpush.bf16.msra.mxu0 0
  %2750 = vmatpush.bf16.msra.mxu0 0
  %2751 = vmatpush.bf16.msra.mxu0 0
  %2752 = vmatpush.bf16.msra.mxu0 %v2743
  %2753 = vmatmul.bf16.gmra.mxu0 %v2740
  %v2754 = vpop.f32.mrf.mxu0
  %v2755 = vadd.f32 0.0, %v2754
  %v2756 = vpop.f32.mrf.mxu0
  %2757 = vdwg.mxu0
  %2758 = vrot.lane.b32.xlu0 %v2663, 64
  %v2759 = vpop.permute.xlu0 %2758
  %v2761 = vsel %vm96, %v2736, 0
  %v2764 = vsel %vm197, %v2759, 0
  %2766 = vmatpush.bf16.msra.mxu0 0
  %2767 = vmatpush.bf16.msra.mxu0 0
  %2768 = vmatpush.bf16.msra.mxu0 0
  %2769 = vmatpush.bf16.msra.mxu0 0
  %2770 = vmatpush.bf16.msra.mxu0 0
  %2771 = vmatpush.bf16.msra.mxu0 0
  %2772 = vmatpush.bf16.msra.mxu0 0
  %2773 = vmatpush.bf16.msra.mxu0 %v2764
  %2774 = vmatmul.bf16.gmra.mxu0 %v2761
  %v2775 = vpop.f32.mrf.mxu0
  %v2776 = vadd.f32 0.0, %v2775
  %v2777 = vpop.f32.mrf.mxu0
  %2778 = vdwg.mxu0
  %2779 = vrot.lane.b32.xlu0 %v2639, 120
  %v2780 = vpop.permute.xlu0 %2779
  %2781 = vrot.lane.b32.xlu0 %v2639, 88
  %v2782 = vpop.permute.xlu0 %2781
  %v2784 = vsel %vm96, %v2780, 0
  %v2787 = vsel %vm96, %v2782, 0
  %2789 = vmatpush.bf16.xpose.msra.mxu0 0
  %2790 = vmatpush.bf16.xpose.msra.mxu0 0
  %2791 = vmatpush.bf16.xpose.msra.mxu0 0
  %2792 = vmatpush.bf16.xpose.msra.mxu0 0
  %2793 = vmatpush.bf16.xpose.msra.mxu0 0
  %2794 = vmatpush.bf16.xpose.msra.mxu0 0
  %2795 = vmatpush.bf16.xpose.msra.mxu0 0
  %2796 = vmatpush.bf16.xpose.msra.mxu0 %v2787
  %2797 = vmatmul.bf16.gmra.mxu0 %v2784
  %v2798 = vpop.f32.mrf.mxu0
  %v2799 = vadd.f32 0.0, %v2798
  %v2800 = vpop.f32.mrf.mxu0
  %2801 = vdwg.mxu0
  %2802 = vrot.lane.b32.xlu0 %v2663, 120
  %v2803 = vpop.permute.xlu0 %2802
  %2804 = vrot.lane.b32.xlu0 %v2663, 88
  %v2805 = vpop.permute.xlu0 %2804
  %v2807 = vsel %vm96, %v2803, 0
  %v2810 = vsel %vm96, %v2805, 0
  %2812 = vmatpush.bf16.xpose.msra.mxu0 0
  %2813 = vmatpush.bf16.xpose.msra.mxu0 0
  %2814 = vmatpush.bf16.xpose.msra.mxu0 0
  %2815 = vmatpush.bf16.xpose.msra.mxu0 0
  %2816 = vmatpush.bf16.xpose.msra.mxu0 0
  %2817 = vmatpush.bf16.xpose.msra.mxu0 0
  %2818 = vmatpush.bf16.xpose.msra.mxu0 0
  %2819 = vmatpush.bf16.xpose.msra.mxu0 %v2810
  %2820 = vmatmul.bf16.gmra.mxu0 %v2807
  %v2821 = vpop.f32.mrf.mxu0
  %v2822 = vadd.f32 0.0, %v2821
  %v2823 = vpop.f32.mrf.mxu0
  %2824 = vdwg.mxu0
  %v2825 = vmul.f32 %v2799, 0.35355338
  %v2826 = vmul.f32 %v2822, 0.35355338
  %v2827 = vsel %vm96, %v2825, -inf
  %2828 = vmax.xlane.f32.xlu0 %v2827
  %v2829 = vpop.xlane.xlu0 %2828
  %v2830 = vsel %vm96, %v2826, -inf
  %2831 = vmax.xlane.f32.xlu0 %v2830
  %v2832 = vpop.xlane.xlu0 %2831
  %v2833 = vsub.f32 %v2825, %v2829
  %v2834 = vsub.f32 %v2826, %v2832
  %v2835 = vmul.f32 %v2833, 1.442695
  %v2836 = vpow.pop %v2835
  %v2837 = vmul.f32 %v2834, 1.442695
  %v2838 = vpow.pop %v2837
  %v2839 = vsel %vm96, %v2836, 0.0
  %2840 = vadd.xlane.f32.xlu0 %v2839
  %v2841 = vpop.xlane.xlu0 %2840
  %v2842 = vsel %vm96, %v2838, 0.0
  %2843 = vadd.xlane.f32.xlu0 %v2842
  %v2844 = vpop.xlane.xlu0 %2843
  %v2845 = vrcp.pop %v2841
  %v2846 = vmul.f32 %v2841, %v2845
  %v2847 = vsub.f32 1.0, %v2846
  %v2848 = vmul.f32 %v2845, %v2847
  %v2849 = vadd.f32 %v2845, %v2848
  %vm2850 = vweird.f32 %v2841
  %vm2851 = vweird.f32 %v2845
  %vm2852 = vmor %vm2850, %vm2851
  %v2853 = vsel %vm2852, %v2845, %v2849
  %v2854 = vand.u32 2147483647, %v2841
  %vm2855 = vcmp.eq.f32.partialorder %v2854, 8.507059e+37
  %v2856 = vand.u32 %v2841, 2147483648
  %v2857 = vor.u32 1.1754944e-38, %v2856
  %v2858 = vsel %vm2855, %v2857, %v2853
  %v2859 = vrcp.pop %v2844
  %v2860 = vmul.f32 %v2844, %v2859
  %v2861 = vsub.f32 1.0, %v2860
  %v2862 = vmul.f32 %v2859, %v2861
  %v2863 = vadd.f32 %v2859, %v2862
  %vm2864 = vweird.f32 %v2844
  %vm2865 = vweird.f32 %v2859
  %vm2866 = vmor %vm2864, %vm2865
  %v2867 = vsel %vm2866, %v2859, %v2863
  %v2868 = vand.u32 2147483647, %v2844
  %vm2869 = vcmp.eq.f32.partialorder %v2868, 8.507059e+37
  %v2870 = vand.u32 %v2844, 2147483648
  %v2871 = vor.u32 1.1754944e-38, %v2870
  %v2872 = vsel %vm2869, %v2871, %v2867
  %v2873 = vmul.f32 %v2836, %v2858
  %v2874 = vmul.f32 %v2838, %v2872
  %v2875 = vpack.c.bf16 %v2873, %v2873
  %v2876 = vpack.c.bf16 %v2874, %v2874
  %2877 = vrot.lane.b32.xlu0 %v2639, 56
  %v2878 = vpop.permute.xlu0 %2877
  %v2880 = vsel %vm96, %v2875, 0
  %v2883 = vsel %vm197, %v2878, 0
  %2885 = vmatpush.bf16.msra.mxu0 0
  %2886 = vmatpush.bf16.msra.mxu0 0
  %2887 = vmatpush.bf16.msra.mxu0 0
  %2888 = vmatpush.bf16.msra.mxu0 0
  %2889 = vmatpush.bf16.msra.mxu0 0
  %2890 = vmatpush.bf16.msra.mxu0 0
  %2891 = vmatpush.bf16.msra.mxu0 0
  %2892 = vmatpush.bf16.msra.mxu0 %v2883
  %2893 = vmatmul.bf16.gmra.mxu0 %v2880
  %v2894 = vpop.f32.mrf.mxu0
  %v2895 = vadd.f32 0.0, %v2894
  %v2896 = vpop.f32.mrf.mxu0
  %2897 = vdwg.mxu0
  %2898 = vrot.lane.b32.xlu0 %v2663, 56
  %v2899 = vpop.permute.xlu0 %2898
  %v2901 = vsel %vm96, %v2876, 0
  %v2904 = vsel %vm197, %v2899, 0
  %2906 = vmatpush.bf16.msra.mxu0 0
  %2907 = vmatpush.bf16.msra.mxu0 0
  %2908 = vmatpush.bf16.msra.mxu0 0
  %2909 = vmatpush.bf16.msra.mxu0 0
  %2910 = vmatpush.bf16.msra.mxu0 0
  %2911 = vmatpush.bf16.msra.mxu0 0
  %2912 = vmatpush.bf16.msra.mxu0 0
  %2913 = vmatpush.bf16.msra.mxu0 %v2904
  %2914 = vmatmul.bf16.gmra.mxu0 %v2901
  %v2915 = vpop.f32.mrf.mxu0
  %v2916 = vadd.f32 0.0, %v2915
  %v2917 = vpop.f32.mrf.mxu0
  %2918 = vdwg.mxu0
  %2919 = vrot.lane.b32.xlu0 %v2639, 112
  %v2920 = vpop.permute.xlu0 %2919
  %2921 = vrot.lane.b32.xlu0 %v2639, 80
  %v2922 = vpop.permute.xlu0 %2921
  %v2924 = vsel %vm96, %v2920, 0
  %v2927 = vsel %vm96, %v2922, 0
  %2929 = vmatpush.bf16.xpose.msra.mxu0 0
  %2930 = vmatpush.bf16.xpose.msra.mxu0 0
  %2931 = vmatpush.bf16.xpose.msra.mxu0 0
  %2932 = vmatpush.bf16.xpose.msra.mxu0 0
  %2933 = vmatpush.bf16.xpose.msra.mxu0 0
  %2934 = vmatpush.bf16.xpose.msra.mxu0 0
  %2935 = vmatpush.bf16.xpose.msra.mxu0 0
  %2936 = vmatpush.bf16.xpose.msra.mxu0 %v2927
  %2937 = vmatmul.bf16.gmra.mxu0 %v2924
  %v2938 = vpop.f32.mrf.mxu0
  %v2939 = vadd.f32 0.0, %v2938
  %v2940 = vpop.f32.mrf.mxu0
  %2941 = vdwg.mxu0
  %2942 = vrot.lane.b32.xlu0 %v2663, 112
  %v2943 = vpop.permute.xlu0 %2942
  %2944 = vrot.lane.b32.xlu0 %v2663, 80
  %v2945 = vpop.permute.xlu0 %2944
  %v2947 = vsel %vm96, %v2943, 0
  %v2950 = vsel %vm96, %v2945, 0
  %2952 = vmatpush.bf16.xpose.msra.mxu0 0
  %2953 = vmatpush.bf16.xpose.msra.mxu0 0
  %2954 = vmatpush.bf16.xpose.msra.mxu0 0
  %2955 = vmatpush.bf16.xpose.msra.mxu0 0
  %2956 = vmatpush.bf16.xpose.msra.mxu0 0
  %2957 = vmatpush.bf16.xpose.msra.mxu0 0
  %2958 = vmatpush.bf16.xpose.msra.mxu0 0
  %2959 = vmatpush.bf16.xpose.msra.mxu0 %v2950
  %2960 = vmatmul.bf16.gmra.mxu0 %v2947
  %v2961 = vpop.f32.mrf.mxu0
  %v2962 = vadd.f32 0.0, %v2961
  %v2963 = vpop.f32.mrf.mxu0
  %2964 = vdwg.mxu0
  %v2965 = vmul.f32 %v2939, 0.35355338
  %v2966 = vmul.f32 %v2962, 0.35355338
  %v2967 = vsel %vm96, %v2965, -inf
  %2968 = vmax.xlane.f32.xlu0 %v2967
  %v2969 = vpop.xlane.xlu0 %2968
  %v2970 = vsel %vm96, %v2966, -inf
  %2971 = vmax.xlane.f32.xlu0 %v2970
  %v2972 = vpop.xlane.xlu0 %2971
  %v2973 = vsub.f32 %v2965, %v2969
  %v2974 = vsub.f32 %v2966, %v2972
  %v2975 = vmul.f32 %v2973, 1.442695
  %v2976 = vpow.pop %v2975
  %v2977 = vmul.f32 %v2974, 1.442695
  %v2978 = vpow.pop %v2977
  %v2979 = vsel %vm96, %v2976, 0.0
  %2980 = vadd.xlane.f32.xlu0 %v2979
  %v2981 = vpop.xlane.xlu0 %2980
  %v2982 = vsel %vm96, %v2978, 0.0
  %2983 = vadd.xlane.f32.xlu0 %v2982
  %v2984 = vpop.xlane.xlu0 %2983
  %v2985 = vrcp.pop %v2981
  %v2986 = vmul.f32 %v2981, %v2985
  %v2987 = vsub.f32 1.0, %v2986
  %v2988 = vmul.f32 %v2985, %v2987
  %v2989 = vadd.f32 %v2985, %v2988
  %vm2990 = vweird.f32 %v2981
  %vm2991 = vweird.f32 %v2985
  %vm2992 = vmor %vm2990, %vm2991
  %v2993 = vsel %vm2992, %v2985, %v2989
  %v2994 = vand.u32 2147483647, %v2981
  %vm2995 = vcmp.eq.f32.partialorder %v2994, 8.507059e+37
  %v2996 = vand.u32 %v2981, 2147483648
  %v2997 = vor.u32 1.1754944e-38, %v2996
  %v2998 = vsel %vm2995, %v2997, %v2993
  %v2999 = vrcp.pop %v2984
  %v3000 = vmul.f32 %v2984, %v2999
  %v3001 = vsub.f32 1.0, %v3000
  %v3002 = vmul.f32 %v2999, %v3001
  %v3003 = vadd.f32 %v2999, %v3002
  %vm3004 = vweird.f32 %v2984
  %vm3005 = vweird.f32 %v2999
  %vm3006 = vmor %vm3004, %vm3005
  %v3007 = vsel %vm3006, %v2999, %v3003
  %v3008 = vand.u32 2147483647, %v2984
  %vm3009 = vcmp.eq.f32.partialorder %v3008, 8.507059e+37
  %v3010 = vand.u32 %v2984, 2147483648
  %v3011 = vor.u32 1.1754944e-38, %v3010
  %v3012 = vsel %vm3009, %v3011, %v3007
  %v3013 = vmul.f32 %v2976, %v2998
  %v3014 = vmul.f32 %v2978, %v3012
  %v3015 = vpack.c.bf16 %v3013, %v3013
  %v3016 = vpack.c.bf16 %v3014, %v3014
  %3017 = vrot.lane.b32.xlu0 %v2639, 48
  %v3018 = vpop.permute.xlu0 %3017
  %v3020 = vsel %vm96, %v3015, 0
  %v3023 = vsel %vm197, %v3018, 0
  %3025 = vmatpush.bf16.msra.mxu0 0
  %3026 = vmatpush.bf16.msra.mxu0 0
  %3027 = vmatpush.bf16.msra.mxu0 0
  %3028 = vmatpush.bf16.msra.mxu0 0
  %3029 = vmatpush.bf16.msra.mxu0 0
  %3030 = vmatpush.bf16.msra.mxu0 0
  %3031 = vmatpush.bf16.msra.mxu0 0
  %3032 = vmatpush.bf16.msra.mxu0 %v3023
  %3033 = vmatmul.bf16.gmra.mxu0 %v3020
  %v3034 = vpop.f32.mrf.mxu0
  %v3035 = vadd.f32 0.0, %v3034
  %v3036 = vpop.f32.mrf.mxu0
  %3037 = vdwg.mxu0
  %3038 = vrot.lane.b32.xlu0 %v2663, 48
  %v3039 = vpop.permute.xlu0 %3038
  %v3041 = vsel %vm96, %v3016, 0
  %v3044 = vsel %vm197, %v3039, 0
  %3046 = vmatpush.bf16.msra.mxu0 0
  %3047 = vmatpush.bf16.msra.mxu0 0
  %3048 = vmatpush.bf16.msra.mxu0 0
  %3049 = vmatpush.bf16.msra.mxu0 0
  %3050 = vmatpush.bf16.msra.mxu0 0
  %3051 = vmatpush.bf16.msra.mxu0 0
  %3052 = vmatpush.bf16.msra.mxu0 0
  %3053 = vmatpush.bf16.msra.mxu0 %v3044
  %3054 = vmatmul.bf16.gmra.mxu0 %v3041
  %v3055 = vpop.f32.mrf.mxu0
  %v3056 = vadd.f32 0.0, %v3055
  %v3057 = vpop.f32.mrf.mxu0
  %3058 = vdwg.mxu0
  %3059 = vrot.lane.b32.xlu0 %v2639, 104
  %v3060 = vpop.permute.xlu0 %3059
  %3061 = vrot.lane.b32.xlu0 %v2639, 72
  %v3062 = vpop.permute.xlu0 %3061
  %v3064 = vsel %vm96, %v3060, 0
  %v3067 = vsel %vm96, %v3062, 0
  %3069 = vmatpush.bf16.xpose.msra.mxu0 0
  %3070 = vmatpush.bf16.xpose.msra.mxu0 0
  %3071 = vmatpush.bf16.xpose.msra.mxu0 0
  %3072 = vmatpush.bf16.xpose.msra.mxu0 0
  %3073 = vmatpush.bf16.xpose.msra.mxu0 0
  %3074 = vmatpush.bf16.xpose.msra.mxu0 0
  %3075 = vmatpush.bf16.xpose.msra.mxu0 0
  %3076 = vmatpush.bf16.xpose.msra.mxu0 %v3067
  %3077 = vmatmul.bf16.gmra.mxu0 %v3064
  %v3078 = vpop.f32.mrf.mxu0
  %v3079 = vadd.f32 0.0, %v3078
  %v3080 = vpop.f32.mrf.mxu0
  %3081 = vdwg.mxu0
  %3082 = vrot.lane.b32.xlu0 %v2663, 104
  %v3083 = vpop.permute.xlu0 %3082
  %3084 = vrot.lane.b32.xlu0 %v2663, 72
  %v3085 = vpop.permute.xlu0 %3084
  %v3087 = vsel %vm96, %v3083, 0
  %v3090 = vsel %vm96, %v3085, 0
  %3092 = vmatpush.bf16.xpose.msra.mxu0 0
  %3093 = vmatpush.bf16.xpose.msra.mxu0 0
  %3094 = vmatpush.bf16.xpose.msra.mxu0 0
  %3095 = vmatpush.bf16.xpose.msra.mxu0 0
  %3096 = vmatpush.bf16.xpose.msra.mxu0 0
  %3097 = vmatpush.bf16.xpose.msra.mxu0 0
  %3098 = vmatpush.bf16.xpose.msra.mxu0 0
  %3099 = vmatpush.bf16.xpose.msra.mxu0 %v3090
  %3100 = vmatmul.bf16.gmra.mxu0 %v3087
  %v3101 = vpop.f32.mrf.mxu0
  %v3102 = vadd.f32 0.0, %v3101
  %v3103 = vpop.f32.mrf.mxu0
  %3104 = vdwg.mxu0
  %v3105 = vmul.f32 %v3079, 0.35355338
  %v3106 = vmul.f32 %v3102, 0.35355338
  %v3107 = vsel %vm96, %v3105, -inf
  %3108 = vmax.xlane.f32.xlu0 %v3107
  %v3109 = vpop.xlane.xlu0 %3108
  %v3110 = vsel %vm96, %v3106, -inf
  %3111 = vmax.xlane.f32.xlu0 %v3110
  %v3112 = vpop.xlane.xlu0 %3111
  %v3113 = vsub.f32 %v3105, %v3109
  %v3114 = vsub.f32 %v3106, %v3112
  %v3115 = vmul.f32 %v3113, 1.442695
  %v3116 = vpow.pop %v3115
  %v3117 = vmul.f32 %v3114, 1.442695
  %v3118 = vpow.pop %v3117
  %v3119 = vsel %vm96, %v3116, 0.0
  %3120 = vadd.xlane.f32.xlu0 %v3119
  %v3121 = vpop.xlane.xlu0 %3120
  %v3122 = vsel %vm96, %v3118, 0.0
  %3123 = vadd.xlane.f32.xlu0 %v3122
  %v3124 = vpop.xlane.xlu0 %3123
  %v3125 = vrcp.pop %v3121
  %v3126 = vmul.f32 %v3121, %v3125
  %v3127 = vsub.f32 1.0, %v3126
  %v3128 = vmul.f32 %v3125, %v3127
  %v3129 = vadd.f32 %v3125, %v3128
  %vm3130 = vweird.f32 %v3121
  %vm3131 = vweird.f32 %v3125
  %vm3132 = vmor %vm3130, %vm3131
  %v3133 = vsel %vm3132, %v3125, %v3129
  %v3134 = vand.u32 2147483647, %v3121
  %vm3135 = vcmp.eq.f32.partialorder %v3134, 8.507059e+37
  %v3136 = vand.u32 %v3121, 2147483648
  %v3137 = vor.u32 1.1754944e-38, %v3136
  %v3138 = vsel %vm3135, %v3137, %v3133
  %v3139 = vrcp.pop %v3124
  %v3140 = vmul.f32 %v3124, %v3139
  %v3141 = vsub.f32 1.0, %v3140
  %v3142 = vmul.f32 %v3139, %v3141
  %v3143 = vadd.f32 %v3139, %v3142
  %vm3144 = vweird.f32 %v3124
  %vm3145 = vweird.f32 %v3139
  %vm3146 = vmor %vm3144, %vm3145
  %v3147 = vsel %vm3146, %v3139, %v3143
  %v3148 = vand.u32 2147483647, %v3124
  %vm3149 = vcmp.eq.f32.partialorder %v3148, 8.507059e+37
  %v3150 = vand.u32 %v3124, 2147483648
  %v3151 = vor.u32 1.1754944e-38, %v3150
  %v3152 = vsel %vm3149, %v3151, %v3147
  %v3153 = vmul.f32 %v3116, %v3138
  %v3154 = vmul.f32 %v3118, %v3152
  %v3155 = vpack.c.bf16 %v3153, %v3153
  %v3156 = vpack.c.bf16 %v3154, %v3154
  %3157 = vrot.lane.b32.xlu0 %v2639, 40
  %v3158 = vpop.permute.xlu0 %3157
  %v3160 = vsel %vm96, %v3155, 0
  %v3163 = vsel %vm197, %v3158, 0
  %3165 = vmatpush.bf16.msra.mxu0 0
  %3166 = vmatpush.bf16.msra.mxu0 0
  %3167 = vmatpush.bf16.msra.mxu0 0
  %3168 = vmatpush.bf16.msra.mxu0 0
  %3169 = vmatpush.bf16.msra.mxu0 0
  %3170 = vmatpush.bf16.msra.mxu0 0
  %3171 = vmatpush.bf16.msra.mxu0 0
  %3172 = vmatpush.bf16.msra.mxu0 %v3163
  %3173 = vmatmul.bf16.gmra.mxu0 %v3160
  %v3174 = vpop.f32.mrf.mxu0
  %v3175 = vadd.f32 0.0, %v3174
  %v3176 = vpop.f32.mrf.mxu0
  %3177 = vdwg.mxu0
  %3178 = vrot.lane.b32.xlu0 %v2663, 40
  %v3179 = vpop.permute.xlu0 %3178
  %v3181 = vsel %vm96, %v3156, 0
  %v3184 = vsel %vm197, %v3179, 0
  %3186 = vmatpush.bf16.msra.mxu0 0
  %3187 = vmatpush.bf16.msra.mxu0 0
  %3188 = vmatpush.bf16.msra.mxu0 0
  %3189 = vmatpush.bf16.msra.mxu0 0
  %3190 = vmatpush.bf16.msra.mxu0 0
  %3191 = vmatpush.bf16.msra.mxu0 0
  %3192 = vmatpush.bf16.msra.mxu0 0
  %3193 = vmatpush.bf16.msra.mxu0 %v3184
  %3194 = vmatmul.bf16.gmra.mxu0 %v3181
  %v3195 = vpop.f32.mrf.mxu0
  %v3196 = vadd.f32 0.0, %v3195
  %v3197 = vpop.f32.mrf.mxu0
  %3198 = vdwg.mxu0
  %3201 = vrot.lane.b32.xlu0 %v2895, 8
  %v3202 = vpop.permute.xlu0 %3201
  %3203 = vrot.lane.b32.xlu0 %v2916, 8
  %v3204 = vpop.permute.xlu0 %3203
  %3209 = vrot.lane.b32.xlu0 %v3035, 16
  %v3210 = vpop.permute.xlu0 %3209
  %3211 = vrot.lane.b32.xlu0 %v3056, 16
  %v3212 = vpop.permute.xlu0 %3211
  %3217 = vrot.lane.b32.xlu0 %v3175, 24
  %v3218 = vpop.permute.xlu0 %3217
  %3219 = vrot.lane.b32.xlu0 %v3196, 24
  %v3220 = vpop.permute.xlu0 %3219
  %v3223 = vsel %vm96, %v2755, %v3202
  %v3224 = vsel %vm96, %v2776, %v3204
  %v3225 = vsel %vm681, %v3223, %v3210
  %v3226 = vsel %vm681, %v3224, %v3212
  %v3227 = vsel %vm684, %v3225, %v3218
  %v3228 = vsel %vm684, %v3226, %v3220
  %v3229 = vpack.c.bf16 %v3228, %v3227
  %v3230 = vld [vmem:[%s7] sm:$0xf]
  %v3231 = vld [vmem:[%s7 + $0x4] sm:$0xf]
  %v3232 = vld [vmem:[%s7 + $0x8] sm:$0xf]
  %v3233 = vld [vmem:[%s7 + $0xc] sm:$0xf]
  %v3238 = vunpack.c.l.b16 %v3230
  %v3239 = vunpack.c.l.b16 %v3231
  %v3240 = vunpack.c.l.b16 %v3232
  %v3241 = vunpack.c.l.b16 %v3233
  %v3242 = vpack.c.b16 %v3239, %v3238
  %v3243 = vpack.c.b16 %v3241, %v3240
  %v3247 = vsel %vm71, %v3229, 0
  %3249 = vmatpush.bf16.msra.mxu0 0
  %3250 = vmatpush.bf16.msra.mxu0 0
  %3251 = vmatpush.bf16.msra.mxu0 0
  %3252 = vmatpush.bf16.msra.mxu0 0
  %3253 = vmatpush.bf16.msra.mxu0 0
  %3254 = vmatpush.bf16.msra.mxu0 0
  %3255 = vmatpush.bf16.msra.mxu0 %v3243
  %3256 = vmatpush.bf16.msra.mxu0 %v3242
  %3257 = vmatmul.bf16.gmra.mxu0 %v3247
  %v3258 = vpop.f32.mrf.mxu0
  %v3259 = vadd.f32 %v2595, %v3258
  %v3260 = vpop.f32.mrf.mxu0
  %v3261 = vadd.f32 %v2595, %v3260
  %3262 = vdwg.mxu0
  %v3263 = vadd.f32 %v2592, %v3259
  %v3264 = vadd.f32 %v2593, %v3261
  %v3265 = vsel %vm71, %v3263, 0.0
  %3266 = vadd.xlane.f32.xlu0 %v3265
  %v3267 = vpop.xlane.xlu0 %3266
  %v3268 = vsel %vm71, %v3264, 0.0
  %3269 = vadd.xlane.f32.xlu0 %v3268
  %v3270 = vpop.xlane.xlu0 %3269
  %v3271 = vmul.f32 %v3267, %v735
  %v3272 = vmul.f32 %v3270, %v735
  %v3273 = vsub.f32 %v3263, %v3271
  %v3274 = vsub.f32 %v3264, %v3272
  %v3275 = vmul.f32 %v3273, %v3273
  %v3276 = vmul.f32 %v3274, %v3274
  %v3277 = vsel %vm71, %v3275, 0.0
  %3278 = vadd.xlane.f32.xlu0 %v3277
  %v3279 = vpop.xlane.xlu0 %3278
  %v3280 = vsel %vm71, %v3276, 0.0
  %3281 = vadd.xlane.f32.xlu0 %v3280
  %v3282 = vpop.xlane.xlu0 %3281
  %v3283 = vmul.f32 %v3279, %v735
  %v3284 = vmul.f32 %v3282, %v735
  %v3285 = vadd.f32 %v3283, 1e-05
  %v3286 = vadd.f32 %v3284, 1e-05
  %v3287 = vrsqrt.pop %v3285
  %v3288 = vmul.f32 %v3287, %v3285
  %v3289 = vmul.f32 %v3288, %v3287
  %v3290 = vmul.f32 0.5, %v3289
  %v3291 = vsub.f32 1.5, %v3290
  %v3292 = vmul.f32 %v3287, %v3291
  %vm3293 = vweird.f32 %v3285
  %vm3294 = vweird.f32 %v3287
  %vm3295 = vmor %vm3293, %vm3294
  %v3296 = vsel %vm3295, %v3287, %v3292
  %v3297 = vrsqrt.pop %v3286
  %v3298 = vmul.f32 %v3297, %v3286
  %v3299 = vmul.f32 %v3298, %v3297
  %v3300 = vmul.f32 0.5, %v3299
  %v3301 = vsub.f32 1.5, %v3300
  %v3302 = vmul.f32 %v3297, %v3301
  %vm3303 = vweird.f32 %v3286
  %vm3304 = vweird.f32 %v3297
  %vm3305 = vmor %vm3303, %vm3304
  %v3306 = vsel %vm3305, %v3297, %v3302
  %v3307 = vmul.f32 %v3273, %v3296
  %v3308 = vmul.f32 %v3274, %v3306
  %v3309 = vmul.f32 %v3307, %v2597
  %v3310 = vmul.f32 %v3308, %v2597
  %v3311 = vadd.f32 %v3309, %v2598
  %v3312 = vadd.f32 %v3310, %v2598
  %v3313 = vpack.c.bf16 %v3312, %v3311
  %v3314 = vld [vmem:[%s8] sm:$0xff]
  %v3315 = vld [vmem:[%s8 + $0x8] sm:$0xff]
  %v3316 = vld [vmem:[%s8 + $0x40] sm:$0xff]
  %v3317 = vld [vmem:[%s8 + $0x48] sm:$0xff]
  %v3318 = vld [vmem:[%s8 + $0x80] sm:$0xff]
  %v3319 = vld [vmem:[%s8 + $0x88] sm:$0xff]
  %v3320 = vld [vmem:[%s8 + $0xc0] sm:$0xff]
  %v3321 = vld [vmem:[%s8 + $0xc8] sm:$0xff]
  %s3322 = scalar_lea.vmem %s1, 130
  %v3323 = vld [vmem:[%s3322] ss:$8 sm:$0xf]
  %v3325 = vperm.slane %v3323, 0
  %v3326 = vperm.slane %v3323, 1
  %v3327 = vperm.slane %v3323, 2
  %v3328 = vperm.slane %v3323, 3
  %v3341 = vunpack.c.l.b16 %v3314
  %v3342 = vunpack.c.h.b16 %v3314
  %v3343 = vunpack.c.l.b16 %v3315
  %v3344 = vunpack.c.h.b16 %v3315
  %v3345 = vunpack.c.l.b16 %v3316
  %v3346 = vunpack.c.h.b16 %v3316
  %v3347 = vunpack.c.l.b16 %v3317
  %v3348 = vunpack.c.h.b16 %v3317
  %v3349 = vunpack.c.l.b16 %v3318
  %v3350 = vunpack.c.h.b16 %v3318
  %v3351 = vunpack.c.l.b16 %v3319
  %v3352 = vunpack.c.h.b16 %v3319
  %v3353 = vunpack.c.l.b16 %v3320
  %v3354 = vunpack.c.h.b16 %v3320
  %v3355 = vunpack.c.l.b16 %v3321
  %v3356 = vunpack.c.h.b16 %v3321
  %v3357 = vpack.c.b16 %v3345, %v3341
  %v3358 = vpack.c.b16 %v3346, %v3342
  %v3359 = vpack.c.b16 %v3347, %v3343
  %v3360 = vpack.c.b16 %v3348, %v3344
  %v3361 = vpack.c.b16 %v3353, %v3349
  %v3362 = vpack.c.b16 %v3354, %v3350
  %v3363 = vpack.c.b16 %v3355, %v3351
  %v3364 = vpack.c.b16 %v3356, %v3352
  %v3374 = vsel %vm71, %v3313, 0
  %3376 = vmatpush.bf16.msra.mxu0 0
  %3377 = vmatpush.bf16.msra.mxu0 0
  %3378 = vmatpush.bf16.msra.mxu0 0
  %3379 = vmatpush.bf16.msra.mxu0 0
  %3380 = vmatpush.bf16.msra.mxu0 0
  %3381 = vmatpush.bf16.msra.mxu0 0
  %3382 = vmatpush.bf16.msra.mxu0 %v3361
  %3383 = vmatpush.bf16.msra.mxu0 %v3357
  %3384 = vmatmul.bf16.gmra.mxu0 %v3374
  %v3385 = vpop.f32.mrf.mxu0
  %v3386 = vadd.f32 %v3325, %v3385
  %v3387 = vpop.f32.mrf.mxu0
  %v3388 = vadd.f32 %v3325, %v3387
  %3389 = vdwg.mxu0
  %3390 = vmatpush.bf16.msra.mxu0 0
  %3391 = vmatpush.bf16.msra.mxu0 0
  %3392 = vmatpush.bf16.msra.mxu0 0
  %3393 = vmatpush.bf16.msra.mxu0 0
  %3394 = vmatpush.bf16.msra.mxu0 0
  %3395 = vmatpush.bf16.msra.mxu0 0
  %3396 = vmatpush.bf16.msra.mxu0 %v3362
  %3397 = vmatpush.bf16.msra.mxu0 %v3358
  %3398 = vmatmul.bf16.gmra.mxu0 %v3374
  %v3399 = vpop.f32.mrf.mxu0
  %v3400 = vadd.f32 %v3326, %v3399
  %v3401 = vpop.f32.mrf.mxu0
  %v3402 = vadd.f32 %v3326, %v3401
  %3403 = vdwg.mxu0
  %3404 = vmatpush.bf16.msra.mxu0 0
  %3405 = vmatpush.bf16.msra.mxu0 0
  %3406 = vmatpush.bf16.msra.mxu0 0
  %3407 = vmatpush.bf16.msra.mxu0 0
  %3408 = vmatpush.bf16.msra.mxu0 0
  %3409 = vmatpush.bf16.msra.mxu0 0
  %3410 = vmatpush.bf16.msra.mxu0 %v3363
  %3411 = vmatpush.bf16.msra.mxu0 %v3359
  %3412 = vmatmul.bf16.gmra.mxu0 %v3374
  %v3413 = vpop.f32.mrf.mxu0
  %v3414 = vadd.f32 %v3327, %v3413
  %v3415 = vpop.f32.mrf.mxu0
  %v3416 = vadd.f32 %v3327, %v3415
  %3417 = vdwg.mxu0
  %3418 = vmatpush.bf16.msra.mxu0 0
  %3419 = vmatpush.bf16.msra.mxu0 0
  %3420 = vmatpush.bf16.msra.mxu0 0
  %3421 = vmatpush.bf16.msra.mxu0 0
  %3422 = vmatpush.bf16.msra.mxu0 0
  %3423 = vmatpush.bf16.msra.mxu0 0
  %3424 = vmatpush.bf16.msra.mxu0 %v3364
  %3425 = vmatpush.bf16.msra.mxu0 %v3360
  %3426 = vmatmul.bf16.gmra.mxu0 %v3374
  %v3427 = vpop.f32.mrf.mxu0
  %v3428 = vadd.f32 %v3328, %v3427
  %v3429 = vpop.f32.mrf.mxu0
  %v3430 = vadd.f32 %v3328, %v3429
  %3431 = vdwg.mxu0
  %v3432 = vmax.f32 %v3386, 0.0
  %v3433 = vmax.f32 %v3400, 0.0
  %v3434 = vmax.f32 %v3414, 0.0
  %v3435 = vmax.f32 %v3428, 0.0
  %v3436 = vmax.f32 %v3388, 0.0
  %v3437 = vmax.f32 %v3402, 0.0
  %v3438 = vmax.f32 %v3416, 0.0
  %v3439 = vmax.f32 %v3430, 0.0
  %v3440 = vpack.c.bf16 %v3436, %v3432
  %v3441 = vpack.c.bf16 %v3437, %v3433
  %v3442 = vpack.c.bf16 %v3438, %v3434
  %v3443 = vpack.c.bf16 %v3439, %v3435
  %v3444 = vld [vmem:[%s9] sm:$0xf]
  %v3445 = vld [vmem:[%s9 + $0x4] sm:$0xf]
  %v3446 = vld [vmem:[%s9 + $0x8] sm:$0xf]
  %v3447 = vld [vmem:[%s9 + $0xc] sm:$0xf]
  %v3448 = vld [vmem:[%s9 + $0x10] sm:$0xf]
  %v3449 = vld [vmem:[%s9 + $0x14] sm:$0xf]
  %v3450 = vld [vmem:[%s9 + $0x18] sm:$0xf]
  %v3451 = vld [vmem:[%s9 + $0x1c] sm:$0xf]
  %v3452 = vld [vmem:[%s9 + $0x20] sm:$0xf]
  %v3453 = vld [vmem:[%s9 + $0x24] sm:$0xf]
  %v3454 = vld [vmem:[%s9 + $0x28] sm:$0xf]
  %v3455 = vld [vmem:[%s9 + $0x2c] sm:$0xf]
  %v3456 = vld [vmem:[%s9 + $0x30] sm:$0xf]
  %v3457 = vld [vmem:[%s9 + $0x34] sm:$0xf]
  %v3458 = vld [vmem:[%s9 + $0x38] sm:$0xf]
  %v3459 = vld [vmem:[%s9 + $0x3c] sm:$0xf]
  %v3460 = vld [vmem:[%s9 + $0x40] sm:$0xf]
  %v3461 = vld [vmem:[%s9 + $0x44] sm:$0xf]
  %v3462 = vld [vmem:[%s9 + $0x48] sm:$0xf]
  %v3463 = vld [vmem:[%s9 + $0x4c] sm:$0xf]
  %v3464 = vld [vmem:[%s9 + $0x50] sm:$0xf]
  %v3465 = vld [vmem:[%s9 + $0x54] sm:$0xf]
  %v3466 = vld [vmem:[%s9 + $0x58] sm:$0xf]
  %v3467 = vld [vmem:[%s9 + $0x5c] sm:$0xf]
  %v3468 = vld [vmem:[%s9 + $0x60] sm:$0xf]
  %v3469 = vld [vmem:[%s9 + $0x64] sm:$0xf]
  %v3470 = vld [vmem:[%s9 + $0x68] sm:$0xf]
  %v3471 = vld [vmem:[%s9 + $0x6c] sm:$0xf]
  %v3472 = vld [vmem:[%s9 + $0x70] sm:$0xf]
  %v3473 = vld [vmem:[%s9 + $0x74] sm:$0xf]
  %v3474 = vld [vmem:[%s9 + $0x78] sm:$0xf]
  %v3475 = vld [vmem:[%s9 + $0x7c] sm:$0xf]
  %v3476 = vld [vmem:[%s9 + $0x80] sm:$0xf]
  %v3477 = vld [vmem:[%s9 + $0x84] sm:$0xf]
  %v3478 = vld [vmem:[%s9 + $0x88] sm:$0xf]
  %v3479 = vld [vmem:[%s9 + $0x8c] sm:$0xf]
  %v3480 = vld [vmem:[%s9 + $0x90] sm:$0xf]
  %v3481 = vld [vmem:[%s9 + $0x94] sm:$0xf]
  %v3482 = vld [vmem:[%s9 + $0x98] sm:$0xf]
  %v3483 = vld [vmem:[%s9 + $0x9c] sm:$0xf]
  %v3484 = vld [vmem:[%s9 + $0xa0] sm:$0xf]
  %v3485 = vld [vmem:[%s9 + $0xa4] sm:$0xf]
  %v3486 = vld [vmem:[%s9 + $0xa8] sm:$0xf]
  %v3487 = vld [vmem:[%s9 + $0xac] sm:$0xf]
  %v3488 = vld [vmem:[%s9 + $0xb0] sm:$0xf]
  %v3489 = vld [vmem:[%s9 + $0xb4] sm:$0xf]
  %v3490 = vld [vmem:[%s9 + $0xb8] sm:$0xf]
  %v3491 = vld [vmem:[%s9 + $0xbc] sm:$0xf]
  %v3492 = vld [vmem:[%s9 + $0xc0] sm:$0xf]
  %v3493 = vld [vmem:[%s9 + $0xc4] sm:$0xf]
  %v3494 = vld [vmem:[%s9 + $0xc8] sm:$0xf]
  %v3495 = vld [vmem:[%s9 + $0xcc] sm:$0xf]
  %v3496 = vld [vmem:[%s9 + $0xd0] sm:$0xf]
  %v3497 = vld [vmem:[%s9 + $0xd4] sm:$0xf]
  %v3498 = vld [vmem:[%s9 + $0xd8] sm:$0xf]
  %v3499 = vld [vmem:[%s9 + $0xdc] sm:$0xf]
  %v3500 = vld [vmem:[%s9 + $0xe0] sm:$0xf]
  %v3501 = vld [vmem:[%s9 + $0xe4] sm:$0xf]
  %v3502 = vld [vmem:[%s9 + $0xe8] sm:$0xf]
  %v3503 = vld [vmem:[%s9 + $0xec] sm:$0xf]
  %v3504 = vld [vmem:[%s9 + $0xf0] sm:$0xf]
  %v3505 = vld [vmem:[%s9 + $0xf4] sm:$0xf]
  %v3506 = vld [vmem:[%s9 + $0xf8] sm:$0xf]
  %v3507 = vld [vmem:[%s9 + $0xfc] sm:$0xf]
  %v3508 = vld [vmem:[%s8 + $0x10] sm:$0xff]
  %v3509 = vld [vmem:[%s8 + $0x18] sm:$0xff]
  %v3510 = vld [vmem:[%s8 + $0x50] sm:$0xff]
  %v3511 = vld [vmem:[%s8 + $0x58] sm:$0xff]
  %v3512 = vld [vmem:[%s8 + $0x90] sm:$0xff]
  %v3513 = vld [vmem:[%s8 + $0x98] sm:$0xff]
  %v3514 = vld [vmem:[%s8 + $0xd0] sm:$0xff]
  %v3515 = vld [vmem:[%s8 + $0xd8] sm:$0xff]
  %s3516 = scalar_lea.vmem %s1, 162
  %v3517 = vld [vmem:[%s3516] ss:$8 sm:$0xf]
  %v3519 = vperm.slane %v3517, 0
  %v3520 = vperm.slane %v3517, 1
  %v3521 = vperm.slane %v3517, 2
  %v3522 = vperm.slane %v3517, 3
  %v3535 = vunpack.c.l.b16 %v3508
  %v3536 = vunpack.c.h.b16 %v3508
  %v3537 = vunpack.c.l.b16 %v3509
  %v3538 = vunpack.c.h.b16 %v3509
  %v3539 = vunpack.c.l.b16 %v3510
  %v3540 = vunpack.c.h.b16 %v3510
  %v3541 = vunpack.c.l.b16 %v3511
  %v3542 = vunpack.c.h.b16 %v3511
  %v3543 = vunpack.c.l.b16 %v3512
  %v3544 = vunpack.c.h.b16 %v3512
  %v3545 = vunpack.c.l.b16 %v3513
  %v3546 = vunpack.c.h.b16 %v3513
  %v3547 = vunpack.c.l.b16 %v3514
  %v3548 = vunpack.c.h.b16 %v3514
  %v3549 = vunpack.c.l.b16 %v3515
  %v3550 = vunpack.c.h.b16 %v3515
  %v3551 = vpack.c.b16 %v3539, %v3535
  %v3552 = vpack.c.b16 %v3540, %v3536
  %v3553 = vpack.c.b16 %v3541, %v3537
  %v3554 = vpack.c.b16 %v3542, %v3538
  %v3555 = vpack.c.b16 %v3547, %v3543
  %v3556 = vpack.c.b16 %v3548, %v3544
  %v3557 = vpack.c.b16 %v3549, %v3545
  %v3558 = vpack.c.b16 %v3550, %v3546
  %3567 = vmatpush.bf16.msra.mxu0 0
  %3568 = vmatpush.bf16.msra.mxu0 0
  %3569 = vmatpush.bf16.msra.mxu0 0
  %3570 = vmatpush.bf16.msra.mxu0 0
  %3571 = vmatpush.bf16.msra.mxu0 0
  %3572 = vmatpush.bf16.msra.mxu0 0
  %3573 = vmatpush.bf16.msra.mxu0 %v3555
  %3574 = vmatpush.bf16.msra.mxu0 %v3551
  %3575 = vmatmul.bf16.gmra.mxu0 %v3374
  %v3576 = vpop.f32.mrf.mxu0
  %v3577 = vadd.f32 %v3519, %v3576
  %v3578 = vpop.f32.mrf.mxu0
  %v3579 = vadd.f32 %v3519, %v3578
  %3580 = vdwg.mxu0
  %3581 = vmatpush.bf16.msra.mxu0 0
  %3582 = vmatpush.bf16.msra.mxu0 0
  %3583 = vmatpush.bf16.msra.mxu0 0
  %3584 = vmatpush.bf16.msra.mxu0 0
  %3585 = vmatpush.bf16.msra.mxu0 0
  %3586 = vmatpush.bf16.msra.mxu0 0
  %3587 = vmatpush.bf16.msra.mxu0 %v3556
  %3588 = vmatpush.bf16.msra.mxu0 %v3552
  %3589 = vmatmul.bf16.gmra.mxu0 %v3374
  %v3590 = vpop.f32.mrf.mxu0
  %v3591 = vadd.f32 %v3520, %v3590
  %v3592 = vpop.f32.mrf.mxu0
  %v3593 = vadd.f32 %v3520, %v3592
  %3594 = vdwg.mxu0
  %3595 = vmatpush.bf16.msra.mxu0 0
  %3596 = vmatpush.bf16.msra.mxu0 0
  %3597 = vmatpush.bf16.msra.mxu0 0
  %3598 = vmatpush.bf16.msra.mxu0 0
  %3599 = vmatpush.bf16.msra.mxu0 0
  %3600 = vmatpush.bf16.msra.mxu0 0
  %3601 = vmatpush.bf16.msra.mxu0 %v3557
  %3602 = vmatpush.bf16.msra.mxu0 %v3553
  %3603 = vmatmul.bf16.gmra.mxu0 %v3374
  %v3604 = vpop.f32.mrf.mxu0
  %v3605 = vadd.f32 %v3521, %v3604
  %v3606 = vpop.f32.mrf.mxu0
  %v3607 = vadd.f32 %v3521, %v3606
  %3608 = vdwg.mxu0
  %3609 = vmatpush.bf16.msra.mxu0 0
  %3610 = vmatpush.bf16.msra.mxu0 0
  %3611 = vmatpush.bf16.msra.mxu0 0
  %3612 = vmatpush.bf16.msra.mxu0 0
  %3613 = vmatpush.bf16.msra.mxu0 0
  %3614 = vmatpush.bf16.msra.mxu0 0
  %3615 = vmatpush.bf16.msra.mxu0 %v3558
  %3616 = vmatpush.bf16.msra.mxu0 %v3554
  %3617 = vmatmul.bf16.gmra.mxu0 %v3374
  %v3618 = vpop.f32.mrf.mxu0
  %v3619 = vadd.f32 %v3522, %v3618
  %v3620 = vpop.f32.mrf.mxu0
  %v3621 = vadd.f32 %v3522, %v3620
  %3622 = vdwg.mxu0
  %v3623 = vmax.f32 %v3577, 0.0
  %v3624 = vmax.f32 %v3591, 0.0
  %v3625 = vmax.f32 %v3605, 0.0
  %v3626 = vmax.f32 %v3619, 0.0
  %v3627 = vmax.f32 %v3579, 0.0
  %v3628 = vmax.f32 %v3593, 0.0
  %v3629 = vmax.f32 %v3607, 0.0
  %v3630 = vmax.f32 %v3621, 0.0
  %v3631 = vpack.c.bf16 %v3627, %v3623
  %v3632 = vpack.c.bf16 %v3628, %v3624
  %v3633 = vpack.c.bf16 %v3629, %v3625
  %v3634 = vpack.c.bf16 %v3630, %v3626
  %v3635 = vld [vmem:[%s9 + $0x100] sm:$0xf]
  %v3636 = vld [vmem:[%s9 + $0x104] sm:$0xf]
  %v3637 = vld [vmem:[%s9 + $0x108] sm:$0xf]
  %v3638 = vld [vmem:[%s9 + $0x10c] sm:$0xf]
  %v3639 = vld [vmem:[%s9 + $0x110] sm:$0xf]
  %v3640 = vld [vmem:[%s9 + $0x114] sm:$0xf]
  %v3641 = vld [vmem:[%s9 + $0x118] sm:$0xf]
  %v3642 = vld [vmem:[%s9 + $0x11c] sm:$0xf]
  %v3643 = vld [vmem:[%s9 + $0x120] sm:$0xf]
  %v3644 = vld [vmem:[%s9 + $0x124] sm:$0xf]
  %v3645 = vld [vmem:[%s9 + $0x128] sm:$0xf]
  %v3646 = vld [vmem:[%s9 + $0x12c] sm:$0xf]
  %v3647 = vld [vmem:[%s9 + $0x130] sm:$0xf]
  %v3648 = vld [vmem:[%s9 + $0x134] sm:$0xf]
  %v3649 = vld [vmem:[%s9 + $0x138] sm:$0xf]
  %v3650 = vld [vmem:[%s9 + $0x13c] sm:$0xf]
  %v3651 = vld [vmem:[%s9 + $0x140] sm:$0xf]
  %v3652 = vld [vmem:[%s9 + $0x144] sm:$0xf]
  %v3653 = vld [vmem:[%s9 + $0x148] sm:$0xf]
  %v3654 = vld [vmem:[%s9 + $0x14c] sm:$0xf]
  %v3655 = vld [vmem:[%s9 + $0x150] sm:$0xf]
  %v3656 = vld [vmem:[%s9 + $0x154] sm:$0xf]
  %v3657 = vld [vmem:[%s9 + $0x158] sm:$0xf]
  %v3658 = vld [vmem:[%s9 + $0x15c] sm:$0xf]
  %v3659 = vld [vmem:[%s9 + $0x160] sm:$0xf]
  %v3660 = vld [vmem:[%s9 + $0x164] sm:$0xf]
  %v3661 = vld [vmem:[%s9 + $0x168] sm:$0xf]
  %v3662 = vld [vmem:[%s9 + $0x16c] sm:$0xf]
  %v3663 = vld [vmem:[%s9 + $0x170] sm:$0xf]
  %v3664 = vld [vmem:[%s9 + $0x174] sm:$0xf]
  %v3665 = vld [vmem:[%s9 + $0x178] sm:$0xf]
  %v3666 = vld [vmem:[%s9 + $0x17c] sm:$0xf]
  %v3667 = vld [vmem:[%s9 + $0x180] sm:$0xf]
  %v3668 = vld [vmem:[%s9 + $0x184] sm:$0xf]
  %v3669 = vld [vmem:[%s9 + $0x188] sm:$0xf]
  %v3670 = vld [vmem:[%s9 + $0x18c] sm:$0xf]
  %v3671 = vld [vmem:[%s9 + $0x190] sm:$0xf]
  %v3672 = vld [vmem:[%s9 + $0x194] sm:$0xf]
  %v3673 = vld [vmem:[%s9 + $0x198] sm:$0xf]
  %v3674 = vld [vmem:[%s9 + $0x19c] sm:$0xf]
  %v3675 = vld [vmem:[%s9 + $0x1a0] sm:$0xf]
  %v3676 = vld [vmem:[%s9 + $0x1a4] sm:$0xf]
  %v3677 = vld [vmem:[%s9 + $0x1a8] sm:$0xf]
  %v3678 = vld [vmem:[%s9 + $0x1ac] sm:$0xf]
  %v3679 = vld [vmem:[%s9 + $0x1b0] sm:$0xf]
  %v3680 = vld [vmem:[%s9 + $0x1b4] sm:$0xf]
  %v3681 = vld [vmem:[%s9 + $0x1b8] sm:$0xf]
  %v3682 = vld [vmem:[%s9 + $0x1bc] sm:$0xf]
  %v3683 = vld [vmem:[%s9 + $0x1c0] sm:$0xf]
  %v3684 = vld [vmem:[%s9 + $0x1c4] sm:$0xf]
  %v3685 = vld [vmem:[%s9 + $0x1c8] sm:$0xf]
  %v3686 = vld [vmem:[%s9 + $0x1cc] sm:$0xf]
  %v3687 = vld [vmem:[%s9 + $0x1d0] sm:$0xf]
  %v3688 = vld [vmem:[%s9 + $0x1d4] sm:$0xf]
  %v3689 = vld [vmem:[%s9 + $0x1d8] sm:$0xf]
  %v3690 = vld [vmem:[%s9 + $0x1dc] sm:$0xf]
  %v3691 = vld [vmem:[%s9 + $0x1e0] sm:$0xf]
  %v3692 = vld [vmem:[%s9 + $0x1e4] sm:$0xf]
  %v3693 = vld [vmem:[%s9 + $0x1e8] sm:$0xf]
  %v3694 = vld [vmem:[%s9 + $0x1ec] sm:$0xf]
  %v3695 = vld [vmem:[%s9 + $0x1f0] sm:$0xf]
  %v3696 = vld [vmem:[%s9 + $0x1f4] sm:$0xf]
  %v3697 = vld [vmem:[%s9 + $0x1f8] sm:$0xf]
  %v3698 = vld [vmem:[%s9 + $0x1fc] sm:$0xf]
  %v3763 = vunpack.c.l.b16 %v3635
  %v3764 = vunpack.c.l.b16 %v3636
  %v3765 = vunpack.c.l.b16 %v3637
  %v3766 = vunpack.c.l.b16 %v3638
  %v3767 = vunpack.c.l.b16 %v3639
  %v3768 = vunpack.c.l.b16 %v3640
  %v3769 = vunpack.c.l.b16 %v3641
  %v3770 = vunpack.c.l.b16 %v3642
  %v3771 = vunpack.c.l.b16 %v3643
  %v3772 = vunpack.c.l.b16 %v3644
  %v3773 = vunpack.c.l.b16 %v3645
  %v3774 = vunpack.c.l.b16 %v3646
  %v3775 = vunpack.c.l.b16 %v3647
  %v3776 = vunpack.c.l.b16 %v3648
  %v3777 = vunpack.c.l.b16 %v3649
  %v3778 = vunpack.c.l.b16 %v3650
  %v3779 = vunpack.c.l.b16 %v3651
  %v3780 = vunpack.c.l.b16 %v3652
  %v3781 = vunpack.c.l.b16 %v3653
  %v3782 = vunpack.c.l.b16 %v3654
  %v3783 = vunpack.c.l.b16 %v3655
  %v3784 = vunpack.c.l.b16 %v3656
  %v3785 = vunpack.c.l.b16 %v3657
  %v3786 = vunpack.c.l.b16 %v3658
  %v3787 = vunpack.c.l.b16 %v3659
  %v3788 = vunpack.c.l.b16 %v3660
  %v3789 = vunpack.c.l.b16 %v3661
  %v3790 = vunpack.c.l.b16 %v3662
  %v3791 = vunpack.c.l.b16 %v3663
  %v3792 = vunpack.c.l.b16 %v3664
  %v3793 = vunpack.c.l.b16 %v3665
  %v3794 = vunpack.c.l.b16 %v3666
  %v3795 = vunpack.c.l.b16 %v3667
  %v3796 = vunpack.c.l.b16 %v3668
  %v3797 = vunpack.c.l.b16 %v3669
  %v3798 = vunpack.c.l.b16 %v3670
  %v3799 = vunpack.c.l.b16 %v3671
  %v3800 = vunpack.c.l.b16 %v3672
  %v3801 = vunpack.c.l.b16 %v3673
  %v3802 = vunpack.c.l.b16 %v3674
  %v3803 = vunpack.c.l.b16 %v3675
  %v3804 = vunpack.c.l.b16 %v3676
  %v3805 = vunpack.c.l.b16 %v3677
  %v3806 = vunpack.c.l.b16 %v3678
  %v3807 = vunpack.c.l.b16 %v3679
  %v3808 = vunpack.c.l.b16 %v3680
  %v3809 = vunpack.c.l.b16 %v3681
  %v3810 = vunpack.c.l.b16 %v3682
  %v3811 = vunpack.c.l.b16 %v3683
  %v3812 = vunpack.c.l.b16 %v3684
  %v3813 = vunpack.c.l.b16 %v3685
  %v3814 = vunpack.c.l.b16 %v3686
  %v3815 = vunpack.c.l.b16 %v3687
  %v3816 = vunpack.c.l.b16 %v3688
  %v3817 = vunpack.c.l.b16 %v3689
  %v3818 = vunpack.c.l.b16 %v3690
  %v3819 = vunpack.c.l.b16 %v3691
  %v3820 = vunpack.c.l.b16 %v3692
  %v3821 = vunpack.c.l.b16 %v3693
  %v3822 = vunpack.c.l.b16 %v3694
  %v3823 = vunpack.c.l.b16 %v3695
  %v3824 = vunpack.c.l.b16 %v3696
  %v3825 = vunpack.c.l.b16 %v3697
  %v3826 = vunpack.c.l.b16 %v3698
  %v3827 = vpack.c.b16 %v3764, %v3763
  %v3828 = vpack.c.b16 %v3766, %v3765
  %v3829 = vpack.c.b16 %v3768, %v3767
  %v3830 = vpack.c.b16 %v3770, %v3769
  %v3831 = vpack.c.b16 %v3772, %v3771
  %v3832 = vpack.c.b16 %v3774, %v3773
  %v3833 = vpack.c.b16 %v3776, %v3775
  %v3834 = vpack.c.b16 %v3778, %v3777
  %v3835 = vpack.c.b16 %v3780, %v3779
  %v3836 = vpack.c.b16 %v3782, %v3781
  %v3837 = vpack.c.b16 %v3784, %v3783
  %v3838 = vpack.c.b16 %v3786, %v3785
  %v3839 = vpack.c.b16 %v3788, %v3787
  %v3840 = vpack.c.b16 %v3790, %v3789
  %v3841 = vpack.c.b16 %v3792, %v3791
  %v3842 = vpack.c.b16 %v3794, %v3793
  %v3843 = vpack.c.b16 %v3796, %v3795
  %v3844 = vpack.c.b16 %v3798, %v3797
  %v3845 = vpack.c.b16 %v3800, %v3799
  %v3846 = vpack.c.b16 %v3802, %v3801
  %v3847 = vpack.c.b16 %v3804, %v3803
  %v3848 = vpack.c.b16 %v3806, %v3805
  %v3849 = vpack.c.b16 %v3808, %v3807
  %v3850 = vpack.c.b16 %v3810, %v3809
  %v3851 = vpack.c.b16 %v3812, %v3811
  %v3852 = vpack.c.b16 %v3814, %v3813
  %v3853 = vpack.c.b16 %v3816, %v3815
  %v3854 = vpack.c.b16 %v3818, %v3817
  %v3855 = vpack.c.b16 %v3820, %v3819
  %v3856 = vpack.c.b16 %v3822, %v3821
  %v3857 = vpack.c.b16 %v3824, %v3823
  %v3858 = vpack.c.b16 %v3826, %v3825
  %3891 = vmatpush.bf16.msra.mxu0 %v3834
  %3892 = vmatpush.bf16.msra.mxu0 %v3833
  %3893 = vmatpush.bf16.msra.mxu0 %v3832
  %3894 = vmatpush.bf16.msra.mxu0 %v3831
  %3895 = vmatpush.bf16.msra.mxu0 %v3830
  %3896 = vmatpush.bf16.msra.mxu0 %v3829
  %3897 = vmatpush.bf16.msra.mxu0 %v3828
  %3898 = vmatpush.bf16.msra.mxu0 %v3827
  %3899 = vmatmul.bf16.gmra.mxu0 %v3631
  %v3900 = vpop.f32.mrf.mxu0
  %v3901 = vadd.f32 0.0, %v3900
  %v3902 = vpop.f32.mrf.mxu0
  %v3903 = vadd.f32 0.0, %v3902
  %3904 = vdwg.mxu0
  %3905 = vmatpush.bf16.msra.mxu0 %v3842
  %3906 = vmatpush.bf16.msra.mxu0 %v3841
  %3907 = vmatpush.bf16.msra.mxu0 %v3840
  %3908 = vmatpush.bf16.msra.mxu0 %v3839
  %3909 = vmatpush.bf16.msra.mxu0 %v3838
  %3910 = vmatpush.bf16.msra.mxu0 %v3837
  %3911 = vmatpush.bf16.msra.mxu0 %v3836
  %3912 = vmatpush.bf16.msra.mxu0 %v3835
  %3913 = vmatmul.bf16.gmra.mxu0 %v3632
  %v3914 = vpop.f32.mrf.mxu0
  %v3915 = vadd.f32 %v3901, %v3914
  %v3916 = vpop.f32.mrf.mxu0
  %v3917 = vadd.f32 %v3903, %v3916
  %3918 = vdwg.mxu0
  %3919 = vmatpush.bf16.msra.mxu0 %v3850
  %3920 = vmatpush.bf16.msra.mxu0 %v3849
  %3921 = vmatpush.bf16.msra.mxu0 %v3848
  %3922 = vmatpush.bf16.msra.mxu0 %v3847
  %3923 = vmatpush.bf16.msra.mxu0 %v3846
  %3924 = vmatpush.bf16.msra.mxu0 %v3845
  %3925 = vmatpush.bf16.msra.mxu0 %v3844
  %3926 = vmatpush.bf16.msra.mxu0 %v3843
  %3927 = vmatmul.bf16.gmra.mxu0 %v3633
  %v3928 = vpop.f32.mrf.mxu0
  %v3929 = vadd.f32 %v3915, %v3928
  %v3930 = vpop.f32.mrf.mxu0
  %v3931 = vadd.f32 %v3917, %v3930
  %3932 = vdwg.mxu0
  %3933 = vmatpush.bf16.msra.mxu0 %v3858
  %3934 = vmatpush.bf16.msra.mxu0 %v3857
  %3935 = vmatpush.bf16.msra.mxu0 %v3856
  %3936 = vmatpush.bf16.msra.mxu0 %v3855
  %3937 = vmatpush.bf16.msra.mxu0 %v3854
  %3938 = vmatpush.bf16.msra.mxu0 %v3853
  %3939 = vmatpush.bf16.msra.mxu0 %v3852
  %3940 = vmatpush.bf16.msra.mxu0 %v3851
  %3941 = vmatmul.bf16.gmra.mxu0 %v3634
  %v3942 = vpop.f32.mrf.mxu0
  %v3943 = vadd.f32 %v3929, %v3942
  %v3944 = vpop.f32.mrf.mxu0
  %v3945 = vadd.f32 %v3931, %v3944
  %3946 = vdwg.mxu0
  %v4011 = vunpack.c.l.b16 %v3444
  %v4012 = vunpack.c.l.b16 %v3445
  %v4013 = vunpack.c.l.b16 %v3446
  %v4014 = vunpack.c.l.b16 %v3447
  %v4015 = vunpack.c.l.b16 %v3448
  %v4016 = vunpack.c.l.b16 %v3449
  %v4017 = vunpack.c.l.b16 %v3450
  %v4018 = vunpack.c.l.b16 %v3451
  %v4019 = vunpack.c.l.b16 %v3452
  %v4020 = vunpack.c.l.b16 %v3453
  %v4021 = vunpack.c.l.b16 %v3454
  %v4022 = vunpack.c.l.b16 %v3455
  %v4023 = vunpack.c.l.b16 %v3456
  %v4024 = vunpack.c.l.b16 %v3457
  %v4025 = vunpack.c.l.b16 %v3458
  %v4026 = vunpack.c.l.b16 %v3459
  %v4027 = vunpack.c.l.b16 %v3460
  %v4028 = vunpack.c.l.b16 %v3461
  %v4029 = vunpack.c.l.b16 %v3462
  %v4030 = vunpack.c.l.b16 %v3463
  %v4031 = vunpack.c.l.b16 %v3464
  %v4032 = vunpack.c.l.b16 %v3465
  %v4033 = vunpack.c.l.b16 %v3466
  %v4034 = vunpack.c.l.b16 %v3467
  %v4035 = vunpack.c.l.b16 %v3468
  %v4036 = vunpack.c.l.b16 %v3469
  %v4037 = vunpack.c.l.b16 %v3470
  %v4038 = vunpack.c.l.b16 %v3471
  %v4039 = vunpack.c.l.b16 %v3472
  %v4040 = vunpack.c.l.b16 %v3473
  %v4041 = vunpack.c.l.b16 %v3474
  %v4042 = vunpack.c.l.b16 %v3475
  %v4043 = vunpack.c.l.b16 %v3476
  %v4044 = vunpack.c.l.b16 %v3477
  %v4045 = vunpack.c.l.b16 %v3478
  %v4046 = vunpack.c.l.b16 %v3479
  %v4047 = vunpack.c.l.b16 %v3480
  %v4048 = vunpack.c.l.b16 %v3481
  %v4049 = vunpack.c.l.b16 %v3482
  %v4050 = vunpack.c.l.b16 %v3483
  %v4051 = vunpack.c.l.b16 %v3484
  %v4052 = vunpack.c.l.b16 %v3485
  %v4053 = vunpack.c.l.b16 %v3486
  %v4054 = vunpack.c.l.b16 %v3487
  %v4055 = vunpack.c.l.b16 %v3488
  %v4056 = vunpack.c.l.b16 %v3489
  %v4057 = vunpack.c.l.b16 %v3490
  %v4058 = vunpack.c.l.b16 %v3491
  %v4059 = vunpack.c.l.b16 %v3492
  %v4060 = vunpack.c.l.b16 %v3493
  %v4061 = vunpack.c.l.b16 %v3494
  %v4062 = vunpack.c.l.b16 %v3495
  %v4063 = vunpack.c.l.b16 %v3496
  %v4064 = vunpack.c.l.b16 %v3497
  %v4065 = vunpack.c.l.b16 %v3498
  %v4066 = vunpack.c.l.b16 %v3499
  %v4067 = vunpack.c.l.b16 %v3500
  %v4068 = vunpack.c.l.b16 %v3501
  %v4069 = vunpack.c.l.b16 %v3502
  %v4070 = vunpack.c.l.b16 %v3503
  %v4071 = vunpack.c.l.b16 %v3504
  %v4072 = vunpack.c.l.b16 %v3505
  %v4073 = vunpack.c.l.b16 %v3506
  %v4074 = vunpack.c.l.b16 %v3507
  %v4075 = vpack.c.b16 %v4012, %v4011
  %v4076 = vpack.c.b16 %v4014, %v4013
  %v4077 = vpack.c.b16 %v4016, %v4015
  %v4078 = vpack.c.b16 %v4018, %v4017
  %v4079 = vpack.c.b16 %v4020, %v4019
  %v4080 = vpack.c.b16 %v4022, %v4021
  %v4081 = vpack.c.b16 %v4024, %v4023
  %v4082 = vpack.c.b16 %v4026, %v4025
  %v4083 = vpack.c.b16 %v4028, %v4027
  %v4084 = vpack.c.b16 %v4030, %v4029
  %v4085 = vpack.c.b16 %v4032, %v4031
  %v4086 = vpack.c.b16 %v4034, %v4033
  %v4087 = vpack.c.b16 %v4036, %v4035
  %v4088 = vpack.c.b16 %v4038, %v4037
  %v4089 = vpack.c.b16 %v4040, %v4039
  %v4090 = vpack.c.b16 %v4042, %v4041
  %v4091 = vpack.c.b16 %v4044, %v4043
  %v4092 = vpack.c.b16 %v4046, %v4045
  %v4093 = vpack.c.b16 %v4048, %v4047
  %v4094 = vpack.c.b16 %v4050, %v4049
  %v4095 = vpack.c.b16 %v4052, %v4051
  %v4096 = vpack.c.b16 %v4054, %v4053
  %v4097 = vpack.c.b16 %v4056, %v4055
  %v4098 = vpack.c.b16 %v4058, %v4057
  %v4099 = vpack.c.b16 %v4060, %v4059
  %v4100 = vpack.c.b16 %v4062, %v4061
  %v4101 = vpack.c.b16 %v4064, %v4063
  %v4102 = vpack.c.b16 %v4066, %v4065
  %v4103 = vpack.c.b16 %v4068, %v4067
  %v4104 = vpack.c.b16 %v4070, %v4069
  %v4105 = vpack.c.b16 %v4072, %v4071
  %v4106 = vpack.c.b16 %v4074, %v4073
  %4139 = vmatpush.bf16.msra.mxu0 %v4082
  %4140 = vmatpush.bf16.msra.mxu0 %v4081
  %4141 = vmatpush.bf16.msra.mxu0 %v4080
  %4142 = vmatpush.bf16.msra.mxu0 %v4079
  %4143 = vmatpush.bf16.msra.mxu0 %v4078
  %4144 = vmatpush.bf16.msra.mxu0 %v4077
  %4145 = vmatpush.bf16.msra.mxu0 %v4076
  %4146 = vmatpush.bf16.msra.mxu0 %v4075
  %4147 = vmatmul.bf16.gmra.mxu0 %v3440
  %v4148 = vpop.f32.mrf.mxu0
  %v4149 = vadd.f32 %v3943, %v4148
  %v4150 = vpop.f32.mrf.mxu0
  %v4151 = vadd.f32 %v3945, %v4150
  %4152 = vdwg.mxu0
  %4153 = vmatpush.bf16.msra.mxu0 %v4090
  %4154 = vmatpush.bf16.msra.mxu0 %v4089
  %4155 = vmatpush.bf16.msra.mxu0 %v4088
  %4156 = vmatpush.bf16.msra.mxu0 %v4087
  %4157 = vmatpush.bf16.msra.mxu0 %v4086
  %4158 = vmatpush.bf16.msra.mxu0 %v4085
  %4159 = vmatpush.bf16.msra.mxu0 %v4084
  %4160 = vmatpush.bf16.msra.mxu0 %v4083
  %4161 = vmatmul.bf16.gmra.mxu0 %v3441
  %v4162 = vpop.f32.mrf.mxu0
  %v4163 = vadd.f32 %v4149, %v4162
  %v4164 = vpop.f32.mrf.mxu0
  %v4165 = vadd.f32 %v4151, %v4164
  %4166 = vdwg.mxu0
  %4167 = vmatpush.bf16.msra.mxu0 %v4098
  %4168 = vmatpush.bf16.msra.mxu0 %v4097
  %4169 = vmatpush.bf16.msra.mxu0 %v4096
  %4170 = vmatpush.bf16.msra.mxu0 %v4095
  %4171 = vmatpush.bf16.msra.mxu0 %v4094
  %4172 = vmatpush.bf16.msra.mxu0 %v4093
  %4173 = vmatpush.bf16.msra.mxu0 %v4092
  %4174 = vmatpush.bf16.msra.mxu0 %v4091
  %4175 = vmatmul.bf16.gmra.mxu0 %v3442
  %v4176 = vpop.f32.mrf.mxu0
  %v4177 = vadd.f32 %v4163, %v4176
  %v4178 = vpop.f32.mrf.mxu0
  %v4179 = vadd.f32 %v4165, %v4178
  %4180 = vdwg.mxu0
  %4181 = vmatpush.bf16.msra.mxu0 %v4106
  %4182 = vmatpush.bf16.msra.mxu0 %v4105
  %4183 = vmatpush.bf16.msra.mxu0 %v4104
  %4184 = vmatpush.bf16.msra.mxu0 %v4103
  %4185 = vmatpush.bf16.msra.mxu0 %v4102
  %4186 = vmatpush.bf16.msra.mxu0 %v4101
  %4187 = vmatpush.bf16.msra.mxu0 %v4100
  %4188 = vmatpush.bf16.msra.mxu0 %v4099
  %4189 = vmatmul.bf16.gmra.mxu0 %v3443
  %v4190 = vpop.f32.mrf.mxu0
  %v4191 = vadd.f32 %v4177, %v4190
  %v4192 = vpop.f32.mrf.mxu0
  %v4193 = vadd.f32 %v4179, %v4192
  %4194 = vdwg.mxu0
  %v4195 = vld [vmem:[%s8 + $0x20] sm:$0xff]
  %v4196 = vld [vmem:[%s8 + $0x28] sm:$0xff]
  %v4197 = vld [vmem:[%s8 + $0x60] sm:$0xff]
  %v4198 = vld [vmem:[%s8 + $0x68] sm:$0xff]
  %v4199 = vld [vmem:[%s8 + $0xa0] sm:$0xff]
  %v4200 = vld [vmem:[%s8 + $0xa8] sm:$0xff]
  %v4201 = vld [vmem:[%s8 + $0xe0] sm:$0xff]
  %v4202 = vld [vmem:[%s8 + $0xe8] sm:$0xff]
  %s4203 = scalar_lea.vmem %s1, 194
  %v4204 = vld [vmem:[%s4203] ss:$8 sm:$0xf]
  %v4206 = vperm.slane %v4204, 0
  %v4207 = vperm.slane %v4204, 1
  %v4208 = vperm.slane %v4204, 2
  %v4209 = vperm.slane %v4204, 3
  %v4222 = vunpack.c.l.b16 %v4195
  %v4223 = vunpack.c.h.b16 %v4195
  %v4224 = vunpack.c.l.b16 %v4196
  %v4225 = vunpack.c.h.b16 %v4196
  %v4226 = vunpack.c.l.b16 %v4197
  %v4227 = vunpack.c.h.b16 %v4197
  %v4228 = vunpack.c.l.b16 %v4198
  %v4229 = vunpack.c.h.b16 %v4198
  %v4230 = vunpack.c.l.b16 %v4199
  %v4231 = vunpack.c.h.b16 %v4199
  %v4232 = vunpack.c.l.b16 %v4200
  %v4233 = vunpack.c.h.b16 %v4200
  %v4234 = vunpack.c.l.b16 %v4201
  %v4235 = vunpack.c.h.b16 %v4201
  %v4236 = vunpack.c.l.b16 %v4202
  %v4237 = vunpack.c.h.b16 %v4202
  %v4238 = vpack.c.b16 %v4226, %v4222
  %v4239 = vpack.c.b16 %v4227, %v4223
  %v4240 = vpack.c.b16 %v4228, %v4224
  %v4241 = vpack.c.b16 %v4229, %v4225
  %v4242 = vpack.c.b16 %v4234, %v4230
  %v4243 = vpack.c.b16 %v4235, %v4231
  %v4244 = vpack.c.b16 %v4236, %v4232
  %v4245 = vpack.c.b16 %v4237, %v4233
  %4254 = vmatpush.bf16.msra.mxu0 0
  %4255 = vmatpush.bf16.msra.mxu0 0
  %4256 = vmatpush.bf16.msra.mxu0 0
  %4257 = vmatpush.bf16.msra.mxu0 0
  %4258 = vmatpush.bf16.msra.mxu0 0
  %4259 = vmatpush.bf16.msra.mxu0 0
  %4260 = vmatpush.bf16.msra.mxu0 %v4242
  %4261 = vmatpush.bf16.msra.mxu0 %v4238
  %4262 = vmatmul.bf16.gmra.mxu0 %v3374
  %v4263 = vpop.f32.mrf.mxu0
  %v4264 = vadd.f32 %v4206, %v4263
  %v4265 = vpop.f32.mrf.mxu0
  %v4266 = vadd.f32 %v4206, %v4265
  %4267 = vdwg.mxu0
  %4268 = vmatpush.bf16.msra.mxu0 0
  %4269 = vmatpush.bf16.msra.mxu0 0
  %4270 = vmatpush.bf16.msra.mxu0 0
  %4271 = vmatpush.bf16.msra.mxu0 0
  %4272 = vmatpush.bf16.msra.mxu0 0
  %4273 = vmatpush.bf16.msra.mxu0 0
  %4274 = vmatpush.bf16.msra.mxu0 %v4243
  %4275 = vmatpush.bf16.msra.mxu0 %v4239
  %4276 = vmatmul.bf16.gmra.mxu0 %v3374
  %v4277 = vpop.f32.mrf.mxu0
  %v4278 = vadd.f32 %v4207, %v4277
  %v4279 = vpop.f32.mrf.mxu0
  %v4280 = vadd.f32 %v4207, %v4279
  %4281 = vdwg.mxu0
  %4282 = vmatpush.bf16.msra.mxu0 0
  %4283 = vmatpush.bf16.msra.mxu0 0
  %4284 = vmatpush.bf16.msra.mxu0 0
  %4285 = vmatpush.bf16.msra.mxu0 0
  %4286 = vmatpush.bf16.msra.mxu0 0
  %4287 = vmatpush.bf16.msra.mxu0 0
  %4288 = vmatpush.bf16.msra.mxu0 %v4244
  %4289 = vmatpush.bf16.msra.mxu0 %v4240
  %4290 = vmatmul.bf16.gmra.mxu0 %v3374
  %v4291 = vpop.f32.mrf.mxu0
  %v4292 = vadd.f32 %v4208, %v4291
  %v4293 = vpop.f32.mrf.mxu0
  %v4294 = vadd.f32 %v4208, %v4293
  %4295 = vdwg.mxu0
  %4296 = vmatpush.bf16.msra.mxu0 0
  %4297 = vmatpush.bf16.msra.mxu0 0
  %4298 = vmatpush.bf16.msra.mxu0 0
  %4299 = vmatpush.bf16.msra.mxu0 0
  %4300 = vmatpush.bf16.msra.mxu0 0
  %4301 = vmatpush.bf16.msra.mxu0 0
  %4302 = vmatpush.bf16.msra.mxu0 %v4245
  %4303 = vmatpush.bf16.msra.mxu0 %v4241
  %4304 = vmatmul.bf16.gmra.mxu0 %v3374
  %v4305 = vpop.f32.mrf.mxu0
  %v4306 = vadd.f32 %v4209, %v4305
  %v4307 = vpop.f32.mrf.mxu0
  %v4308 = vadd.f32 %v4209, %v4307
  %4309 = vdwg.mxu0
  %v4310 = vmax.f32 %v4264, 0.0
  %v4311 = vmax.f32 %v4278, 0.0
  %v4312 = vmax.f32 %v4292, 0.0
  %v4313 = vmax.f32 %v4306, 0.0
  %v4314 = vmax.f32 %v4266, 0.0
  %v4315 = vmax.f32 %v4280, 0.0
  %v4316 = vmax.f32 %v4294, 0.0
  %v4317 = vmax.f32 %v4308, 0.0
  %v4318 = vpack.c.bf16 %v4314, %v4310
  %v4319 = vpack.c.bf16 %v4315, %v4311
  %v4320 = vpack.c.bf16 %v4316, %v4312
  %v4321 = vpack.c.bf16 %v4317, %v4313
  %v4322 = vld [vmem:[%s9 + $0x200] sm:$0xf]
  %v4323 = vld [vmem:[%s9 + $0x204] sm:$0xf]
  %v4324 = vld [vmem:[%s9 + $0x208] sm:$0xf]
  %v4325 = vld [vmem:[%s9 + $0x20c] sm:$0xf]
  %v4326 = vld [vmem:[%s9 + $0x210] sm:$0xf]
  %v4327 = vld [vmem:[%s9 + $0x214] sm:$0xf]
  %v4328 = vld [vmem:[%s9 + $0x218] sm:$0xf]
  %v4329 = vld [vmem:[%s9 + $0x21c] sm:$0xf]
  %v4330 = vld [vmem:[%s9 + $0x220] sm:$0xf]
  %v4331 = vld [vmem:[%s9 + $0x224] sm:$0xf]
  %v4332 = vld [vmem:[%s9 + $0x228] sm:$0xf]
  %v4333 = vld [vmem:[%s9 + $0x22c] sm:$0xf]
  %v4334 = vld [vmem:[%s9 + $0x230] sm:$0xf]
  %v4335 = vld [vmem:[%s9 + $0x234] sm:$0xf]
  %v4336 = vld [vmem:[%s9 + $0x238] sm:$0xf]
  %v4337 = vld [vmem:[%s9 + $0x23c] sm:$0xf]
  %v4338 = vld [vmem:[%s9 + $0x240] sm:$0xf]
  %v4339 = vld [vmem:[%s9 + $0x244] sm:$0xf]
  %v4340 = vld [vmem:[%s9 + $0x248] sm:$0xf]
  %v4341 = vld [vmem:[%s9 + $0x24c] sm:$0xf]
  %v4342 = vld [vmem:[%s9 + $0x250] sm:$0xf]
  %v4343 = vld [vmem:[%s9 + $0x254] sm:$0xf]
  %v4344 = vld [vmem:[%s9 + $0x258] sm:$0xf]
  %v4345 = vld [vmem:[%s9 + $0x25c] sm:$0xf]
  %v4346 = vld [vmem:[%s9 + $0x260] sm:$0xf]
  %v4347 = vld [vmem:[%s9 + $0x264] sm:$0xf]
  %v4348 = vld [vmem:[%s9 + $0x268] sm:$0xf]
  %v4349 = vld [vmem:[%s9 + $0x26c] sm:$0xf]
  %v4350 = vld [vmem:[%s9 + $0x270] sm:$0xf]
  %v4351 = vld [vmem:[%s9 + $0x274] sm:$0xf]
  %v4352 = vld [vmem:[%s9 + $0x278] sm:$0xf]
  %v4353 = vld [vmem:[%s9 + $0x27c] sm:$0xf]
  %v4354 = vld [vmem:[%s9 + $0x280] sm:$0xf]
  %v4355 = vld [vmem:[%s9 + $0x284] sm:$0xf]
  %v4356 = vld [vmem:[%s9 + $0x288] sm:$0xf]
  %v4357 = vld [vmem:[%s9 + $0x28c] sm:$0xf]
  %v4358 = vld [vmem:[%s9 + $0x290] sm:$0xf]
  %v4359 = vld [vmem:[%s9 + $0x294] sm:$0xf]
  %v4360 = vld [vmem:[%s9 + $0x298] sm:$0xf]
  %v4361 = vld [vmem:[%s9 + $0x29c] sm:$0xf]
  %v4362 = vld [vmem:[%s9 + $0x2a0] sm:$0xf]
  %v4363 = vld [vmem:[%s9 + $0x2a4] sm:$0xf]
  %v4364 = vld [vmem:[%s9 + $0x2a8] sm:$0xf]
  %v4365 = vld [vmem:[%s9 + $0x2ac] sm:$0xf]
  %v4366 = vld [vmem:[%s9 + $0x2b0] sm:$0xf]
  %v4367 = vld [vmem:[%s9 + $0x2b4] sm:$0xf]
  %v4368 = vld [vmem:[%s9 + $0x2b8] sm:$0xf]
  %v4369 = vld [vmem:[%s9 + $0x2bc] sm:$0xf]
  %v4370 = vld [vmem:[%s9 + $0x2c0] sm:$0xf]
  %v4371 = vld [vmem:[%s9 + $0x2c4] sm:$0xf]
  %v4372 = vld [vmem:[%s9 + $0x2c8] sm:$0xf]
  %v4373 = vld [vmem:[%s9 + $0x2cc] sm:$0xf]
  %v4374 = vld [vmem:[%s9 + $0x2d0] sm:$0xf]
  %v4375 = vld [vmem:[%s9 + $0x2d4] sm:$0xf]
  %v4376 = vld [vmem:[%s9 + $0x2d8] sm:$0xf]
  %v4377 = vld [vmem:[%s9 + $0x2dc] sm:$0xf]
  %v4378 = vld [vmem:[%s9 + $0x2e0] sm:$0xf]
  %v4379 = vld [vmem:[%s9 + $0x2e4] sm:$0xf]
  %v4380 = vld [vmem:[%s9 + $0x2e8] sm:$0xf]
  %v4381 = vld [vmem:[%s9 + $0x2ec] sm:$0xf]
  %v4382 = vld [vmem:[%s9 + $0x2f0] sm:$0xf]
  %v4383 = vld [vmem:[%s9 + $0x2f4] sm:$0xf]
  %v4384 = vld [vmem:[%s9 + $0x2f8] sm:$0xf]
  %v4385 = vld [vmem:[%s9 + $0x2fc] sm:$0xf]
  %v4450 = vunpack.c.l.b16 %v4322
  %v4451 = vunpack.c.l.b16 %v4323
  %v4452 = vunpack.c.l.b16 %v4324
  %v4453 = vunpack.c.l.b16 %v4325
  %v4454 = vunpack.c.l.b16 %v4326
  %v4455 = vunpack.c.l.b16 %v4327
  %v4456 = vunpack.c.l.b16 %v4328
  %v4457 = vunpack.c.l.b16 %v4329
  %v4458 = vunpack.c.l.b16 %v4330
  %v4459 = vunpack.c.l.b16 %v4331
  %v4460 = vunpack.c.l.b16 %v4332
  %v4461 = vunpack.c.l.b16 %v4333
  %v4462 = vunpack.c.l.b16 %v4334
  %v4463 = vunpack.c.l.b16 %v4335
  %v4464 = vunpack.c.l.b16 %v4336
  %v4465 = vunpack.c.l.b16 %v4337
  %v4466 = vunpack.c.l.b16 %v4338
  %v4467 = vunpack.c.l.b16 %v4339
  %v4468 = vunpack.c.l.b16 %v4340
  %v4469 = vunpack.c.l.b16 %v4341
  %v4470 = vunpack.c.l.b16 %v4342
  %v4471 = vunpack.c.l.b16 %v4343
  %v4472 = vunpack.c.l.b16 %v4344
  %v4473 = vunpack.c.l.b16 %v4345
  %v4474 = vunpack.c.l.b16 %v4346
  %v4475 = vunpack.c.l.b16 %v4347
  %v4476 = vunpack.c.l.b16 %v4348
  %v4477 = vunpack.c.l.b16 %v4349
  %v4478 = vunpack.c.l.b16 %v4350
  %v4479 = vunpack.c.l.b16 %v4351
  %v4480 = vunpack.c.l.b16 %v4352
  %v4481 = vunpack.c.l.b16 %v4353
  %v4482 = vunpack.c.l.b16 %v4354
  %v4483 = vunpack.c.l.b16 %v4355
  %v4484 = vunpack.c.l.b16 %v4356
  %v4485 = vunpack.c.l.b16 %v4357
  %v4486 = vunpack.c.l.b16 %v4358
  %v4487 = vunpack.c.l.b16 %v4359
  %v4488 = vunpack.c.l.b16 %v4360
  %v4489 = vunpack.c.l.b16 %v4361
  %v4490 = vunpack.c.l.b16 %v4362
  %v4491 = vunpack.c.l.b16 %v4363
  %v4492 = vunpack.c.l.b16 %v4364
  %v4493 = vunpack.c.l.b16 %v4365
  %v4494 = vunpack.c.l.b16 %v4366
  %v4495 = vunpack.c.l.b16 %v4367
  %v4496 = vunpack.c.l.b16 %v4368
  %v4497 = vunpack.c.l.b16 %v4369
  %v4498 = vunpack.c.l.b16 %v4370
  %v4499 = vunpack.c.l.b16 %v4371
  %v4500 = vunpack.c.l.b16 %v4372
  %v4501 = vunpack.c.l.b16 %v4373
  %v4502 = vunpack.c.l.b16 %v4374
  %v4503 = vunpack.c.l.b16 %v4375
  %v4504 = vunpack.c.l.b16 %v4376
  %v4505 = vunpack.c.l.b16 %v4377
  %v4506 = vunpack.c.l.b16 %v4378
  %v4507 = vunpack.c.l.b16 %v4379
  %v4508 = vunpack.c.l.b16 %v4380
  %v4509 = vunpack.c.l.b16 %v4381
  %v4510 = vunpack.c.l.b16 %v4382
  %v4511 = vunpack.c.l.b16 %v4383
  %v4512 = vunpack.c.l.b16 %v4384
  %v4513 = vunpack.c.l.b16 %v4385
  %v4514 = vpack.c.b16 %v4451, %v4450
  %v4515 = vpack.c.b16 %v4453, %v4452
  %v4516 = vpack.c.b16 %v4455, %v4454
  %v4517 = vpack.c.b16 %v4457, %v4456
  %v4518 = vpack.c.b16 %v4459, %v4458
  %v4519 = vpack.c.b16 %v4461, %v4460
  %v4520 = vpack.c.b16 %v4463, %v4462
  %v4521 = vpack.c.b16 %v4465, %v4464
  %v4522 = vpack.c.b16 %v4467, %v4466
  %v4523 = vpack.c.b16 %v4469, %v4468
  %v4524 = vpack.c.b16 %v4471, %v4470
  %v4525 = vpack.c.b16 %v4473, %v4472
  %v4526 = vpack.c.b16 %v4475, %v4474
  %v4527 = vpack.c.b16 %v4477, %v4476
  %v4528 = vpack.c.b16 %v4479, %v4478
  %v4529 = vpack.c.b16 %v4481, %v4480
  %v4530 = vpack.c.b16 %v4483, %v4482
  %v4531 = vpack.c.b16 %v4485, %v4484
  %v4532 = vpack.c.b16 %v4487, %v4486
  %v4533 = vpack.c.b16 %v4489, %v4488
  %v4534 = vpack.c.b16 %v4491, %v4490
  %v4535 = vpack.c.b16 %v4493, %v4492
  %v4536 = vpack.c.b16 %v4495, %v4494
  %v4537 = vpack.c.b16 %v4497, %v4496
  %v4538 = vpack.c.b16 %v4499, %v4498
  %v4539 = vpack.c.b16 %v4501, %v4500
  %v4540 = vpack.c.b16 %v4503, %v4502
  %v4541 = vpack.c.b16 %v4505, %v4504
  %v4542 = vpack.c.b16 %v4507, %v4506
  %v4543 = vpack.c.b16 %v4509, %v4508
  %v4544 = vpack.c.b16 %v4511, %v4510
  %v4545 = vpack.c.b16 %v4513, %v4512
  %4578 = vmatpush.bf16.msra.mxu0 %v4521
  %4579 = vmatpush.bf16.msra.mxu0 %v4520
  %4580 = vmatpush.bf16.msra.mxu0 %v4519
  %4581 = vmatpush.bf16.msra.mxu0 %v4518
  %4582 = vmatpush.bf16.msra.mxu0 %v4517
  %4583 = vmatpush.bf16.msra.mxu0 %v4516
  %4584 = vmatpush.bf16.msra.mxu0 %v4515
  %4585 = vmatpush.bf16.msra.mxu0 %v4514
  %4586 = vmatmul.bf16.gmra.mxu0 %v4318
  %v4587 = vpop.f32.mrf.mxu0
  %v4588 = vadd.f32 0.0, %v4587
  %v4589 = vpop.f32.mrf.mxu0
  %v4590 = vadd.f32 0.0, %v4589
  %4591 = vdwg.mxu0
  %4592 = vmatpush.bf16.msra.mxu0 %v4529
  %4593 = vmatpush.bf16.msra.mxu0 %v4528
  %4594 = vmatpush.bf16.msra.mxu0 %v4527
  %4595 = vmatpush.bf16.msra.mxu0 %v4526
  %4596 = vmatpush.bf16.msra.mxu0 %v4525
  %4597 = vmatpush.bf16.msra.mxu0 %v4524
  %4598 = vmatpush.bf16.msra.mxu0 %v4523
  %4599 = vmatpush.bf16.msra.mxu0 %v4522
  %4600 = vmatmul.bf16.gmra.mxu0 %v4319
  %v4601 = vpop.f32.mrf.mxu0
  %v4602 = vadd.f32 %v4588, %v4601
  %v4603 = vpop.f32.mrf.mxu0
  %v4604 = vadd.f32 %v4590, %v4603
  %4605 = vdwg.mxu0
  %4606 = vmatpush.bf16.msra.mxu0 %v4537
  %4607 = vmatpush.bf16.msra.mxu0 %v4536
  %4608 = vmatpush.bf16.msra.mxu0 %v4535
  %4609 = vmatpush.bf16.msra.mxu0 %v4534
  %4610 = vmatpush.bf16.msra.mxu0 %v4533
  %4611 = vmatpush.bf16.msra.mxu0 %v4532
  %4612 = vmatpush.bf16.msra.mxu0 %v4531
  %4613 = vmatpush.bf16.msra.mxu0 %v4530
  %4614 = vmatmul.bf16.gmra.mxu0 %v4320
  %v4615 = vpop.f32.mrf.mxu0
  %v4616 = vadd.f32 %v4602, %v4615
  %v4617 = vpop.f32.mrf.mxu0
  %v4618 = vadd.f32 %v4604, %v4617
  %4619 = vdwg.mxu0
  %4620 = vmatpush.bf16.msra.mxu0 %v4545
  %4621 = vmatpush.bf16.msra.mxu0 %v4544
  %4622 = vmatpush.bf16.msra.mxu0 %v4543
  %4623 = vmatpush.bf16.msra.mxu0 %v4542
  %4624 = vmatpush.bf16.msra.mxu0 %v4541
  %4625 = vmatpush.bf16.msra.mxu0 %v4540
  %4626 = vmatpush.bf16.msra.mxu0 %v4539
  %4627 = vmatpush.bf16.msra.mxu0 %v4538
  %4628 = vmatmul.bf16.gmra.mxu0 %v4321
  %v4629 = vpop.f32.mrf.mxu0
  %v4630 = vadd.f32 %v4616, %v4629
  %v4631 = vpop.f32.mrf.mxu0
  %v4632 = vadd.f32 %v4618, %v4631
  %4633 = vdwg.mxu0
  %v4634 = vadd.f32 %v4191, %v4630
  %v4635 = vadd.f32 %v4193, %v4632
  %v4636 = vld [vmem:[%s8 + $0x30] sm:$0xff]
  %v4637 = vld [vmem:[%s8 + $0x38] sm:$0xff]
  %v4638 = vld [vmem:[%s8 + $0x70] sm:$0xff]
  %v4639 = vld [vmem:[%s8 + $0x78] sm:$0xff]
  %v4640 = vld [vmem:[%s8 + $0xb0] sm:$0xff]
  %v4641 = vld [vmem:[%s8 + $0xb8] sm:$0xff]
  %v4642 = vld [vmem:[%s8 + $0xf0] sm:$0xff]
  %v4643 = vld [vmem:[%s8 + $0xf8] sm:$0xff]
  %s4644 = scalar_lea.vmem %s1, 226
  %v4645 = vld [vmem:[%s4644] ss:$8 sm:$0xf]
  %v4647 = vperm.slane %v4645, 0
  %v4648 = vperm.slane %v4645, 1
  %v4649 = vperm.slane %v4645, 2
  %v4650 = vperm.slane %v4645, 3
  %v4663 = vunpack.c.l.b16 %v4636
  %v4664 = vunpack.c.h.b16 %v4636
  %v4665 = vunpack.c.l.b16 %v4637
  %v4666 = vunpack.c.h.b16 %v4637
  %v4667 = vunpack.c.l.b16 %v4638
  %v4668 = vunpack.c.h.b16 %v4638
  %v4669 = vunpack.c.l.b16 %v4639
  %v4670 = vunpack.c.h.b16 %v4639
  %v4671 = vunpack.c.l.b16 %v4640
  %v4672 = vunpack.c.h.b16 %v4640
  %v4673 = vunpack.c.l.b16 %v4641
  %v4674 = vunpack.c.h.b16 %v4641
  %v4675 = vunpack.c.l.b16 %v4642
  %v4676 = vunpack.c.h.b16 %v4642
  %v4677 = vunpack.c.l.b16 %v4643
  %v4678 = vunpack.c.h.b16 %v4643
  %v4679 = vpack.c.b16 %v4667, %v4663
  %v4680 = vpack.c.b16 %v4668, %v4664
  %v4681 = vpack.c.b16 %v4669, %v4665
  %v4682 = vpack.c.b16 %v4670, %v4666
  %v4683 = vpack.c.b16 %v4675, %v4671
  %v4684 = vpack.c.b16 %v4676, %v4672
  %v4685 = vpack.c.b16 %v4677, %v4673
  %v4686 = vpack.c.b16 %v4678, %v4674
  %4695 = vmatpush.bf16.msra.mxu0 0
  %4696 = vmatpush.bf16.msra.mxu0 0
  %4697 = vmatpush.bf16.msra.mxu0 0
  %4698 = vmatpush.bf16.msra.mxu0 0
  %4699 = vmatpush.bf16.msra.mxu0 0
  %4700 = vmatpush.bf16.msra.mxu0 0
  %4701 = vmatpush.bf16.msra.mxu0 %v4683
  %4702 = vmatpush.bf16.msra.mxu0 %v4679
  %4703 = vmatmul.bf16.gmra.mxu0 %v3374
  %v4704 = vpop.f32.mrf.mxu0
  %v4705 = vadd.f32 %v4647, %v4704
  %v4706 = vpop.f32.mrf.mxu0
  %v4707 = vadd.f32 %v4647, %v4706
  %4708 = vdwg.mxu0
  %4709 = vmatpush.bf16.msra.mxu0 0
  %4710 = vmatpush.bf16.msra.mxu0 0
  %4711 = vmatpush.bf16.msra.mxu0 0
  %4712 = vmatpush.bf16.msra.mxu0 0
  %4713 = vmatpush.bf16.msra.mxu0 0
  %4714 = vmatpush.bf16.msra.mxu0 0
  %4715 = vmatpush.bf16.msra.mxu0 %v4684
  %4716 = vmatpush.bf16.msra.mxu0 %v4680
  %4717 = vmatmul.bf16.gmra.mxu0 %v3374
  %v4718 = vpop.f32.mrf.mxu0
  %v4719 = vadd.f32 %v4648, %v4718
  %v4720 = vpop.f32.mrf.mxu0
  %v4721 = vadd.f32 %v4648, %v4720
  %4722 = vdwg.mxu0
  %4723 = vmatpush.bf16.msra.mxu0 0
  %4724 = vmatpush.bf16.msra.mxu0 0
  %4725 = vmatpush.bf16.msra.mxu0 0
  %4726 = vmatpush.bf16.msra.mxu0 0
  %4727 = vmatpush.bf16.msra.mxu0 0
  %4728 = vmatpush.bf16.msra.mxu0 0
  %4729 = vmatpush.bf16.msra.mxu0 %v4685
  %4730 = vmatpush.bf16.msra.mxu0 %v4681
  %4731 = vmatmul.bf16.gmra.mxu0 %v3374
  %v4732 = vpop.f32.mrf.mxu0
  %v4733 = vadd.f32 %v4649, %v4732
  %v4734 = vpop.f32.mrf.mxu0
  %v4735 = vadd.f32 %v4649, %v4734
  %4736 = vdwg.mxu0
  %4737 = vmatpush.bf16.msra.mxu0 0
  %4738 = vmatpush.bf16.msra.mxu0 0
  %4739 = vmatpush.bf16.msra.mxu0 0
  %4740 = vmatpush.bf16.msra.mxu0 0
  %4741 = vmatpush.bf16.msra.mxu0 0
  %4742 = vmatpush.bf16.msra.mxu0 0
  %4743 = vmatpush.bf16.msra.mxu0 %v4686
  %4744 = vmatpush.bf16.msra.mxu0 %v4682
  %4745 = vmatmul.bf16.gmra.mxu0 %v3374
  %v4746 = vpop.f32.mrf.mxu0
  %v4747 = vadd.f32 %v4650, %v4746
  %v4748 = vpop.f32.mrf.mxu0
  %v4749 = vadd.f32 %v4650, %v4748
  %4750 = vdwg.mxu0
  %v4751 = vmax.f32 %v4705, 0.0
  %v4752 = vmax.f32 %v4719, 0.0
  %v4753 = vmax.f32 %v4733, 0.0
  %v4754 = vmax.f32 %v4747, 0.0
  %v4755 = vmax.f32 %v4707, 0.0
  %v4756 = vmax.f32 %v4721, 0.0
  %v4757 = vmax.f32 %v4735, 0.0
  %v4758 = vmax.f32 %v4749, 0.0
  %v4759 = vpack.c.bf16 %v4755, %v4751
  %v4760 = vpack.c.bf16 %v4756, %v4752
  %v4761 = vpack.c.bf16 %v4757, %v4753
  %v4762 = vpack.c.bf16 %v4758, %v4754
  %v4763 = vld [vmem:[%s9 + $0x300] sm:$0xf]
  %v4764 = vld [vmem:[%s9 + $0x304] sm:$0xf]
  %v4765 = vld [vmem:[%s9 + $0x308] sm:$0xf]
  %v4766 = vld [vmem:[%s9 + $0x30c] sm:$0xf]
  %v4767 = vld [vmem:[%s9 + $0x310] sm:$0xf]
  %v4768 = vld [vmem:[%s9 + $0x314] sm:$0xf]
  %v4769 = vld [vmem:[%s9 + $0x318] sm:$0xf]
  %v4770 = vld [vmem:[%s9 + $0x31c] sm:$0xf]
  %v4771 = vld [vmem:[%s9 + $0x320] sm:$0xf]
  %v4772 = vld [vmem:[%s9 + $0x324] sm:$0xf]
  %v4773 = vld [vmem:[%s9 + $0x328] sm:$0xf]
  %v4774 = vld [vmem:[%s9 + $0x32c] sm:$0xf]
  %v4775 = vld [vmem:[%s9 + $0x330] sm:$0xf]
  %v4776 = vld [vmem:[%s9 + $0x334] sm:$0xf]
  %v4777 = vld [vmem:[%s9 + $0x338] sm:$0xf]
  %v4778 = vld [vmem:[%s9 + $0x33c] sm:$0xf]
  %v4779 = vld [vmem:[%s9 + $0x340] sm:$0xf]
  %v4780 = vld [vmem:[%s9 + $0x344] sm:$0xf]
  %v4781 = vld [vmem:[%s9 + $0x348] sm:$0xf]
  %v4782 = vld [vmem:[%s9 + $0x34c] sm:$0xf]
  %v4783 = vld [vmem:[%s9 + $0x350] sm:$0xf]
  %v4784 = vld [vmem:[%s9 + $0x354] sm:$0xf]
  %v4785 = vld [vmem:[%s9 + $0x358] sm:$0xf]
  %v4786 = vld [vmem:[%s9 + $0x35c] sm:$0xf]
  %v4787 = vld [vmem:[%s9 + $0x360] sm:$0xf]
  %v4788 = vld [vmem:[%s9 + $0x364] sm:$0xf]
  %v4789 = vld [vmem:[%s9 + $0x368] sm:$0xf]
  %v4790 = vld [vmem:[%s9 + $0x36c] sm:$0xf]
  %v4791 = vld [vmem:[%s9 + $0x370] sm:$0xf]
  %v4792 = vld [vmem:[%s9 + $0x374] sm:$0xf]
  %v4793 = vld [vmem:[%s9 + $0x378] sm:$0xf]
  %v4794 = vld [vmem:[%s9 + $0x37c] sm:$0xf]
  %v4795 = vld [vmem:[%s9 + $0x380] sm:$0xf]
  %v4796 = vld [vmem:[%s9 + $0x384] sm:$0xf]
  %v4797 = vld [vmem:[%s9 + $0x388] sm:$0xf]
  %v4798 = vld [vmem:[%s9 + $0x38c] sm:$0xf]
  %v4799 = vld [vmem:[%s9 + $0x390] sm:$0xf]
  %v4800 = vld [vmem:[%s9 + $0x394] sm:$0xf]
  %v4801 = vld [vmem:[%s9 + $0x398] sm:$0xf]
  %v4802 = vld [vmem:[%s9 + $0x39c] sm:$0xf]
  %v4803 = vld [vmem:[%s9 + $0x3a0] sm:$0xf]
  %v4804 = vld [vmem:[%s9 + $0x3a4] sm:$0xf]
  %v4805 = vld [vmem:[%s9 + $0x3a8] sm:$0xf]
  %v4806 = vld [vmem:[%s9 + $0x3ac] sm:$0xf]
  %v4807 = vld [vmem:[%s9 + $0x3b0] sm:$0xf]
  %v4808 = vld [vmem:[%s9 + $0x3b4] sm:$0xf]
  %v4809 = vld [vmem:[%s9 + $0x3b8] sm:$0xf]
  %v4810 = vld [vmem:[%s9 + $0x3bc] sm:$0xf]
  %v4811 = vld [vmem:[%s9 + $0x3c0] sm:$0xf]
  %v4812 = vld [vmem:[%s9 + $0x3c4] sm:$0xf]
  %v4813 = vld [vmem:[%s9 + $0x3c8] sm:$0xf]
  %v4814 = vld [vmem:[%s9 + $0x3cc] sm:$0xf]
  %v4815 = vld [vmem:[%s9 + $0x3d0] sm:$0xf]
  %v4816 = vld [vmem:[%s9 + $0x3d4] sm:$0xf]
  %v4817 = vld [vmem:[%s9 + $0x3d8] sm:$0xf]
  %v4818 = vld [vmem:[%s9 + $0x3dc] sm:$0xf]
  %v4819 = vld [vmem:[%s9 + $0x3e0] sm:$0xf]
  %v4820 = vld [vmem:[%s9 + $0x3e4] sm:$0xf]
  %v4821 = vld [vmem:[%s9 + $0x3e8] sm:$0xf]
  %v4822 = vld [vmem:[%s9 + $0x3ec] sm:$0xf]
  %v4823 = vld [vmem:[%s9 + $0x3f0] sm:$0xf]
  %v4824 = vld [vmem:[%s9 + $0x3f4] sm:$0xf]
  %v4825 = vld [vmem:[%s9 + $0x3f8] sm:$0xf]
  %v4826 = vld [vmem:[%s9 + $0x3fc] sm:$0xf]
  %v4891 = vunpack.c.l.b16 %v4763
  %v4892 = vunpack.c.l.b16 %v4764
  %v4893 = vunpack.c.l.b16 %v4765
  %v4894 = vunpack.c.l.b16 %v4766
  %v4895 = vunpack.c.l.b16 %v4767
  %v4896 = vunpack.c.l.b16 %v4768
  %v4897 = vunpack.c.l.b16 %v4769
  %v4898 = vunpack.c.l.b16 %v4770
  %v4899 = vunpack.c.l.b16 %v4771
  %v4900 = vunpack.c.l.b16 %v4772
  %v4901 = vunpack.c.l.b16 %v4773
  %v4902 = vunpack.c.l.b16 %v4774
  %v4903 = vunpack.c.l.b16 %v4775
  %v4904 = vunpack.c.l.b16 %v4776
  %v4905 = vunpack.c.l.b16 %v4777
  %v4906 = vunpack.c.l.b16 %v4778
  %v4907 = vunpack.c.l.b16 %v4779
  %v4908 = vunpack.c.l.b16 %v4780
  %v4909 = vunpack.c.l.b16 %v4781
  %v4910 = vunpack.c.l.b16 %v4782
  %v4911 = vunpack.c.l.b16 %v4783
  %v4912 = vunpack.c.l.b16 %v4784
  %v4913 = vunpack.c.l.b16 %v4785
  %v4914 = vunpack.c.l.b16 %v4786
  %v4915 = vunpack.c.l.b16 %v4787
  %v4916 = vunpack.c.l.b16 %v4788
  %v4917 = vunpack.c.l.b16 %v4789
  %v4918 = vunpack.c.l.b16 %v4790
  %v4919 = vunpack.c.l.b16 %v4791
  %v4920 = vunpack.c.l.b16 %v4792
  %v4921 = vunpack.c.l.b16 %v4793
  %v4922 = vunpack.c.l.b16 %v4794
  %v4923 = vunpack.c.l.b16 %v4795
  %v4924 = vunpack.c.l.b16 %v4796
  %v4925 = vunpack.c.l.b16 %v4797
  %v4926 = vunpack.c.l.b16 %v4798
  %v4927 = vunpack.c.l.b16 %v4799
  %v4928 = vunpack.c.l.b16 %v4800
  %v4929 = vunpack.c.l.b16 %v4801
  %v4930 = vunpack.c.l.b16 %v4802
  %v4931 = vunpack.c.l.b16 %v4803
  %v4932 = vunpack.c.l.b16 %v4804
  %v4933 = vunpack.c.l.b16 %v4805
  %v4934 = vunpack.c.l.b16 %v4806
  %v4935 = vunpack.c.l.b16 %v4807
  %v4936 = vunpack.c.l.b16 %v4808
  %v4937 = vunpack.c.l.b16 %v4809
  %v4938 = vunpack.c.l.b16 %v4810
  %v4939 = vunpack.c.l.b16 %v4811
  %v4940 = vunpack.c.l.b16 %v4812
  %v4941 = vunpack.c.l.b16 %v4813
  %v4942 = vunpack.c.l.b16 %v4814
  %v4943 = vunpack.c.l.b16 %v4815
  %v4944 = vunpack.c.l.b16 %v4816
  %v4945 = vunpack.c.l.b16 %v4817
  %v4946 = vunpack.c.l.b16 %v4818
  %v4947 = vunpack.c.l.b16 %v4819
  %v4948 = vunpack.c.l.b16 %v4820
  %v4949 = vunpack.c.l.b16 %v4821
  %v4950 = vunpack.c.l.b16 %v4822
  %v4951 = vunpack.c.l.b16 %v4823
  %v4952 = vunpack.c.l.b16 %v4824
  %v4953 = vunpack.c.l.b16 %v4825
  %v4954 = vunpack.c.l.b16 %v4826
  %v4955 = vpack.c.b16 %v4892, %v4891
  %v4956 = vpack.c.b16 %v4894, %v4893
  %v4957 = vpack.c.b16 %v4896, %v4895
  %v4958 = vpack.c.b16 %v4898, %v4897
  %v4959 = vpack.c.b16 %v4900, %v4899
  %v4960 = vpack.c.b16 %v4902, %v4901
  %v4961 = vpack.c.b16 %v4904, %v4903
  %v4962 = vpack.c.b16 %v4906, %v4905
  %v4963 = vpack.c.b16 %v4908, %v4907
  %v4964 = vpack.c.b16 %v4910, %v4909
  %v4965 = vpack.c.b16 %v4912, %v4911
  %v4966 = vpack.c.b16 %v4914, %v4913
  %v4967 = vpack.c.b16 %v4916, %v4915
  %v4968 = vpack.c.b16 %v4918, %v4917
  %v4969 = vpack.c.b16 %v4920, %v4919
  %v4970 = vpack.c.b16 %v4922, %v4921
  %v4971 = vpack.c.b16 %v4924, %v4923
  %v4972 = vpack.c.b16 %v4926, %v4925
  %v4973 = vpack.c.b16 %v4928, %v4927
  %v4974 = vpack.c.b16 %v4930, %v4929
  %v4975 = vpack.c.b16 %v4932, %v4931
  %v4976 = vpack.c.b16 %v4934, %v4933
  %v4977 = vpack.c.b16 %v4936, %v4935
  %v4978 = vpack.c.b16 %v4938, %v4937
  %v4979 = vpack.c.b16 %v4940, %v4939
  %v4980 = vpack.c.b16 %v4942, %v4941
  %v4981 = vpack.c.b16 %v4944, %v4943
  %v4982 = vpack.c.b16 %v4946, %v4945
  %v4983 = vpack.c.b16 %v4948, %v4947
  %v4984 = vpack.c.b16 %v4950, %v4949
  %v4985 = vpack.c.b16 %v4952, %v4951
  %v4986 = vpack.c.b16 %v4954, %v4953
  %5019 = vmatpush.bf16.msra.mxu0 %v4962
  %5020 = vmatpush.bf16.msra.mxu0 %v4961
  %5021 = vmatpush.bf16.msra.mxu0 %v4960
  %5022 = vmatpush.bf16.msra.mxu0 %v4959
  %5023 = vmatpush.bf16.msra.mxu0 %v4958
  %5024 = vmatpush.bf16.msra.mxu0 %v4957
  %5025 = vmatpush.bf16.msra.mxu0 %v4956
  %5026 = vmatpush.bf16.msra.mxu0 %v4955
  %5027 = vmatmul.bf16.gmra.mxu0 %v4759
  %v5028 = vpop.f32.mrf.mxu0
  %v5029 = vadd.f32 0.0, %v5028
  %v5030 = vpop.f32.mrf.mxu0
  %v5031 = vadd.f32 0.0, %v5030
  %5032 = vdwg.mxu0
  %5033 = vmatpush.bf16.msra.mxu0 %v4970
  %5034 = vmatpush.bf16.msra.mxu0 %v4969
  %5035 = vmatpush.bf16.msra.mxu0 %v4968
  %5036 = vmatpush.bf16.msra.mxu0 %v4967
  %5037 = vmatpush.bf16.msra.mxu0 %v4966
  %5038 = vmatpush.bf16.msra.mxu0 %v4965
  %5039 = vmatpush.bf16.msra.mxu0 %v4964
  %5040 = vmatpush.bf16.msra.mxu0 %v4963
  %5041 = vmatmul.bf16.gmra.mxu0 %v4760
  %v5042 = vpop.f32.mrf.mxu0
  %v5043 = vadd.f32 %v5029, %v5042
  %v5044 = vpop.f32.mrf.mxu0
  %v5045 = vadd.f32 %v5031, %v5044
  %5046 = vdwg.mxu0
  %5047 = vmatpush.bf16.msra.mxu0 %v4978
  %5048 = vmatpush.bf16.msra.mxu0 %v4977
  %5049 = vmatpush.bf16.msra.mxu0 %v4976
  %5050 = vmatpush.bf16.msra.mxu0 %v4975
  %5051 = vmatpush.bf16.msra.mxu0 %v4974
  %5052 = vmatpush.bf16.msra.mxu0 %v4973
  %5053 = vmatpush.bf16.msra.mxu0 %v4972
  %5054 = vmatpush.bf16.msra.mxu0 %v4971
  %5055 = vmatmul.bf16.gmra.mxu0 %v4761
  %v5056 = vpop.f32.mrf.mxu0
  %v5057 = vadd.f32 %v5043, %v5056
  %v5058 = vpop.f32.mrf.mxu0
  %v5059 = vadd.f32 %v5045, %v5058
  %5060 = vdwg.mxu0
  %5061 = vmatpush.bf16.msra.mxu0 %v4986
  %5062 = vmatpush.bf16.msra.mxu0 %v4985
  %5063 = vmatpush.bf16.msra.mxu0 %v4984
  %5064 = vmatpush.bf16.msra.mxu0 %v4983
  %5065 = vmatpush.bf16.msra.mxu0 %v4982
  %5066 = vmatpush.bf16.msra.mxu0 %v4981
  %5067 = vmatpush.bf16.msra.mxu0 %v4980
  %5068 = vmatpush.bf16.msra.mxu0 %v4979
  %5069 = vmatmul.bf16.gmra.mxu0 %v4762
  %v5070 = vpop.f32.mrf.mxu0
  %v5071 = vadd.f32 %v5057, %v5070
  %v5072 = vpop.f32.mrf.mxu0
  %v5073 = vadd.f32 %v5059, %v5072
  %5074 = vdwg.mxu0
  %v5075 = vadd.f32 %v4634, %v5071
  %v5076 = vadd.f32 %v4635, %v5073
  %v5077 = vadd.f32 %v3311, %v5075
  %v5078 = vadd.f32 %v3312, %v5076
  %v5079 = vadd.f32 %v5077, %v2596
  %v5080 = vadd.f32 %v5078, %v2596
  %v5081 = vsel %vm71, %v5079, 0.0
  %5082 = vadd.xlane.f32.xlu0 %v5081
  %v5083 = vpop.xlane.xlu0 %5082
  %v5084 = vsel %vm71, %v5080, 0.0
  %5085 = vadd.xlane.f32.xlu0 %v5084
  %v5086 = vpop.xlane.xlu0 %5085
  %v5087 = vmul.f32 %v5083, %v735
  %v5088 = vmul.f32 %v5086, %v735
  %v5089 = vsub.f32 %v5079, %v5087
  %v5090 = vsub.f32 %v5080, %v5088
  %v5091 = vmul.f32 %v5089, %v5089
  %v5092 = vmul.f32 %v5090, %v5090
  %v5093 = vsel %vm71, %v5091, 0.0
  %5094 = vadd.xlane.f32.xlu0 %v5093
  %v5095 = vpop.xlane.xlu0 %5094
  %v5096 = vsel %vm71, %v5092, 0.0
  %5097 = vadd.xlane.f32.xlu0 %v5096
  %v5098 = vpop.xlane.xlu0 %5097
  %v5099 = vmul.f32 %v5095, %v735
  %v5100 = vmul.f32 %v5098, %v735
  %v5101 = vadd.f32 %v5099, 1e-05
  %v5102 = vadd.f32 %v5100, 1e-05
  %v5103 = vrsqrt.pop %v5101
  %v5104 = vmul.f32 %v5103, %v5101
  %v5105 = vmul.f32 %v5104, %v5103
  %v5106 = vmul.f32 0.5, %v5105
  %v5107 = vsub.f32 1.5, %v5106
  %v5108 = vmul.f32 %v5103, %v5107
  %vm5109 = vweird.f32 %v5101
  %vm5110 = vweird.f32 %v5103
  %vm5111 = vmor %vm5109, %vm5110
  %v5112 = vsel %vm5111, %v5103, %v5108
  %v5113 = vrsqrt.pop %v5102
  %v5114 = vmul.f32 %v5113, %v5102
  %v5115 = vmul.f32 %v5114, %v5113
  %v5116 = vmul.f32 0.5, %v5115
  %v5117 = vsub.f32 1.5, %v5116
  %v5118 = vmul.f32 %v5113, %v5117
  %vm5119 = vweird.f32 %v5102
  %vm5120 = vweird.f32 %v5113
  %vm5121 = vmor %vm5119, %vm5120
  %v5122 = vsel %vm5121, %v5113, %v5118
  %v5123 = vmul.f32 %v5089, %v5112
  %v5124 = vmul.f32 %v5090, %v5122
  %v5125 = vmul.f32 %v5123, %v2599
  %v5126 = vmul.f32 %v5124, %v2599
  %v5127 = vadd.f32 %v5125, %v2600
  %v5128 = vadd.f32 %v5126, %v2600
  %v5129 = vld [vmem:[%s1 + $0x100] ss:$0 sm:$0xff]
  %v5130 = vld [vmem:[%s1 + $0x101] ss:$0 sm:$0xff]
  %v5131 = vld [vmem:[%s1 + $0x102] ss:$0 sm:$0xff]
  %5132 = vst.msk [vmem:[#allocation2] sm:$0xff] %vm71, %v5127
  %5133 = vst.msk [vmem:[#allocation2 + $0x8] sm:$0xff] %vm71, %v5128
  %v5134 = vld [vmem:[#allocation2] ss:$8 sm:$0x3]
  %vm5135 = vcmask 254976
  %5136 = vst.msk [vmem:[#allocation3] sm:$0x3] %vm5135, %v5134
  %s5137 = scalar_lea.vmem [#allocation2], 1
  %v5138 = vld [vmem:[%s5137] ss:$8 sm:$0x3]
  %5140 = vrot.lane.b32.xlu0 %v5138, 32
  %v5141 = vpop.permute.xlu0 %5140
  %vm5143 = vcmask 517376
  %5144 = vst.msk [vmem:[#allocation3] sm:$0x3] %vm5143, %v5141
  %s5145 = scalar_lea.vmem [#allocation2], 2
  %v5146 = vld [vmem:[%s5145] ss:$8 sm:$0x3]
  %5148 = vrot.lane.b32.xlu0 %v5146, 64
  %v5149 = vpop.permute.xlu0 %5148
  %vm5151 = vcmask 779776
  %5152 = vst.msk [vmem:[#allocation3] sm:$0x3] %vm5151, %v5149
  %s5153 = scalar_lea.vmem [#allocation2], 3
  %v5154 = vld [vmem:[%s5153] ss:$8 sm:$0x3]
  %5156 = vrot.lane.b32.xlu0 %v5154, 96
  %v5157 = vpop.permute.xlu0 %5156
  %vm5159 = vcmask 1042176
  %5160 = vst.msk [vmem:[#allocation3] sm:$0x3] %vm5159, %v5157
  %s5161 = scalar_lea.vmem [#allocation2], 4
  %v5162 = vld [vmem:[%s5161] ss:$8 sm:$0x3]
  %5163 = vst.msk [vmem:[#allocation3 + $0x2] sm:$0x3] %vm5135, %v5162
  %s5164 = scalar_lea.vmem [#allocation2], 5
  %v5165 = vld [vmem:[%s5164] ss:$8 sm:$0x3]
  %5167 = vrot.lane.b32.xlu0 %v5165, 32
  %v5168 = vpop.permute.xlu0 %5167
  %5170 = vst.msk [vmem:[#allocation3 + $0x2] sm:$0x3] %vm5143, %v5168
  %s5171 = scalar_lea.vmem [#allocation2], 6
  %v5172 = vld [vmem:[%s5171] ss:$8 sm:$0x3]
  %5174 = vrot.lane.b32.xlu0 %v5172, 64
  %v5175 = vpop.permute.xlu0 %5174
  %5177 = vst.msk [vmem:[#allocation3 + $0x2] sm:$0x3] %vm5151, %v5175
  %s5178 = scalar_lea.vmem [#allocation2], 7
  %v5179 = vld [vmem:[%s5178] ss:$8 sm:$0x3]
  %5181 = vrot.lane.b32.xlu0 %v5179, 96
  %v5182 = vpop.permute.xlu0 %5181
  %5184 = vst.msk [vmem:[#allocation3 + $0x2] sm:$0x3] %vm5159, %v5182
  %v5185 = vld [vmem:[#allocation3] sm:$0xf]
  %5187 = vst [vmem:[#allocation1] ss:$4 sm:$0xff] %v5185
  %v5188 = vld.sshfl [vmem:[#allocation1] sm:$0xff pattern:$0x73625140]
  %v5189 = vld.sshfl [vmem:[#allocation1 + $0x8] sm:$0xff pattern:$0x73625140]
  %v5192 = vpack.c.bf16 %v5188, %v5188
  %v5193 = vpack.c.bf16 %v5189, %v5189
  %v5194 = vld [vmem:[%s10] sm:$0xf]
  %v5195 = vld [vmem:[%s10 + $0x4] sm:$0xf]
  %v5196 = vld [vmem:[%s10 + $0x8] sm:$0xf]
  %v5197 = vld [vmem:[%s10 + $0xc] sm:$0xf]
  %v5198 = vld [vmem:[%s10 + $0x10] sm:$0xf]
  %v5199 = vld [vmem:[%s10 + $0x14] sm:$0xf]
  %v5200 = vld [vmem:[%s10 + $0x18] sm:$0xf]
  %v5201 = vld [vmem:[%s10 + $0x1c] sm:$0xf]
  %v5202 = vld [vmem:[%s10 + $0x20] sm:$0xf]
  %v5203 = vld [vmem:[%s10 + $0x24] sm:$0xf]
  %v5204 = vld [vmem:[%s10 + $0x28] sm:$0xf]
  %v5205 = vld [vmem:[%s10 + $0x2c] sm:$0xf]
  %v5206 = vld [vmem:[%s10 + $0x30] sm:$0xf]
  %v5207 = vld [vmem:[%s10 + $0x34] sm:$0xf]
  %v5208 = vld [vmem:[%s10 + $0x38] sm:$0xf]
  %v5209 = vld [vmem:[%s10 + $0x3c] sm:$0xf]
  %v5210 = vld [vmem:[%s10 + $0x40] sm:$0xf]
  %v5211 = vld [vmem:[%s10 + $0x44] sm:$0xf]
  %v5212 = vld [vmem:[%s10 + $0x48] sm:$0xf]
  %v5213 = vld [vmem:[%s10 + $0x4c] sm:$0xf]
  %v5214 = vld [vmem:[%s10 + $0x50] sm:$0xf]
  %v5215 = vld [vmem:[%s10 + $0x54] sm:$0xf]
  %v5216 = vld [vmem:[%s10 + $0x58] sm:$0xf]
  %v5217 = vld [vmem:[%s10 + $0x5c] sm:$0xf]
  %v5218 = vld [vmem:[%s10 + $0x60] sm:$0xf]
  %v5219 = vld [vmem:[%s10 + $0x64] sm:$0xf]
  %v5220 = vld [vmem:[%s10 + $0x68] sm:$0xf]
  %v5221 = vld [vmem:[%s10 + $0x6c] sm:$0xf]
  %v5222 = vld [vmem:[%s10 + $0x70] sm:$0xf]
  %v5223 = vld [vmem:[%s10 + $0x74] sm:$0xf]
  %v5224 = vld [vmem:[%s10 + $0x78] sm:$0xf]
  %v5225 = vld [vmem:[%s10 + $0x7c] sm:$0xf]
  %v5258 = vunpack.c.l.b16 %v5194
  %v5259 = vunpack.c.l.b16 %v5195
  %v5260 = vunpack.c.l.b16 %v5196
  %v5261 = vunpack.c.l.b16 %v5197
  %v5262 = vunpack.c.l.b16 %v5198
  %v5263 = vunpack.c.l.b16 %v5199
  %v5264 = vunpack.c.l.b16 %v5200
  %v5265 = vunpack.c.l.b16 %v5201
  %v5266 = vunpack.c.l.b16 %v5202
  %v5267 = vunpack.c.l.b16 %v5203
  %v5268 = vunpack.c.l.b16 %v5204
  %v5269 = vunpack.c.l.b16 %v5205
  %v5270 = vunpack.c.l.b16 %v5206
  %v5271 = vunpack.c.l.b16 %v5207
  %v5272 = vunpack.c.l.b16 %v5208
  %v5273 = vunpack.c.l.b16 %v5209
  %v5274 = vunpack.c.l.b16 %v5210
  %v5275 = vunpack.c.l.b16 %v5211
  %v5276 = vunpack.c.l.b16 %v5212
  %v5277 = vunpack.c.l.b16 %v5213
  %v5278 = vunpack.c.l.b16 %v5214
  %v5279 = vunpack.c.l.b16 %v5215
  %v5280 = vunpack.c.l.b16 %v5216
  %v5281 = vunpack.c.l.b16 %v5217
  %v5282 = vunpack.c.l.b16 %v5218
  %v5283 = vunpack.c.l.b16 %v5219
  %v5284 = vunpack.c.l.b16 %v5220
  %v5285 = vunpack.c.l.b16 %v5221
  %v5286 = vunpack.c.l.b16 %v5222
  %v5287 = vunpack.c.l.b16 %v5223
  %v5288 = vunpack.c.l.b16 %v5224
  %v5289 = vunpack.c.l.b16 %v5225
  %v5290 = vpack.c.b16 %v5259, %v5258
  %v5291 = vpack.c.b16 %v5261, %v5260
  %v5292 = vpack.c.b16 %v5263, %v5262
  %v5293 = vpack.c.b16 %v5265, %v5264
  %v5294 = vpack.c.b16 %v5267, %v5266
  %v5295 = vpack.c.b16 %v5269, %v5268
  %v5296 = vpack.c.b16 %v5271, %v5270
  %v5297 = vpack.c.b16 %v5273, %v5272
  %v5298 = vpack.c.b16 %v5275, %v5274
  %v5299 = vpack.c.b16 %v5277, %v5276
  %v5300 = vpack.c.b16 %v5279, %v5278
  %v5301 = vpack.c.b16 %v5281, %v5280
  %v5302 = vpack.c.b16 %v5283, %v5282
  %v5303 = vpack.c.b16 %v5285, %v5284
  %v5304 = vpack.c.b16 %v5287, %v5286
  %v5305 = vpack.c.b16 %v5289, %v5288
  %5322 = vmatpush.bf16.msra.mxu0 %v5297
  %5323 = vmatpush.bf16.msra.mxu0 %v5296
  %5324 = vmatpush.bf16.msra.mxu0 %v5295
  %5325 = vmatpush.bf16.msra.mxu0 %v5294
  %5326 = vmatpush.bf16.msra.mxu0 %v5293
  %5327 = vmatpush.bf16.msra.mxu0 %v5292
  %5328 = vmatpush.bf16.msra.mxu0 %v5291
  %5329 = vmatpush.bf16.msra.mxu0 %v5290
  %5330 = vmatmul.bf16.gmra.mxu0 %v5192
  %v5331 = vpop.f32.mrf.mxu0
  %v5332 = vadd.f32 %v5129, %v5331
  %v5333 = vpop.f32.mrf.mxu0
  %5334 = vdwg.mxu0
  %5335 = vmatpush.bf16.msra.mxu0 %v5305
  %5336 = vmatpush.bf16.msra.mxu0 %v5304
  %5337 = vmatpush.bf16.msra.mxu0 %v5303
  %5338 = vmatpush.bf16.msra.mxu0 %v5302
  %5339 = vmatpush.bf16.msra.mxu0 %v5301
  %5340 = vmatpush.bf16.msra.mxu0 %v5300
  %5341 = vmatpush.bf16.msra.mxu0 %v5299
  %5342 = vmatpush.bf16.msra.mxu0 %v5298
  %5343 = vmatmul.bf16.gmra.mxu0 %v5193
  %v5344 = vpop.f32.mrf.mxu0
  %v5345 = vadd.f32 %v5332, %v5344
  %v5346 = vpop.f32.mrf.mxu0
  %5347 = vdwg.mxu0
  %vm5348 = vcmp.gt.f32.partialorder %v5345, 0.0
  %v5349 = vmul.f32 %v5345, 1.442695
  %v5350 = vpow.pop %v5349
  %v5351 = vsub.f32 %v5350, 1.0
  %v5352 = vmul.f32 %v5351, 1.6732632
  %v5353 = vsel %vm5348, %v5345, %v5352
  %v5354 = vmul.f32 %v5353, 1.050701
  %v5355 = vpack.c.bf16 %v5354, %v5354
  %v5356 = vld [vmem:[%s11] sm:$0xf]
  %v5357 = vld [vmem:[%s11 + $0x4] sm:$0xf]
  %v5358 = vld [vmem:[%s11 + $0x8] sm:$0xf]
  %v5359 = vld [vmem:[%s11 + $0xc] sm:$0xf]
  %v5360 = vld [vmem:[%s11 + $0x10] sm:$0xf]
  %v5361 = vld [vmem:[%s11 + $0x14] sm:$0xf]
  %v5362 = vld [vmem:[%s11 + $0x18] sm:$0xf]
  %v5363 = vld [vmem:[%s11 + $0x1c] sm:$0xf]
  %v5364 = vld [vmem:[%s11 + $0x20] sm:$0xf]
  %v5365 = vld [vmem:[%s11 + $0x24] sm:$0xf]
  %v5366 = vld [vmem:[%s11 + $0x28] sm:$0xf]
  %v5367 = vld [vmem:[%s11 + $0x2c] sm:$0xf]
  %v5368 = vld [vmem:[%s11 + $0x30] sm:$0xf]
  %v5369 = vld [vmem:[%s11 + $0x34] sm:$0xf]
  %v5370 = vld [vmem:[%s11 + $0x38] sm:$0xf]
  %v5371 = vld [vmem:[%s11 + $0x3c] sm:$0xf]
  %v5388 = vunpack.c.l.b16 %v5356
  %v5389 = vunpack.c.l.b16 %v5357
  %v5390 = vunpack.c.l.b16 %v5358
  %v5391 = vunpack.c.l.b16 %v5359
  %v5392 = vunpack.c.l.b16 %v5360
  %v5393 = vunpack.c.l.b16 %v5361
  %v5394 = vunpack.c.l.b16 %v5362
  %v5395 = vunpack.c.l.b16 %v5363
  %v5396 = vunpack.c.l.b16 %v5364
  %v5397 = vunpack.c.l.b16 %v5365
  %v5398 = vunpack.c.l.b16 %v5366
  %v5399 = vunpack.c.l.b16 %v5367
  %v5400 = vunpack.c.l.b16 %v5368
  %v5401 = vunpack.c.l.b16 %v5369
  %v5402 = vunpack.c.l.b16 %v5370
  %v5403 = vunpack.c.l.b16 %v5371
  %v5404 = vpack.c.b16 %v5389, %v5388
  %v5405 = vpack.c.b16 %v5391, %v5390
  %v5406 = vpack.c.b16 %v5393, %v5392
  %v5407 = vpack.c.b16 %v5395, %v5394
  %v5408 = vpack.c.b16 %v5397, %v5396
  %v5409 = vpack.c.b16 %v5399, %v5398
  %v5410 = vpack.c.b16 %v5401, %v5400
  %v5411 = vpack.c.b16 %v5403, %v5402
  %5420 = vmatpush.bf16.msra.mxu0 %v5411
  %5421 = vmatpush.bf16.msra.mxu0 %v5410
  %5422 = vmatpush.bf16.msra.mxu0 %v5409
  %5423 = vmatpush.bf16.msra.mxu0 %v5408
  %5424 = vmatpush.bf16.msra.mxu0 %v5407
  %5425 = vmatpush.bf16.msra.mxu0 %v5406
  %5426 = vmatpush.bf16.msra.mxu0 %v5405
  %5427 = vmatpush.bf16.msra.mxu0 %v5404
  %5428 = vmatmul.bf16.gmra.mxu0 %v5355
  %v5429 = vpop.f32.mrf.mxu0
  %v5430 = vadd.f32 %v5130, %v5429
  %v5431 = vpop.f32.mrf.mxu0
  %5432 = vdwg.mxu0
  %v5433 = vpack.c.bf16 %v5430, %v5430
  %v5434 = vld [vmem:[%s12] sm:$0xf]
  %v5435 = vld [vmem:[%s12 + $0x4] sm:$0xf]
  %v5436 = vld [vmem:[%s12 + $0x8] sm:$0xf]
  %v5437 = vld [vmem:[%s12 + $0xc] sm:$0xf]
  %v5438 = vld [vmem:[%s12 + $0x10] sm:$0xf]
  %v5439 = vld [vmem:[%s12 + $0x14] sm:$0xf]
  %v5440 = vld [vmem:[%s12 + $0x18] sm:$0xf]
  %v5441 = vld [vmem:[%s12 + $0x1c] sm:$0xf]
  %v5450 = vunpack.c.l.b16 %v5434
  %v5451 = vunpack.c.l.b16 %v5435
  %v5452 = vunpack.c.l.b16 %v5436
  %v5453 = vunpack.c.l.b16 %v5437
  %v5454 = vunpack.c.l.b16 %v5438
  %v5455 = vunpack.c.l.b16 %v5439
  %v5456 = vunpack.c.l.b16 %v5440
  %v5457 = vunpack.c.l.b16 %v5441
  %v5458 = vpack.c.b16 %v5451, %v5450
  %v5459 = vpack.c.b16 %v5453, %v5452
  %v5460 = vpack.c.b16 %v5455, %v5454
  %v5461 = vpack.c.b16 %v5457, %v5456
  %vm5466 = vcmask 523264
  %v5468 = vsel %vm5466, %v5433, 0
  %5470 = vmatpush.bf16.msra.mxu0 0
  %5471 = vmatpush.bf16.msra.mxu0 0
  %5472 = vmatpush.bf16.msra.mxu0 0
  %5473 = vmatpush.bf16.msra.mxu0 0
  %5474 = vmatpush.bf16.msra.mxu0 %v5461
  %5475 = vmatpush.bf16.msra.mxu0 %v5460
  %5476 = vmatpush.bf16.msra.mxu0 %v5459
  %5477 = vmatpush.bf16.msra.mxu0 %v5458
  %5478 = vmatmul.bf16.gmra.mxu0 %v5468
  %v5479 = vpop.f32.mrf.mxu0
  %v5480 = vadd.f32 %v5131, %v5479
  %v5481 = vpop.f32.mrf.mxu0
  %5482 = vdwg.mxu0
  %vm5483 = vcmask 1024
  %5484 = vst.msk [vmem:[%s13] sm:$0x3] %vm5483, %v5480
  // Predicated region
  $region54: #{transformer_layer_forward.1} parent=0 // pred_check
    _
  $region55: #{transformer_layer_forward.1} parent=0 // pred_check_branch
    %5486 = sbr.rel (0) target = $region57
  $region56: #{transformer_layer_forward.1} parent=0 // pred_region
    _
  $region57: #{transformer_layer_forward.1} parent=0 // pred_fallthru
    _
  // Predicated region
  $region58: #{transformer_layer_forward.1} parent=0 // pred_check
    _
  $region59: #{transformer_layer_forward.1} parent=0 // pred_check_branch
    %5488 = sbr.rel (0) target = $region61
  $region60: #{transformer_layer_forward.1} parent=0 // pred_region
    _
  $region61: #{transformer_layer_forward.1} parent=0 // pred_fallthru
    _

</llo_original>
